<compile_context>
chip_gen: v6e
topology: v6e:2x2x1
jax: 0.10.0
libtpu: 0.0.40
codegen_flags: <defaults>
</compile_context>

<pallas_src>
import functools

import numpy as np
import jax
import jax.numpy as jnp
from jax.experimental import pallas as pl
from jax.experimental.pallas import tpu as pltpu

EPS = 1e-5
CP = 128                       # channel padding = lane width (lane-dense)
VMEM_LIMIT = 32 * 1024 * 1024  # safe scoped-VMEM budget on v5e/v6e/v7x


# ---------------------------------------------------------------------------
# small helpers
# ---------------------------------------------------------------------------
def _pad_axis(a, size, axis):
    pad = [(0, 0)] * a.ndim
    pad[axis] = (0, size - a.shape[axis])
    return jnp.pad(a, pad)


def _pick_tile(m, target):
    """Largest divisor of m that is <= target and a multiple of 8."""
    for t in range(min(m, target), 7, -1):
        if m % t == 0 and t % 8 == 0:
            return t
    return m


def _pick_row_tile(nh, w):
    """Row-tile so that the per-tile matmul has ~128 rows."""
    target = max(1, min(nh, 128 // max(w, 1)))
    for t in range(target, 0, -1):
        if nh % t == 0:
            return t
    return nh


def _mosaic(sem):
    return pltpu.CompilerParams(dimension_semantics=sem,
                                vmem_limit_bytes=VMEM_LIMIT)


# ---------------------------------------------------------------------------
# Kernel 1: ConvTranspose2d(k=2, s=2, p=0) as a tiled matmul (+ bias)
# ---------------------------------------------------------------------------
def _tconv_kernel(x_ref, w_ref, b_ref, o_ref):
    x = x_ref[...].astype(jnp.bfloat16)
    y = jnp.dot(x, w_ref[...], preferred_element_type=jnp.float32)
    o_ref[...] = y + b_ref[...]


def _tconv_2x2_s2(x_nhwc, wt, bt):
    """x: [N,H0,W0,Cin]; wt: [Cin,Cout,2,2]; bt: [Cout] -> [N,2H0,2W0,Cout]."""
    N, H0, W0, Cin = x_nhwc.shape
    Cout = wt.shape[1]
    M0 = N * H0 * W0

    xf = _pad_axis(x_nhwc.reshape(M0, Cin).astype(jnp.float32), CP, 1)
    # [Cin,Cout,2,2] -> [Cin,2,2,Cout] -> pad -> [CP, 4*CP] (columns = (di,dj,co))
    wm = jnp.transpose(wt, (0, 2, 3, 1))
    wm = _pad_axis(_pad_axis(wm, CP, 3), CP, 0)
    wm = wm.reshape(CP, 4 * CP).astype(jnp.bfloat16)
    bm = jnp.tile(_pad_axis(bt, CP, 0), (4,)).reshape(1, 4 * CP).astype(jnp.float32)

    tm = _pick_tile(M0, 256)
    out = pl.pallas_call(
        _tconv_kernel,
        grid=(M0 // tm,),
        in_specs=[pl.BlockSpec((tm, CP), lambda i: (i, 0)),
                  pl.BlockSpec((CP, 4 * CP), lambda i: (0, 0)),
                  pl.BlockSpec((1, 4 * CP), lambda i: (0, 0))],
        out_specs=pl.BlockSpec((tm, 4 * CP), lambda i: (i, 0)),
        out_shape=jax.ShapeDtypeStruct((M0, 4 * CP), jnp.float32),
        compiler_params=_mosaic(("parallel",)),
    )(xf, wm, bm)

    # depth-to-space (pure layout; left to XLA)
    out = out.reshape(N, H0, W0, 2, 2, CP)
    out = jnp.transpose(out, (0, 1, 3, 2, 4, 5)).reshape(N, 2 * H0, 2 * W0, CP)
    return out[..., :Cout]


# ---------------------------------------------------------------------------
# Kernel 2 (pass 1): 3x3 conv from 3 shifted views + BN-stat accumulation
# ---------------------------------------------------------------------------
def _conv_stats_kernel(x0_ref, x1_ref, x2_ref, w_ref, y_ref, s_ref, *, out_w):
    tr = x0_ref.shape[0]
    cp = x0_ref.shape[2]
    trw = tr * out_w

    acc = jnp.zeros((trw, cp), jnp.float32)
    x_refs = (x0_ref, x1_ref, x2_ref)
    for dy in range(3):
        for dx in range(3):
            lhs = x_refs[dy][:, dx:dx + out_w, :]           # (tr, W, CP)
            lhs = lhs.reshape(trw, cp).astype(jnp.bfloat16)
            acc = acc + jnp.dot(lhs, w_ref[dy * 3 + dx],
                                preferred_element_type=jnp.float32)
    y_ref[...] = acc

    @pl.when(pl.program_id(0) == 0)
    def _():
        s_ref[...] = jnp.zeros_like(s_ref)

    s_ref[0:1, :] += jnp.sum(acc, axis=0, keepdims=True)
    s_ref[1:2, :] += jnp.sum(acc * acc, axis=0, keepdims=True)


# ---------------------------------------------------------------------------
# Kernel 3 (pass 2): per-channel batch-norm affine (+ optional ReLU)
# ---------------------------------------------------------------------------
def _bn_apply_kernel(y_ref, s_ref, g_ref, b_ref, o_ref, *, inv_m, apply_relu):
    s = s_ref[...]                                # (2, CP): sum, sum of squares
    mean = s[0:1, :] * inv_m
    var = jnp.maximum(s[1:2, :] * inv_m - mean * mean, 0.0)
    scale = g_ref[...] * jax.lax.rsqrt(var + EPS)
    shift = b_ref[...] - mean * scale
    out = y_ref[...] * scale + shift
    if apply_relu:
        out = jnp.maximum(out, 0.0)
    o_ref[...] = out


# ---------------------------------------------------------------------------
# One conv(3x3, pad=1) + BatchNorm (+ReLU) stage, two-pass.
# ---------------------------------------------------------------------------
def _conv_bn_stage(x_nhwc, w_oihw, gamma, beta, *, relu):
    N, H, W, _ = x_nhwc.shape
    NH, M = N * H, N * H * W

    # channel-pad to 128 lanes + 1-pixel zero halo; 3 compact vertical views
    xp = _pad_axis(x_nhwc.astype(jnp.float32), CP, 3)
    xp = jnp.pad(xp, ((0, 0), (1, 1), (1, 1), (0, 0)))
    views = [xp[:, dy:dy + H, :, :].reshape(NH, W + 2, CP) for dy in range(3)]

    # [Cout,Cin,3,3] -> [3,3,Cin,Cout] -> pad -> [9, CP, CP] (bf16 MXU weights)
    wm = jnp.transpose(w_oihw, (2, 3, 1, 0))
    wm = _pad_axis(_pad_axis(wm, CP, 3), CP, 2)
    wm = wm.reshape(9, CP, CP).astype(jnp.bfloat16)

    tr = _pick_row_tile(NH, W)
    view_spec = pl.BlockSpec((tr, W + 2, CP), lambda i: (i, 0, 0))
    y_raw, stats = pl.pallas_call(
        functools.partial(_conv_stats_kernel, out_w=W),
        grid=(NH // tr,),
        in_specs=[view_spec, view_spec, view_spec,
                  pl.BlockSpec((9, CP, CP), lambda i: (0, 0, 0))],
        out_specs=(pl.BlockSpec((tr * W, CP), lambda i: (i, 0)),
                   pl.BlockSpec((2, CP), lambda i: (0, 0))),
        out_shape=(jax.ShapeDtypeStruct((M, CP), jnp.float32),
                   jax.ShapeDtypeStruct((2, CP), jnp.float32)),
        compiler_params=_mosaic(("arbitrary",)),   # stats accumulate across grid
    )(*views, wm)

    gp = _pad_axis(gamma.astype(jnp.float32), CP, 0).reshape(1, CP)
    bp = _pad_axis(beta.astype(jnp.float32), CP, 0).reshape(1, CP)
    tm = _pick_tile(M, 256)
    out = pl.pallas_call(
        functools.partial(_bn_apply_kernel, inv_m=1.0 / M, apply_relu=relu),
        grid=(M // tm,),
        in_specs=[pl.BlockSpec((tm, CP), lambda i: (i, 0)),
                  pl.BlockSpec((2, CP), lambda i: (0, 0)),
                  pl.BlockSpec((1, CP), lambda i: (0, 0)),
                  pl.BlockSpec((1, CP), lambda i: (0, 0))],
        out_specs=pl.BlockSpec((tm, CP), lambda i: (i, 0)),
        out_shape=jax.ShapeDtypeStruct((M, CP), jnp.float32),
        compiler_params=_mosaic(("parallel",)),
    )(y_raw, stats, gp, bp)

    return out.reshape(N, H, W, CP)   # channel-padded NHWC activation


# ---------------------------------------------------------------------------
# Full decoder_block forward (PyTorch NCHW I/O)
# ---------------------------------------------------------------------------
def decoder_block_forward(x_nchw, skip_nchw, params):
    x = jnp.transpose(x_nchw, (0, 2, 3, 1))        # NCHW -> NHWC
    skip = jnp.transpose(skip_nchw, (0, 2, 3, 1))

    up = _tconv_2x2_s2(x, params["wt"], params["bt"])   # [N, 2H, 2W, out_c]
    # TODO(synk): channel concat + depth-to-space/transpose are pure data
    # movement and are left to XLA rather than a dedicated Pallas kernel.
    cat = jnp.concatenate([up, skip], axis=-1)          # torch.cat(axis=1)

    # conv biases b1/b2 cancel exactly in batch-statistic BN -> not used.
    a1 = _conv_bn_stage(cat, params["w1"], params["g1"], params["beta1"], relu=False)
    a2 = _conv_bn_stage(a1, params["w2"], params["g2"], params["beta2"], relu=True)

    out_c = params["w2"].shape[0]
    return jnp.transpose(a2[..., :out_c], (0, 3, 1, 2))  # NHWC -> NCHW


# ---------------------------------------------------------------------------
# Pure-JAX f32 reference (PyTorch semantics)
# ---------------------------------------------------------------------------
def _ref_forward(x, skip, params):
    wt, bt = params["wt"], params["bt"]
    N, _, H0, W0 = x.shape
    Cout = wt.shape[1]
    t = jnp.einsum("ncij,codk->noidjk", x, wt,
                   precision=jax.lax.Precision.HIGHEST)
    t = t.reshape(N, Cout, 2 * H0, 2 * W0) + bt[None, :, None, None]
    y = jnp.concatenate([t, skip], axis=1)

    def conv(v, w, b):
        o = jax.lax.conv_general_dilated(
            v, w, (1, 1), "SAME",
            dimension_numbers=("NCHW", "OIHW", "NCHW"),
            precision=jax.lax.Precision.HIGHEST)
        return o + b[None, :, None, None]

    def bn(v, g, bb):
        mean = v.mean(axis=(0, 2, 3), keepdims=True)
        var = ((v - mean) ** 2).mean(axis=(0, 2, 3), keepdims=True)
        return (v - mean) / jnp.sqrt(var + EPS) * g[None, :, None, None] \
            + bb[None, :, None, None]

    y = bn(conv(y, params["w1"], params["b1"]), params["g1"], params["beta1"])
    y = bn(conv(y, params["w2"], params["b2"]), params["g2"], params["beta2"])
    return jnp.maximum(y, 0.0)


# ---------------------------------------------------------------------------
if __name__ == "__main__":
    N, IN_C, OUT_C, H0, W0 = 2, 4, 8, 8, 8          # decoder_block(4, 8)

    key = jax.random.PRNGKey(0)
    k = jax.random.split(key, 12)
    params = {
        "wt": 0.1 * jax.random.normal(k[0], (IN_C, OUT_C, 2, 2), jnp.float32),
        "bt": 0.1 * jax.random.normal(k[1], (OUT_C,), jnp.float32),
        "w1": 0.1 * jax.random.normal(k[2], (OUT_C, 2 * OUT_C, 3, 3), jnp.float32),
        "b1": 0.1 * jax.random.normal(k[3], (OUT_C,), jnp.float32),
        "g1": 1.0 + 0.1 * jax.random.normal(k[4], (OUT_C,), jnp.float32),
        "beta1": 0.1 * jax.random.normal(k[5], (OUT_C,), jnp.float32),
        "w2": 0.1 * jax.random.normal(k[6], (OUT_C, OUT_C, 3, 3), jnp.float32),
        "b2": 0.1 * jax.random.normal(k[7], (OUT_C,), jnp.float32),
        "g2": 1.0 + 0.1 * jax.random.normal(k[8], (OUT_C,), jnp.float32),
        "beta2": 0.1 * jax.random.normal(k[9], (OUT_C,), jnp.float32),
    }
    x = jax.random.normal(k[10], (N, IN_C, H0, W0), jnp.float32)
    skip = jax.random.normal(k[11], (N, OUT_C, 2 * H0, 2 * W0), jnp.float32)

    fwd = jax.jit(decoder_block_forward)
    out = jax.block_until_ready(fwd(x, skip, params))
    ref = jax.block_until_ready(_ref_forward(x, skip, params))

    assert out.shape == (N, OUT_C, 2 * H0, 2 * W0)
    # bf16 MXU operands + f32 accumulation vs. f32/HIGHEST reference.
    np.testing.assert_allclose(np.asarray(out), np.asarray(ref),
                               rtol=2e-2, atol=2e-2)
    print("KERNEL_OK")
</pallas_src>

<mosaic_0001>
module attributes {stable_mosaic.version = 11 : i64} {
  func.func @_tconv_kernel(%arg0: i32, %arg1: memref<128x128xf32, #tpu.memory_space<vmem>>, %arg2: memref<128x512xbf16, #tpu.memory_space<vmem>>, %arg3: memref<1x512xf32, #tpu.memory_space<vmem>>, %arg4: memref<128x512xf32, #tpu.memory_space<vmem>>) attributes {dimension_semantics = [#tpu.dimension_semantics<parallel>], iteration_bounds = array<i64: 1>, scalar_prefetch = 0 : i64, scratch_operands = 0 : i64, tpu.core_type = #tpu.core_type<tc>, window_params = [{transform_indices = @transform_0, window_bounds = array<i64: 128, 128>}, {pipeline_mode = #tpu.pipeline_mode<synchronous>, transform_indices = @transform_1, window_bounds = array<i64: 128, 512>}, {pipeline_mode = #tpu.pipeline_mode<synchronous>, transform_indices = @transform_2, window_bounds = array<i64: 1, 512>}, {transform_indices = @transform_3, window_bounds = array<i64: 128, 512>}]} {
    %c0 = arith.constant 0 : index
    %c0_0 = arith.constant 0 : index
    %0 = vector.load %arg1[%c0, %c0_0] : memref<128x128xf32, #tpu.memory_space<vmem>>, vector<128x128xf32>
    %1 = arith.truncf %0 : vector<128x128xf32> to vector<128x128xbf16>
    %c0_1 = arith.constant 0 : index
    %c0_2 = arith.constant 0 : index
    %2 = vector.load %arg2[%c0_1, %c0_2] : memref<128x512xbf16, #tpu.memory_space<vmem>>, vector<128x512xbf16>
    %cst = arith.constant dense<0.000000e+00> : vector<128x512xf32>
    %3 = tpu.matmul %1, %2, %cst {dimension_numbers = #tpu.dot_dimension_numbers<[1], [0], [0], [1], [0, 0, 1, 1], [], []>} : vector<128x128xbf16>, vector<128x512xbf16>, vector<128x512xf32> -> vector<128x512xf32>
    %c0_3 = arith.constant 0 : index
    %c0_4 = arith.constant 0 : index
    %4 = vector.load %arg3[%c0_3, %c0_4] : memref<1x512xf32, #tpu.memory_space<vmem>>, vector<1x512xf32>
    %5 = vector.broadcast %4 : vector<1x512xf32> to vector<128x512xf32>
    %6 = arith.addf %3, %5 : vector<128x512xf32>
    %c0_5 = arith.constant 0 : index
    %c0_6 = arith.constant 0 : index
    %7 = vector.load %arg4[%c0_5, %c0_6] : memref<128x512xf32, #tpu.memory_space<vmem>>, vector<128x512xf32>
    tpu.vector_store %arg4[%c0_5, %c0_6], %6 {strides = array<i32>} : memref<128x512xf32, #tpu.memory_space<vmem>>, vector<128x512xf32>,
    return
  }
  func.func @transform_0(%arg0: i32) -> (i32, i32) {
    %c0_i32 = arith.constant 0 : i32
    %c0_i32_0 = arith.constant 0 : i32
    return %arg0, %c0_i32 : i32, i32
  }
  func.func @transform_1(%arg0: i32) -> (i32, i32) {
    %c0_i32 = arith.constant 0 : i32
    %c0_i32_0 = arith.constant 0 : i32
    %c0_i32_1 = arith.constant 0 : i32
    return %c0_i32, %c0_i32_0 : i32, i32
  }
  func.func @transform_2(%arg0: i32) -> (i32, i32) {
    %c0_i32 = arith.constant 0 : i32
    %c0_i32_0 = arith.constant 0 : i32
    %c0_i32_1 = arith.constant 0 : i32
    return %c0_i32, %c0_i32_0 : i32, i32
  }
  func.func @transform_3(%arg0: i32) -> (i32, i32) {
    %c0_i32 = arith.constant 0 : i32
    %c0_i32_0 = arith.constant 0 : i32
    return %arg0, %c0_i32 : i32, i32
  }
}

module attributes {stable_mosaic.version = 11 : i64} {
  func.func @_conv_stats_kernel(%arg0: i32, %arg1: memref<8x18x128xf32, #tpu.memory_space<vmem>>, %arg2: memref<8x18x128xf32, #tpu.memory_space<vmem>>, %arg3: memref<8x18x128xf32, #tpu.memory_space<vmem>>, %arg4: memref<9x128x128xbf16, #tpu.memory_space<vmem>>, %arg5: memref<128x128xf32, #tpu.memory_space<vmem>>, %arg6: memref<2x128xf32, #tpu.memory_space<vmem>>) attributes {dimension_semantics = [#tpu.dimension_semantics<arbitrary>], iteration_bounds = array<i64: 4>, scalar_prefetch = 0 : i64, scratch_operands = 0 : i64, tpu.core_type = #tpu.core_type<tc>, window_params = [{transform_indices = @transform_0, window_bounds = array<i64: 8, 18, 128>}, {transform_indices = @transform_1, window_bounds = array<i64: 8, 18, 128>}, {transform_indices = @transform_2, window_bounds = array<i64: 8, 18, 128>}, {pipeline_mode = #tpu.pipeline_mode<synchronous>, transform_indices = @transform_3, window_bounds = array<i64: 9, 128, 128>}, {transform_indices = @transform_4, window_bounds = array<i64: 128, 128>}, {pipeline_mode = #tpu.pipeline_mode<synchronous>, transform_indices = @transform_5, window_bounds = array<i64: 2, 128>}]} {
    %cst = arith.constant 0.000000e+00 : f32
    %0 = vector.broadcast %cst : f32 to vector<128x128xf32>
    %c0 = arith.constant 0 : index
    %c0_0 = arith.constant 0 : index
    %c0_1 = arith.constant 0 : index
    %1 = vector.load %arg1[%c0, %c0_0, %c0_1] : memref<8x18x128xf32, #tpu.memory_space<vmem>>, vector<8x16x128xf32>
    %2 = vector.shape_cast %1 : vector<8x16x128xf32> to vector<128x128xf32>
    %3 = arith.truncf %2 : vector<128x128xf32> to vector<128x128xbf16>
    %c0_2 = arith.constant 0 : index
    %c0_3 = arith.constant 0 : index
    %c0_4 = arith.constant 0 : index
    %4 = vector.load %arg4[%c0_2, %c0_3, %c0_4] : memref<9x128x128xbf16, #tpu.memory_space<vmem>>, vector<1x128x128xbf16>
    %5 = vector.shape_cast %4 : vector<1x128x128xbf16> to vector<128x128xbf16>
    %cst_5 = arith.constant dense<0.000000e+00> : vector<128x128xf32>
    %6 = tpu.matmul %3, %5, %cst_5 {dimension_numbers = #tpu.dot_dimension_numbers<[1], [0], [0], [1], [0, 0, 1, 1], [], []>} : vector<128x128xbf16>, vector<128x128xbf16>, vector<128x128xf32> -> vector<128x128xf32>
    %7 = arith.addf %0, %6 : vector<128x128xf32>
    %c0_6 = arith.constant 0 : index
    %c1 = arith.constant 1 : index
    %c0_7 = arith.constant 0 : index
    %8 = vector.load %arg1[%c0_6, %c1, %c0_7] : memref<8x18x128xf32, #tpu.memory_space<vmem>>, vector<8x16x128xf32>
    %9 = vector.shape_cast %8 : vector<8x16x128xf32> to vector<128x128xf32>
    %10 = arith.truncf %9 : vector<128x128xf32> to vector<128x128xbf16>
    %c1_8 = arith.constant 1 : index
    %c0_9 = arith.constant 0 : index
    %c0_10 = arith.constant 0 : index
    %11 = vector.load %arg4[%c1_8, %c0_9, %c0_10] : memref<9x128x128xbf16, #tpu.memory_space<vmem>>, vector<1x128x128xbf16>
    %12 = vector.shape_cast %11 : vector<1x128x128xbf16> to vector<128x128xbf16>
    %cst_11 = arith.constant dense<0.000000e+00> : vector<128x128xf32>
    %13 = tpu.matmul %10, %12, %cst_11 {dimension_numbers = #tpu.dot_dimension_numbers<[1], [0], [0], [1], [0, 0, 1, 1], [], []>} : vector<128x128xbf16>, vector<128x128xbf16>, vector<128x128xf32> -> vector<128x128xf32>
    %14 = arith.addf %7, %13 : vector<128x128xf32>
    %c0_12 = arith.constant 0 : index
    %c2 = arith.constant 2 : index
    %c0_13 = arith.constant 0 : index
    %15 = vector.load %arg1[%c0_12, %c2, %c0_13] : memref<8x18x128xf32, #tpu.memory_space<vmem>>, vector<8x16x128xf32>
    %16 = vector.shape_cast %15 : vector<8x16x128xf32> to vector<128x128xf32>
    %17 = arith.truncf %16 : vector<128x128xf32> to vector<128x128xbf16>
    %c2_14 = arith.constant 2 : index
    %c0_15 = arith.constant 0 : index
    %c0_16 = arith.constant 0 : index
    %18 = vector.load %arg4[%c2_14, %c0_15, %c0_16] : memref<9x128x128xbf16, #tpu.memory_space<vmem>>, vector<1x128x128xbf16>
    %19 = vector.shape_cast %18 : vector<1x128x128xbf16> to vector<128x128xbf16>
    %cst_17 = arith.constant dense<0.000000e+00> : vector<128x128xf32>
    %20 = tpu.matmul %17, %19, %cst_17 {dimension_numbers = #tpu.dot_dimension_numbers<[1], [0], [0], [1], [0, 0, 1, 1], [], []>} : vector<128x128xbf16>, vector<128x128xbf16>, vector<128x128xf32> -> vector<128x128xf32>
    %21 = arith.addf %14, %20 : vector<128x128xf32>
    %c0_18 = arith.constant 0 : index
    %c0_19 = arith.constant 0 : index
    %c0_20 = arith.constant 0 : index
    %22 = vector.load %arg2[%c0_18, %c0_19, %c0_20] : memref<8x18x128xf32, #tpu.memory_space<vmem>>, vector<8x16x128xf32>
    %23 = vector.shape_cast %22 : vector<8x16x128xf32> to vector<128x128xf32>
    %24 = arith.truncf %23 : vector<128x128xf32> to vector<128x128xbf16>
    %c3 = arith.constant 3 : index
    %c0_21 = arith.constant 0 : index
    %c0_22 = arith.constant 0 : index
    %25 = vector.load %arg4[%c3, %c0_21, %c0_22] : memref<9x128x128xbf16, #tpu.memory_space<vmem>>, vector<1x128x128xbf16>
    %26 = vector.shape_cast %25 : vector<1x128x128xbf16> to vector<128x128xbf16>
    %cst_23 = arith.constant dense<0.000000e+00> : vector<128x128xf32>
    %27 = tpu.matmul %24, %26, %cst_23 {dimension_numbers = #tpu.dot_dimension_numbers<[1], [0], [0], [1], [0, 0, 1, 1], [], []>} : vector<128x128xbf16>, vector<128x128xbf16>, vector<128x128xf32> -> vector<128x128xf32>
    %28 = arith.addf %21, %27 : vector<128x128xf32>
    %c0_24 = arith.constant 0 : index
    %c1_25 = arith.constant 1 : index
    %c0_26 = arith.constant 0 : index
    %29 = vector.load %arg2[%c0_24, %c1_25, %c0_26] : memref<8x18x128xf32, #tpu.memory_space<vmem>>, vector<8x16x128xf32>
    %30 = vector.shape_cast %29 : vector<8x16x128xf32> to vector<128x128xf32>
    %31 = arith.truncf %30 : vector<128x128xf32> to vector<128x128xbf16>
    %c4 = arith.constant 4 : index
    %c0_27 = arith.constant 0 : index
    %c0_28 = arith.constant 0 : index
    %32 = vector.load %arg4[%c4, %c0_27, %c0_28] : memref<9x128x128xbf16, #tpu.memory_space<vmem>>, vector<1x128x128xbf16>
    %33 = vector.shape_cast %32 : vector<1x128x128xbf16> to vector<128x128xbf16>
    %cst_29 = arith.constant dense<0.000000e+00> : vector<128x128xf32>
    %34 = tpu.matmul %31, %33, %cst_29 {dimension_numbers = #tpu.dot_dimension_numbers<[1], [0], [0], [1], [0, 0, 1, 1], [], []>} : vector<128x128xbf16>, vector<128x128xbf16>, vector<128x128xf32> -> vector<128x128xf32>
    %35 = arith.addf %28, %34 : vector<128x128xf32>
    %c0_30 = arith.constant 0 : index
    %c2_31 = arith.constant 2 : index
    %c0_32 = arith.constant 0 : index
    %36 = vector.load %arg2[%c0_30, %c2_31, %c0_32] : memref<8x18x128xf32, #tpu.memory_space<vmem>>, vector<8x16x128xf32>
    %37 = vector.shape_cast %36 : vector<8x16x128xf32> to vector<128x128xf32>
    %38 = arith.truncf %37 : vector<128x128xf32> to vector<128x128xbf16>
    %c5 = arith.constant 5 : index
    %c0_33 = arith.constant 0 : index
    %c0_34 = arith.constant 0 : index
    %39 = vector.load %arg4[%c5, %c0_33, %c0_34] : memref<9x128x128xbf16, #tpu.memory_space<vmem>>, vector<1x128x128xbf16>
    %40 = vector.shape_cast %39 : vector<1x128x128xbf16> to vector<128x128xbf16>
    %cst_35 = arith.constant dense<0.000000e+00> : vector<128x128xf32>
    %41 = tpu.matmul %38, %40, %cst_35 {dimension_numbers = #tpu.dot_dimension_numbers<[1], [0], [0], [1], [0, 0, 1, 1], [], []>} : vector<128x128xbf16>, vector<128x128xbf16>, vector<128x128xf32> -> vector<128x128xf32>
    %42 = arith.addf %35, %41 : vector<128x128xf32>
    %c0_36 = arith.constant 0 : index
    %c0_37 = arith.constant 0 : index
    %c0_38 = arith.constant 0 : index
    %43 = vector.load %arg3[%c0_36, %c0_37, %c0_38] : memref<8x18x128xf32, #tpu.memory_space<vmem>>, vector<8x16x128xf32>
    %44 = vector.shape_cast %43 : vector<8x16x128xf32> to vector<128x128xf32>
    %45 = arith.truncf %44 : vector<128x128xf32> to vector<128x128xbf16>
    %c6 = arith.constant 6 : index
    %c0_39 = arith.constant 0 : index
    %c0_40 = arith.constant 0 : index
    %46 = vector.load %arg4[%c6, %c0_39, %c0_40] : memref<9x128x128xbf16, #tpu.memory_space<vmem>>, vector<1x128x128xbf16>
    %47 = vector.shape_cast %46 : vector<1x128x128xbf16> to vector<128x128xbf16>
    %cst_41 = arith.constant dense<0.000000e+00> : vector<128x128xf32>
    %48 = tpu.matmul %45, %47, %cst_41 {dimension_numbers = #tpu.dot_dimension_numbers<[1], [0], [0], [1], [0, 0, 1, 1], [], []>} : vector<128x128xbf16>, vector<128x128xbf16>, vector<128x128xf32> -> vector<128x128xf32>
    %49 = arith.addf %42, %48 : vector<128x128xf32>
    %c0_42 = arith.constant 0 : index
    %c1_43 = arith.constant 1 : index
    %c0_44 = arith.constant 0 : index
    %50 = vector.load %arg3[%c0_42, %c1_43, %c0_44] : memref<8x18x128xf32, #tpu.memory_space<vmem>>, vector<8x16x128xf32>
    %51 = vector.shape_cast %50 : vector<8x16x128xf32> to vector<128x128xf32>
    %52 = arith.truncf %51 : vector<128x128xf32> to vector<128x128xbf16>
    %c7 = arith.constant 7 : index
    %c0_45 = arith.constant 0 : index
    %c0_46 = arith.constant 0 : index
    %53 = vector.load %arg4[%c7, %c0_45, %c0_46] : memref<9x128x128xbf16, #tpu.memory_space<vmem>>, vector<1x128x128xbf16>
    %54 = vector.shape_cast %53 : vector<1x128x128xbf16> to vector<128x128xbf16>
    %cst_47 = arith.constant dense<0.000000e+00> : vector<128x128xf32>
    %55 = tpu.matmul %52, %54, %cst_47 {dimension_numbers = #tpu.dot_dimension_numbers<[1], [0], [0], [1], [0, 0, 1, 1], [], []>} : vector<128x128xbf16>, vector<128x128xbf16>, vector<128x128xf32> -> vector<128x128xf32>
    %56 = arith.addf %49, %55 : vector<128x128xf32>
    %c0_48 = arith.constant 0 : index
    %c2_49 = arith.constant 2 : index
    %c0_50 = arith.constant 0 : index
    %57 = vector.load %arg3[%c0_48, %c2_49, %c0_50] : memref<8x18x128xf32, #tpu.memory_space<vmem>>, vector<8x16x128xf32>
    %58 = vector.shape_cast %57 : vector<8x16x128xf32> to vector<128x128xf32>
    %59 = arith.truncf %58 : vector<128x128xf32> to vector<128x128xbf16>
    %c8 = arith.constant 8 : index
    %c0_51 = arith.constant 0 : index
    %c0_52 = arith.constant 0 : index
    %60 = vector.load %arg4[%c8, %c0_51, %c0_52] : memref<9x128x128xbf16, #tpu.memory_space<vmem>>, vector<1x128x128xbf16>
    %61 = vector.shape_cast %60 : vector<1x128x128xbf16> to vector<128x128xbf16>
    %cst_53 = arith.constant dense<0.000000e+00> : vector<128x128xf32>
    %62 = tpu.matmul %59, %61, %cst_53 {dimension_numbers = #tpu.dot_dimension_numbers<[1], [0], [0], [1], [0, 0, 1, 1], [], []>} : vector<128x128xbf16>, vector<128x128xbf16>, vector<128x128xf32> -> vector<128x128xf32>
    %63 = arith.addf %56, %62 : vector<128x128xf32>
    %c0_54 = arith.constant 0 : index
    %c0_55 = arith.constant 0 : index
    %64 = vector.load %arg5[%c0_54, %c0_55] : memref<128x128xf32, #tpu.memory_space<vmem>>, vector<128x128xf32>
    tpu.vector_store %arg5[%c0_54, %c0_55], %63 {strides = array<i32>} : memref<128x128xf32, #tpu.memory_space<vmem>>, vector<128x128xf32>,
    %c0_i32 = arith.constant 0 : i32
    %65 = arith.cmpi eq, %arg0, %c0_i32 : i32
    %66 = arith.extui %65 : i1 to i32
    %c0_i32_56 = arith.constant 0 : i32
    %67 = arith.cmpi ne, %66, %c0_i32_56 : i32
    scf.if %67 {
      %cst_67 = arith.constant 0.000000e+00 : f32
      %79 = vector.broadcast %cst_67 : f32 to vector<2x128xf32>
      %c0_68 = arith.constant 0 : index
      %c0_69 = arith.constant 0 : index
      %80 = vector.load %arg6[%c0_68, %c0_69] : memref<2x128xf32, #tpu.memory_space<vmem>>, vector<2x128xf32>
      tpu.vector_store %arg6[%c0_68, %c0_69], %79 {strides = array<i32>} : memref<2x128xf32, #tpu.memory_space<vmem>>, vector<2x128xf32>,
    } else {
    }
    %c0_57 = arith.constant 0 : index
    %c0_58 = arith.constant 0 : index
    %68 = vector.load %arg6[%c0_57, %c0_58] : memref<2x128xf32, #tpu.memory_space<vmem>>, vector<1x128xf32>
    %cst_59 = arith.constant dense<0.000000e+00> : vector<128xf32>
    %69 = vector.multi_reduction <add>, %63, %cst_59 [0] : vector<128x128xf32> to vector<128xf32>
    %70 = vector.shape_cast %69 : vector<128xf32> to vector<1x128xf32>
    %71 = arith.addf %68, %70 : vector<1x128xf32>
    %c0_60 = arith.constant 0 : index
    %c0_61 = arith.constant 0 : index
    %72 = vector.load %arg6[%c0_60, %c0_61] : memref<2x128xf32, #tpu.memory_space<vmem>>, vector<1x128xf32>
    tpu.vector_store %arg6[%c0_60, %c0_61], %71 {strides = array<i32>} : memref<2x128xf32, #tpu.memory_space<vmem>>, vector<1x128xf32>,
    %c1_62 = arith.constant 1 : index
    %c0_63 = arith.constant 0 : index
    %73 = vector.load %arg6[%c1_62, %c0_63] : memref<2x128xf32, #tpu.memory_space<vmem>>, vector<1x128xf32>
    %74 = arith.mulf %63, %63 : vector<128x128xf32>
    %cst_64 = arith.constant dense<0.000000e+00> : vector<128xf32>
    %75 = vector.multi_reduction <add>, %74, %cst_64 [0] : vector<128x128xf32> to vector<128xf32>
    %76 = vector.shape_cast %75 : vector<128xf32> to vector<1x128xf32>
    %77 = arith.addf %73, %76 : vector<1x128xf32>
    %c1_65 = arith.constant 1 : index
    %c0_66 = arith.constant 0 : index
    %78 = vector.load %arg6[%c1_65, %c0_66] : memref<2x128xf32, #tpu.memory_space<vmem>>, vector<1x128xf32>
    tpu.vector_store %arg6[%c1_65, %c0_66], %77 {strides = array<i32>} : memref<2x128xf32, #tpu.memory_space<vmem>>, vector<1x128xf32>,
    return
  }
  func.func @transform_0(%arg0: i32) -> (i32, i32, i32) {
    %c0_i32 = arith.constant 0 : i32
    %c0_i32_0 = arith.constant 0 : i32
    %c0_i32_1 = arith.constant 0 : i32
    return %arg0, %c0_i32, %c0_i32_0 : i32, i32, i32
  }
  func.func @transform_1(%arg0: i32) -> (i32, i32, i32) {
    %c0_i32 = arith.constant 0 : i32
    %c0_i32_0 = arith.constant 0 : i32
    %c0_i32_1 = arith.constant 0 : i32
    return %arg0, %c0_i32, %c0_i32_0 : i32, i32, i32
  }
  func.func @transform_2(%arg0: i32) -> (i32, i32, i32) {
    %c0_i32 = arith.constant 0 : i32
    %c0_i32_0 = arith.constant 0 : i32
    %c0_i32_1 = arith.constant 0 : i32
    return %arg0, %c0_i32, %c0_i32_0 : i32, i32, i32
  }
  func.func @transform_3(%arg0: i32) -> (i32, i32, i32) {
    %c0_i32 = arith.constant 0 : i32
    %c0_i32_0 = arith.constant 0 : i32
    %c0_i32_1 = arith.constant 0 : i32
    %c0_i32_2 = arith.constant 0 : i32
    return %c0_i32, %c0_i32_0, %c0_i32_1 : i32, i32, i32
  }
  func.func @transform_4(%arg0: i32) -> (i32, i32) {
    %c0_i32 = arith.constant 0 : i32
    %c0_i32_0 = arith.constant 0 : i32
    return %arg0, %c0_i32 : i32, i32
  }
  func.func @transform_5(%arg0: i32) -> (i32, i32) {
    %c0_i32 = arith.constant 0 : i32
    %c0_i32_0 = arith.constant 0 : i32
    %c0_i32_1 = arith.constant 0 : i32
    return %c0_i32, %c0_i32_0 : i32, i32
  }
}

module attributes {stable_mosaic.version = 11 : i64} {
  func.func @_bn_apply_kernel(%arg0: i32, %arg1: memref<256x128xf32, #tpu.memory_space<vmem>>, %arg2: memref<2x128xf32, #tpu.memory_space<vmem>>, %arg3: memref<1x128xf32, #tpu.memory_space<vmem>>, %arg4: memref<1x128xf32, #tpu.memory_space<vmem>>, %arg5: memref<256x128xf32, #tpu.memory_space<vmem>>) attributes {dimension_semantics = [#tpu.dimension_semantics<parallel>], iteration_bounds = array<i64: 2>, scalar_prefetch = 0 : i64, scratch_operands = 0 : i64, tpu.core_type = #tpu.core_type<tc>, window_params = [{transform_indices = @transform_0, window_bounds = array<i64: 256, 128>}, {pipeline_mode = #tpu.pipeline_mode<synchronous>, transform_indices = @transform_1, window_bounds = array<i64: 2, 128>}, {pipeline_mode = #tpu.pipeline_mode<synchronous>, transform_indices = @transform_2, window_bounds = array<i64: 1, 128>}, {pipeline_mode = #tpu.pipeline_mode<synchronous>, transform_indices = @transform_3, window_bounds = array<i64: 1, 128>}, {transform_indices = @transform_4, window_bounds = array<i64: 256, 128>}]} {
    %c0 = arith.constant 0 : index
    %c0_0 = arith.constant 0 : index
    %0 = vector.load %arg2[%c0, %c0_0] : memref<2x128xf32, #tpu.memory_space<vmem>>, vector<2x128xf32>
    %1 = vector.extract_strided_slice %0 {offsets = [0, 0], sizes = [1, 128], strides = [1, 1]} : vector<2x128xf32> to vector<1x128xf32>
    %cst = arith.constant 0.001953125 : f32
    %2 = vector.broadcast %cst : f32 to vector<1x128xf32>
    %3 = arith.mulf %1, %2 : vector<1x128xf32>
    %4 = vector.extract_strided_slice %0 {offsets = [1, 0], sizes = [1, 128], strides = [1, 1]} : vector<2x128xf32> to vector<1x128xf32>
    %cst_1 = arith.constant 0.001953125 : f32
    %5 = vector.broadcast %cst_1 : f32 to vector<1x128xf32>
    %6 = arith.mulf %4, %5 : vector<1x128xf32>
    %7 = arith.mulf %3, %3 : vector<1x128xf32>
    %8 = arith.subf %6, %7 : vector<1x128xf32>
    %cst_2 = arith.constant 0.000000e+00 : f32
    %9 = vector.broadcast %cst_2 : f32 to vector<1x128xf32>
    %10 = arith.maximumf %8, %9 : vector<1x128xf32>
    %c0_3 = arith.constant 0 : index
    %c0_4 = arith.constant 0 : index
    %11 = vector.load %arg3[%c0_3, %c0_4] : memref<1x128xf32, #tpu.memory_space<vmem>>, vector<1x128xf32>
    %cst_5 = arith.constant 9.99999974E-6 : f32
    %12 = vector.broadcast %cst_5 : f32 to vector<1x128xf32>
    %13 = arith.addf %10, %12 : vector<1x128xf32>
    %14 = math.rsqrt %13 : vector<1x128xf32>
    %15 = arith.mulf %11, %14 : vector<1x128xf32>
    %c0_6 = arith.constant 0 : index
    %c0_7 = arith.constant 0 : index
    %16 = vector.load %arg4[%c0_6, %c0_7] : memref<1x128xf32, #tpu.memory_space<vmem>>, vector<1x128xf32>
    %17 = arith.mulf %3, %15 : vector<1x128xf32>
    %18 = arith.subf %16, %17 : vector<1x128xf32>
    %c0_8 = arith.constant 0 : index
    %c0_9 = arith.constant 0 : index
    %19 = vector.load %arg1[%c0_8, %c0_9] : memref<256x128xf32, #tpu.memory_space<vmem>>, vector<256x128xf32>
    %20 = vector.broadcast %15 : vector<1x128xf32> to vector<256x128xf32>
    %21 = arith.mulf %19, %20 : vector<256x128xf32>
    %22 = vector.broadcast %18 : vector<1x128xf32> to vector<256x128xf32>
    %23 = arith.addf %21, %22 : vector<256x128xf32>
    %c0_10 = arith.constant 0 : index
    %c0_11 = arith.constant 0 : index
    %24 = vector.load %arg5[%c0_10, %c0_11] : memref<256x128xf32, #tpu.memory_space<vmem>>, vector<256x128xf32>
    tpu.vector_store %arg5[%c0_10, %c0_11], %23 {strides = array<i32>} : memref<256x128xf32, #tpu.memory_space<vmem>>, vector<256x128xf32>,
    return
  }
  func.func @transform_0(%arg0: i32) -> (i32, i32) {
    %c0_i32 = arith.constant 0 : i32
    %c0_i32_0 = arith.constant 0 : i32
    return %arg0, %c0_i32 : i32, i32
  }
  func.func @transform_1(%arg0: i32) -> (i32, i32) {
    %c0_i32 = arith.constant 0 : i32
    %c0_i32_0 = arith.constant 0 : i32
    %c0_i32_1 = arith.constant 0 : i32
    return %c0_i32, %c0_i32_0 : i32, i32
  }
  func.func @transform_2(%arg0: i32) -> (i32, i32) {
    %c0_i32 = arith.constant 0 : i32
    %c0_i32_0 = arith.constant 0 : i32
    %c0_i32_1 = arith.constant 0 : i32
    return %c0_i32, %c0_i32_0 : i32, i32
  }
  func.func @transform_3(%arg0: i32) -> (i32, i32) {
    %c0_i32 = arith.constant 0 : i32
    %c0_i32_0 = arith.constant 0 : i32
    %c0_i32_1 = arith.constant 0 : i32
    return %c0_i32, %c0_i32_0 : i32, i32
  }
  func.func @transform_4(%arg0: i32) -> (i32, i32) {
    %c0_i32 = arith.constant 0 : i32
    %c0_i32_0 = arith.constant 0 : i32
    return %arg0, %c0_i32 : i32, i32
  }
}

module attributes {stable_mosaic.version = 11 : i64} {
  func.func @_bn_apply_kernel(%arg0: i32, %arg1: memref<256x128xf32, #tpu.memory_space<vmem>>, %arg2: memref<2x128xf32, #tpu.memory_space<vmem>>, %arg3: memref<1x128xf32, #tpu.memory_space<vmem>>, %arg4: memref<1x128xf32, #tpu.memory_space<vmem>>, %arg5: memref<256x128xf32, #tpu.memory_space<vmem>>) attributes {dimension_semantics = [#tpu.dimension_semantics<parallel>], iteration_bounds = array<i64: 2>, scalar_prefetch = 0 : i64, scratch_operands = 0 : i64, tpu.core_type = #tpu.core_type<tc>, window_params = [{transform_indices = @transform_0, window_bounds = array<i64: 256, 128>}, {pipeline_mode = #tpu.pipeline_mode<synchronous>, transform_indices = @transform_1, window_bounds = array<i64: 2, 128>}, {pipeline_mode = #tpu.pipeline_mode<synchronous>, transform_indices = @transform_2, window_bounds = array<i64: 1, 128>}, {pipeline_mode = #tpu.pipeline_mode<synchronous>, transform_indices = @transform_3, window_bounds = array<i64: 1, 128>}, {transform_indices = @transform_4, window_bounds = array<i64: 256, 128>}]} {
    %c0 = arith.constant 0 : index
    %c0_0 = arith.constant 0 : index
    %0 = vector.load %arg2[%c0, %c0_0] : memref<2x128xf32, #tpu.memory_space<vmem>>, vector<2x128xf32>
    %1 = vector.extract_strided_slice %0 {offsets = [0, 0], sizes = [1, 128], strides = [1, 1]} : vector<2x128xf32> to vector<1x128xf32>
    %cst = arith.constant 0.001953125 : f32
    %2 = vector.broadcast %cst : f32 to vector<1x128xf32>
    %3 = arith.mulf %1, %2 : vector<1x128xf32>
    %4 = vector.extract_strided_slice %0 {offsets = [1, 0], sizes = [1, 128], strides = [1, 1]} : vector<2x128xf32> to vector<1x128xf32>
    %cst_1 = arith.constant 0.001953125 : f32
    %5 = vector.broadcast %cst_1 : f32 to vector<1x128xf32>
    %6 = arith.mulf %4, %5 : vector<1x128xf32>
    %7 = arith.mulf %3, %3 : vector<1x128xf32>
    %8 = arith.subf %6, %7 : vector<1x128xf32>
    %cst_2 = arith.constant 0.000000e+00 : f32
    %9 = vector.broadcast %cst_2 : f32 to vector<1x128xf32>
    %10 = arith.maximumf %8, %9 : vector<1x128xf32>
    %c0_3 = arith.constant 0 : index
    %c0_4 = arith.constant 0 : index
    %11 = vector.load %arg3[%c0_3, %c0_4] : memref<1x128xf32, #tpu.memory_space<vmem>>, vector<1x128xf32>
    %cst_5 = arith.constant 9.99999974E-6 : f32
    %12 = vector.broadcast %cst_5 : f32 to vector<1x128xf32>
    %13 = arith.addf %10, %12 : vector<1x128xf32>
    %14 = math.rsqrt %13 : vector<1x128xf32>
    %15 = arith.mulf %11, %14 : vector<1x128xf32>
    %c0_6 = arith.constant 0 : index
    %c0_7 = arith.constant 0 : index
    %16 = vector.load %arg4[%c0_6, %c0_7] : memref<1x128xf32, #tpu.memory_space<vmem>>, vector<1x128xf32>
    %17 = arith.mulf %3, %15 : vector<1x128xf32>
    %18 = arith.subf %16, %17 : vector<1x128xf32>
    %c0_8 = arith.constant 0 : index
    %c0_9 = arith.constant 0 : index
    %19 = vector.load %arg1[%c0_8, %c0_9] : memref<256x128xf32, #tpu.memory_space<vmem>>, vector<256x128xf32>
    %20 = vector.broadcast %15 : vector<1x128xf32> to vector<256x128xf32>
    %21 = arith.mulf %19, %20 : vector<256x128xf32>
    %22 = vector.broadcast %18 : vector<1x128xf32> to vector<256x128xf32>
    %23 = arith.addf %21, %22 : vector<256x128xf32>
    %cst_10 = arith.constant 0.000000e+00 : f32
    %24 = vector.broadcast %cst_10 : f32 to vector<256x128xf32>
    %25 = arith.maximumf %23, %24 : vector<256x128xf32>
    %c0_11 = arith.constant 0 : index
    %c0_12 = arith.constant 0 : index
    %26 = vector.load %arg5[%c0_11, %c0_12] : memref<256x128xf32, #tpu.memory_space<vmem>>, vector<256x128xf32>
    tpu.vector_store %arg5[%c0_11, %c0_12], %25 {strides = array<i32>} : memref<256x128xf32, #tpu.memory_space<vmem>>, vector<256x128xf32>,
    return
  }
  func.func @transform_0(%arg0: i32) -> (i32, i32) {
    %c0_i32 = arith.constant 0 : i32
    %c0_i32_0 = arith.constant 0 : i32
    return %arg0, %c0_i32 : i32, i32
  }
  func.func @transform_1(%arg0: i32) -> (i32, i32) {
    %c0_i32 = arith.constant 0 : i32
    %c0_i32_0 = arith.constant 0 : i32
    %c0_i32_1 = arith.constant 0 : i32
    return %c0_i32, %c0_i32_0 : i32, i32
  }
  func.func @transform_2(%arg0: i32) -> (i32, i32) {
    %c0_i32 = arith.constant 0 : i32
    %c0_i32_0 = arith.constant 0 : i32
    %c0_i32_1 = arith.constant 0 : i32
    return %c0_i32, %c0_i32_0 : i32, i32
  }
  func.func @transform_3(%arg0: i32) -> (i32, i32) {
    %c0_i32 = arith.constant 0 : i32
    %c0_i32_0 = arith.constant 0 : i32
    %c0_i32_1 = arith.constant 0 : i32
    return %c0_i32, %c0_i32_0 : i32, i32
  }
  func.func @transform_4(%arg0: i32) -> (i32, i32) {
    %c0_i32 = arith.constant 0 : i32
    %c0_i32_0 = arith.constant 0 : i32
    return %arg0, %c0_i32 : i32, i32
  }
}

</mosaic_0001>

<llo_original>
// kernel: tile.8
$region0: #{tile.8}
  #allocation0 [shape = 's32[1]{0}', space=sflag, size = 0x4, scoped, tag = 'scoped memory for tile.8']
  %s0 = inlined_call_operand.vmem [shape: f32[128], index: 0, kind: input, shape index: {}]
  %s1 = inlined_call_operand.vmem [shape: f32[4,128], index: 1, kind: output, shape index: {}]
  // Predicated region
  $region2: #{tile.8} parent=0 // pred_check
    _
  $region3: #{tile.8} parent=0 // pred_check_branch
    %3 = sbr.rel (0) target = $region5
  $region4: #{tile.8} parent=0 // pred_region
    _
  $region5: #{tile.8} parent=0 // pred_fallthru
    _
  %v4 = vld [vmem:[%s0] ss:$0 sm:$0xff]
  %5 = vst [vmem:[%s1] sm:$0xf] %v4

// kernel: decoder_block_forward.5
$region0: #{decoder_block_forward.5}
  #allocation0 [shape = 'u32[]', space=smem, size = 0x4, offset = 0x4, fixed_abs, tag = 'smem constant byte address 0x4 - core index']
  #allocation1 [shape = 'u32[144,128]{1,0:T(1,128)}', space=vmem, size = 0x12000, scoped, tag = 'internal scratch']
  %s0 = inlined_call_operand.vmem [shape: f32[128,128], index: 0, kind: input, shape index: {}]
  %s1 = inlined_call_operand.vmem [shape: bf16[128,512], index: 1, kind: input, shape index: {}]
  %s2 = inlined_call_operand.vmem [shape: f32[1,512], index: 2, kind: input, shape index: {}]
  %s3 = inlined_call_operand.vmem [shape: f32[128,512], index: 3, kind: output, shape index: {}]
  %s4 = sld [smem:[#allocation0]]
  $region22: #{decoder_block_forward.5} parent=0
    _
  %s6 = ssub.s32 1, %s4
  %s7 = scalar_select 0, %s6, %s4
  // Predicated region
  $region2: #{decoder_block_forward.5} parent=0 // pred_check
    _
  $region3: #{decoder_block_forward.5} parent=0 // pred_check_branch
    %9 = sbr.rel (0) target = $region5
  $region4: #{decoder_block_forward.5} parent=0 // pred_region
    _
  $region5: #{decoder_block_forward.5} parent=0 // pred_fallthru
    _
  // Predicated region
  $region6: #{decoder_block_forward.5} parent=0 // pred_check
    _
  $region7: #{decoder_block_forward.5} parent=0 // pred_check_branch
    %11 = sbr.rel (0) target = $region9
  $region8: #{decoder_block_forward.5} parent=0 // pred_region
    _
  $region9: #{decoder_block_forward.5} parent=0 // pred_fallthru
    _
  // Predicated region
  $region10: #{decoder_block_forward.5} parent=0 // pred_check
    _
  $region11: #{decoder_block_forward.5} parent=0 // pred_check_branch
    %13 = sbr.rel (0) target = $region13
  $region12: #{decoder_block_forward.5} parent=0 // pred_region
    _
  $region13: #{decoder_block_forward.5} parent=0 // pred_fallthru
    _
  %v15 = vld [vmem:[%s0] sm:$0xff]
  %v16 = vld [vmem:[%s0 + $0x8] sm:$0xff]
  %v17 = vld [vmem:[%s0 + $0x10] sm:$0xff]
  %v18 = vld [vmem:[%s0 + $0x18] sm:$0xff]
  %v19 = vld [vmem:[%s0 + $0x20] sm:$0xff]
  %v20 = vld [vmem:[%s0 + $0x28] sm:$0xff]
  %v21 = vld [vmem:[%s0 + $0x30] sm:$0xff]
  %v22 = vld [vmem:[%s0 + $0x38] sm:$0xff]
  %v23 = vld [vmem:[%s0 + $0x40] sm:$0xff]
  %v24 = vld [vmem:[%s0 + $0x48] sm:$0xff]
  %v25 = vld [vmem:[%s0 + $0x50] sm:$0xff]
  %v26 = vld [vmem:[%s0 + $0x58] sm:$0xff]
  %v27 = vld [vmem:[%s0 + $0x60] sm:$0xff]
  %v28 = vld [vmem:[%s0 + $0x68] sm:$0xff]
  %v29 = vld [vmem:[%s0 + $0x70] sm:$0xff]
  %v30 = vld [vmem:[%s0 + $0x78] sm:$0xff]
  %v31 = vpack.c.bf16 %v16, %v15
  %v32 = vpack.c.bf16 %v18, %v17
  %v33 = vpack.c.bf16 %v20, %v19
  %v34 = vpack.c.bf16 %v22, %v21
  %v35 = vpack.c.bf16 %v24, %v23
  %v36 = vpack.c.bf16 %v26, %v25
  %v37 = vpack.c.bf16 %v28, %v27
  %v38 = vpack.c.bf16 %v30, %v29
  %v39 = vld [vmem:[%s1] sm:$0xff]
  %v40 = vld [vmem:[%s1 + $0x8] sm:$0xff]
  %v41 = vld [vmem:[%s1 + $0x10] sm:$0xff]
  %v42 = vld [vmem:[%s1 + $0x18] sm:$0xff]
  %v43 = vld [vmem:[%s1 + $0x20] sm:$0xff]
  %v44 = vld [vmem:[%s1 + $0x28] sm:$0xff]
  %v45 = vld [vmem:[%s1 + $0x30] sm:$0xff]
  %v46 = vld [vmem:[%s1 + $0x38] sm:$0xff]
  %v47 = vld [vmem:[%s1 + $0x40] sm:$0xff]
  %v48 = vld [vmem:[%s1 + $0x48] sm:$0xff]
  %v49 = vld [vmem:[%s1 + $0x50] sm:$0xff]
  %v50 = vld [vmem:[%s1 + $0x58] sm:$0xff]
  %v51 = vld [vmem:[%s1 + $0x60] sm:$0xff]
  %v52 = vld [vmem:[%s1 + $0x68] sm:$0xff]
  %v53 = vld [vmem:[%s1 + $0x70] sm:$0xff]
  %v54 = vld [vmem:[%s1 + $0x78] sm:$0xff]
  %v55 = vld [vmem:[%s1 + $0x80] sm:$0xff]
  %v56 = vld [vmem:[%s1 + $0x88] sm:$0xff]
  %v57 = vld [vmem:[%s1 + $0x90] sm:$0xff]
  %v58 = vld [vmem:[%s1 + $0x98] sm:$0xff]
  %v59 = vld [vmem:[%s1 + $0xa0] sm:$0xff]
  %v60 = vld [vmem:[%s1 + $0xa8] sm:$0xff]
  %v61 = vld [vmem:[%s1 + $0xb0] sm:$0xff]
  %v62 = vld [vmem:[%s1 + $0xb8] sm:$0xff]
  %v63 = vld [vmem:[%s1 + $0xc0] sm:$0xff]
  %v64 = vld [vmem:[%s1 + $0xc8] sm:$0xff]
  %v65 = vld [vmem:[%s1 + $0xd0] sm:$0xff]
  %v66 = vld [vmem:[%s1 + $0xd8] sm:$0xff]
  %v67 = vld [vmem:[%s1 + $0xe0] sm:$0xff]
  %v68 = vld [vmem:[%s1 + $0xe8] sm:$0xff]
  %v69 = vld [vmem:[%s1 + $0xf0] sm:$0xff]
  %v70 = vld [vmem:[%s1 + $0xf8] sm:$0xff]
  %v71 = vld [vmem:[%s2] sm:$0xf]
  %v73 = vlaneseq
  %v74 = vshrl.u32 %v73, 7
  %v75 = vsub.s32 0, %v74
  %v76 = vrot.slane %v71, %v75
  %v77 = vlaneseq
  %v78 = vshrl.u32 %v77, 7
  %v79 = vsub.s32 1, %v78
  %v80 = vrot.slane %v71, %v79
  %v81 = vlaneseq
  %v82 = vshrl.u32 %v81, 7
  %v83 = vsub.s32 2, %v82
  %v84 = vrot.slane %v71, %v83
  %v85 = vlaneseq
  %v86 = vshrl.u32 %v85, 7
  %v87 = vsub.s32 3, %v86
  %v88 = vrot.slane %v71, %v87
  %v125 = vunpack.c.l.b16 %v39
  %v126 = vunpack.c.h.b16 %v39
  %v127 = vunpack.c.l.b16 %v40
  %v128 = vunpack.c.h.b16 %v40
  %v129 = vunpack.c.l.b16 %v41
  %v130 = vunpack.c.h.b16 %v41
  %v131 = vunpack.c.l.b16 %v42
  %v132 = vunpack.c.h.b16 %v42
  %v133 = vunpack.c.l.b16 %v43
  %v134 = vunpack.c.h.b16 %v43
  %v135 = vunpack.c.l.b16 %v44
  %v136 = vunpack.c.h.b16 %v44
  %v137 = vunpack.c.l.b16 %v45
  %v138 = vunpack.c.h.b16 %v45
  %v139 = vunpack.c.l.b16 %v46
  %v140 = vunpack.c.h.b16 %v46
  %v141 = vunpack.c.l.b16 %v47
  %v142 = vunpack.c.h.b16 %v47
  %v143 = vunpack.c.l.b16 %v48
  %v144 = vunpack.c.h.b16 %v48
  %v145 = vunpack.c.l.b16 %v49
  %v146 = vunpack.c.h.b16 %v49
  %v147 = vunpack.c.l.b16 %v50
  %v148 = vunpack.c.h.b16 %v50
  %v149 = vunpack.c.l.b16 %v51
  %v150 = vunpack.c.h.b16 %v51
  %v151 = vunpack.c.l.b16 %v52
  %v152 = vunpack.c.h.b16 %v52
  %v153 = vunpack.c.l.b16 %v53
  %v154 = vunpack.c.h.b16 %v53
  %v155 = vunpack.c.l.b16 %v54
  %v156 = vunpack.c.h.b16 %v54
  %v157 = vunpack.c.l.b16 %v55
  %v158 = vunpack.c.h.b16 %v55
  %v159 = vunpack.c.l.b16 %v56
  %v160 = vunpack.c.h.b16 %v56
  %v161 = vunpack.c.l.b16 %v57
  %v162 = vunpack.c.h.b16 %v57
  %v163 = vunpack.c.l.b16 %v58
  %v164 = vunpack.c.h.b16 %v58
  %v165 = vunpack.c.l.b16 %v59
  %v166 = vunpack.c.h.b16 %v59
  %v167 = vunpack.c.l.b16 %v60
  %v168 = vunpack.c.h.b16 %v60
  %v169 = vunpack.c.l.b16 %v61
  %v170 = vunpack.c.h.b16 %v61
  %v171 = vunpack.c.l.b16 %v62
  %v172 = vunpack.c.h.b16 %v62
  %v173 = vunpack.c.l.b16 %v63
  %v174 = vunpack.c.h.b16 %v63
  %v175 = vunpack.c.l.b16 %v64
  %v176 = vunpack.c.h.b16 %v64
  %v177 = vunpack.c.l.b16 %v65
  %v178 = vunpack.c.h.b16 %v65
  %v179 = vunpack.c.l.b16 %v66
  %v180 = vunpack.c.h.b16 %v66
  %v181 = vunpack.c.l.b16 %v67
  %v182 = vunpack.c.h.b16 %v67
  %v183 = vunpack.c.l.b16 %v68
  %v184 = vunpack.c.h.b16 %v68
  %v185 = vunpack.c.l.b16 %v69
  %v186 = vunpack.c.h.b16 %v69
  %v187 = vunpack.c.l.b16 %v70
  %v188 = vunpack.c.h.b16 %v70
  %v189 = vpack.c.b16 %v129, %v125
  %v190 = vpack.c.b16 %v130, %v126
  %v191 = vpack.c.b16 %v131, %v127
  %v192 = vpack.c.b16 %v132, %v128
  %v193 = vpack.c.b16 %v137, %v133
  %v194 = vpack.c.b16 %v138, %v134
  %v195 = vpack.c.b16 %v139, %v135
  %v196 = vpack.c.b16 %v140, %v136
  %v197 = vpack.c.b16 %v145, %v141
  %v198 = vpack.c.b16 %v146, %v142
  %v199 = vpack.c.b16 %v147, %v143
  %v200 = vpack.c.b16 %v148, %v144
  %v201 = vpack.c.b16 %v153, %v149
  %v202 = vpack.c.b16 %v154, %v150
  %v203 = vpack.c.b16 %v155, %v151
  %v204 = vpack.c.b16 %v156, %v152
  %v205 = vpack.c.b16 %v161, %v157
  %v206 = vpack.c.b16 %v162, %v158
  %v207 = vpack.c.b16 %v163, %v159
  %v208 = vpack.c.b16 %v164, %v160
  %v209 = vpack.c.b16 %v169, %v165
  %v210 = vpack.c.b16 %v170, %v166
  %v211 = vpack.c.b16 %v171, %v167
  %v212 = vpack.c.b16 %v172, %v168
  %v213 = vpack.c.b16 %v177, %v173
  %v214 = vpack.c.b16 %v178, %v174
  %v215 = vpack.c.b16 %v179, %v175
  %v216 = vpack.c.b16 %v180, %v176
  %v217 = vpack.c.b16 %v185, %v181
  %v218 = vpack.c.b16 %v186, %v182
  %v219 = vpack.c.b16 %v187, %v183
  %v220 = vpack.c.b16 %v188, %v184
  %253 = vmatprep.subr.bf16.mxu0 %v218
  %254 = vmatpush1.bf16.msra.mxu0 %v217
  %255 = vmatprep.subr.bf16.mxu0 %v214
  %256 = vmatpush1.bf16.msra.mxu0 %v213
  %257 = vmatprep.subr.bf16.mxu0 %v210
  %258 = vmatpush1.bf16.msra.mxu0 %v209
  %259 = vmatprep.subr.bf16.mxu0 %v206
  %260 = vmatpush1.bf16.msra.mxu0 %v205
  %261 = vmatprep.subr.bf16.mxu0 %v202
  %262 = vmatpush1.bf16.msra.mxu0 %v201
  %263 = vmatprep.subr.bf16.mxu0 %v198
  %264 = vmatpush1.bf16.msra.mxu0 %v197
  %265 = vmatprep.subr.bf16.mxu0 %v194
  %266 = vmatpush1.bf16.msra.mxu0 %v193
  %267 = vmatprep.subr.bf16.mxu0 %v190
  %268 = vmatpush1.bf16.msra.mxu0 %v189
  %269 = vmatprep.subr.bf16.mxu0 0
  %270 = vmatpush2.bf16.msra.mxu0 0
  %271 = vmatprep.subr.bf16.mxu0 0
  %272 = vmatpush2.bf16.msra.mxu0 0
  %273 = vmatprep.subr.bf16.mxu0 0
  %274 = vmatpush2.bf16.msra.mxu0 0
  %275 = vmatprep.subr.bf16.mxu0 0
  %276 = vmatpush2.bf16.msra.mxu0 0
  %277 = vmatprep.subr.bf16.mxu0 0
  %278 = vmatpush2.bf16.msra.mxu0 0
  %279 = vmatprep.subr.bf16.mxu0 0
  %280 = vmatpush2.bf16.msra.mxu0 0
  %281 = vmatprep.subr.bf16.mxu0 0
  %282 = vmatpush2.bf16.msra.mxu0 0
  %283 = vmatprep.subr.bf16.mxu0 0
  %284 = vmatpush2.bf16.msra.mxu0 0
  %285 = vmatprep.mubr.bf16.mxu0 0
  %286 = vmatmul.mubr.bf16.gmra.mxu0 %v31
  %v287 = vpop.f32.mrf.mxu0
  %v288 = vadd.f32 %v76, %v287
  %v289 = vpop.f32.mrf.mxu0
  %v290 = vadd.f32 %v80, %v289
  %v291 = vpop.f32.mrf.mxu0
  %v292 = vadd.f32 %v76, %v291
  %v293 = vpop.f32.mrf.mxu0
  %v294 = vadd.f32 %v80, %v293
  %295 = vmatprep.mubr.bf16.mxu0 0
  %296 = vmatmul.mubr.bf16.gmra.mxu0 %v32
  %v297 = vpop.f32.mrf.mxu0
  %v298 = vadd.f32 %v76, %v297
  %v299 = vpop.f32.mrf.mxu0
  %v300 = vadd.f32 %v80, %v299
  %v301 = vpop.f32.mrf.mxu0
  %v302 = vadd.f32 %v76, %v301
  %v303 = vpop.f32.mrf.mxu0
  %v304 = vadd.f32 %v80, %v303
  %305 = vmatprep.mubr.bf16.mxu0 0
  %306 = vmatmul.mubr.bf16.gmra.mxu0 %v33
  %v307 = vpop.f32.mrf.mxu0
  %v308 = vadd.f32 %v76, %v307
  %v309 = vpop.f32.mrf.mxu0
  %v310 = vadd.f32 %v80, %v309
  %v311 = vpop.f32.mrf.mxu0
  %v312 = vadd.f32 %v76, %v311
  %v313 = vpop.f32.mrf.mxu0
  %v314 = vadd.f32 %v80, %v313
  %315 = vmatprep.mubr.bf16.mxu0 0
  %316 = vmatmul.mubr.bf16.gmra.mxu0 %v34
  %v317 = vpop.f32.mrf.mxu0
  %v318 = vadd.f32 %v76, %v317
  %v319 = vpop.f32.mrf.mxu0
  %v320 = vadd.f32 %v80, %v319
  %v321 = vpop.f32.mrf.mxu0
  %v322 = vadd.f32 %v76, %v321
  %v323 = vpop.f32.mrf.mxu0
  %v324 = vadd.f32 %v80, %v323
  %325 = vmatprep.mubr.bf16.mxu0 0
  %326 = vmatmul.mubr.bf16.gmra.mxu0 %v35
  %v327 = vpop.f32.mrf.mxu0
  %v328 = vadd.f32 %v76, %v327
  %v329 = vpop.f32.mrf.mxu0
  %v330 = vadd.f32 %v80, %v329
  %v331 = vpop.f32.mrf.mxu0
  %v332 = vadd.f32 %v76, %v331
  %v333 = vpop.f32.mrf.mxu0
  %v334 = vadd.f32 %v80, %v333
  %335 = vmatprep.mubr.bf16.mxu0 0
  %336 = vmatmul.mubr.bf16.gmra.mxu0 %v36
  %v337 = vpop.f32.mrf.mxu0
  %v338 = vadd.f32 %v76, %v337
  %v339 = vpop.f32.mrf.mxu0
  %v340 = vadd.f32 %v80, %v339
  %v341 = vpop.f32.mrf.mxu0
  %v342 = vadd.f32 %v76, %v341
  %v343 = vpop.f32.mrf.mxu0
  %v344 = vadd.f32 %v80, %v343
  %345 = vmatprep.mubr.bf16.mxu0 0
  %346 = vmatmul.mubr.bf16.gmra.mxu0 %v37
  %v347 = vpop.f32.mrf.mxu0
  %v348 = vadd.f32 %v76, %v347
  %v349 = vpop.f32.mrf.mxu0
  %v350 = vadd.f32 %v80, %v349
  %v351 = vpop.f32.mrf.mxu0
  %v352 = vadd.f32 %v76, %v351
  %v353 = vpop.f32.mrf.mxu0
  %v354 = vadd.f32 %v80, %v353
  %355 = vmatprep.mubr.bf16.mxu0 0
  %356 = vmatmul.mubr.bf16.gmra.mxu0 %v38
  %v357 = vpop.f32.mrf.mxu0
  %v358 = vadd.f32 %v76, %v357
  %v359 = vpop.f32.mrf.mxu0
  %v360 = vadd.f32 %v80, %v359
  %v361 = vpop.f32.mrf.mxu0
  %v362 = vadd.f32 %v76, %v361
  %v363 = vpop.f32.mrf.mxu0
  %v364 = vadd.f32 %v80, %v363
  %365 = vdwg.mxu0
  %366 = vmatprep.subr.bf16.mxu0 %v220
  %367 = vmatpush1.bf16.msra.mxu0 %v219
  %368 = vmatprep.subr.bf16.mxu0 %v216
  %369 = vmatpush1.bf16.msra.mxu0 %v215
  %370 = vmatprep.subr.bf16.mxu0 %v212
  %371 = vmatpush1.bf16.msra.mxu0 %v211
  %372 = vmatprep.subr.bf16.mxu0 %v208
  %373 = vmatpush1.bf16.msra.mxu0 %v207
  %374 = vmatprep.subr.bf16.mxu0 %v204
  %375 = vmatpush1.bf16.msra.mxu0 %v203
  %376 = vmatprep.subr.bf16.mxu0 %v200
  %377 = vmatpush1.bf16.msra.mxu0 %v199
  %378 = vmatprep.subr.bf16.mxu0 %v196
  %379 = vmatpush1.bf16.msra.mxu0 %v195
  %380 = vmatprep.subr.bf16.mxu0 %v192
  %381 = vmatpush1.bf16.msra.mxu0 %v191
  %382 = vmatprep.subr.bf16.mxu0 0
  %383 = vmatpush2.bf16.msra.mxu0 0
  %384 = vmatprep.subr.bf16.mxu0 0
  %385 = vmatpush2.bf16.msra.mxu0 0
  %386 = vmatprep.subr.bf16.mxu0 0
  %387 = vmatpush2.bf16.msra.mxu0 0
  %388 = vmatprep.subr.bf16.mxu0 0
  %389 = vmatpush2.bf16.msra.mxu0 0
  %390 = vmatprep.subr.bf16.mxu0 0
  %391 = vmatpush2.bf16.msra.mxu0 0
  %392 = vmatprep.subr.bf16.mxu0 0
  %393 = vmatpush2.bf16.msra.mxu0 0
  %394 = vmatprep.subr.bf16.mxu0 0
  %395 = vmatpush2.bf16.msra.mxu0 0
  %396 = vmatprep.subr.bf16.mxu0 0
  %397 = vmatpush2.bf16.msra.mxu0 0
  %398 = vmatprep.mubr.bf16.mxu0 0
  %399 = vmatmul.mubr.bf16.gmra.mxu0 %v31
  %v400 = vpop.f32.mrf.mxu0
  %v401 = vadd.f32 %v84, %v400
  %v402 = vpop.f32.mrf.mxu0
  %v403 = vadd.f32 %v88, %v402
  %v404 = vpop.f32.mrf.mxu0
  %v405 = vadd.f32 %v84, %v404
  %v406 = vpop.f32.mrf.mxu0
  %v407 = vadd.f32 %v88, %v406
  %408 = vmatprep.mubr.bf16.mxu0 0
  %409 = vmatmul.mubr.bf16.gmra.mxu0 %v32
  %v410 = vpop.f32.mrf.mxu0
  %v411 = vadd.f32 %v84, %v410
  %v412 = vpop.f32.mrf.mxu0
  %v413 = vadd.f32 %v88, %v412
  %v414 = vpop.f32.mrf.mxu0
  %v415 = vadd.f32 %v84, %v414
  %v416 = vpop.f32.mrf.mxu0
  %v417 = vadd.f32 %v88, %v416
  %418 = vmatprep.mubr.bf16.mxu0 0
  %419 = vmatmul.mubr.bf16.gmra.mxu0 %v33
  %v420 = vpop.f32.mrf.mxu0
  %v421 = vadd.f32 %v84, %v420
  %v422 = vpop.f32.mrf.mxu0
  %v423 = vadd.f32 %v88, %v422
  %v424 = vpop.f32.mrf.mxu0
  %v425 = vadd.f32 %v84, %v424
  %v426 = vpop.f32.mrf.mxu0
  %v427 = vadd.f32 %v88, %v426
  %428 = vmatprep.mubr.bf16.mxu0 0
  %429 = vmatmul.mubr.bf16.gmra.mxu0 %v34
  %v430 = vpop.f32.mrf.mxu0
  %v431 = vadd.f32 %v84, %v430
  %v432 = vpop.f32.mrf.mxu0
  %v433 = vadd.f32 %v88, %v432
  %v434 = vpop.f32.mrf.mxu0
  %v435 = vadd.f32 %v84, %v434
  %v436 = vpop.f32.mrf.mxu0
  %v437 = vadd.f32 %v88, %v436
  %438 = vmatprep.mubr.bf16.mxu0 0
  %439 = vmatmul.mubr.bf16.gmra.mxu0 %v35
  %v440 = vpop.f32.mrf.mxu0
  %v441 = vadd.f32 %v84, %v440
  %v442 = vpop.f32.mrf.mxu0
  %v443 = vadd.f32 %v88, %v442
  %v444 = vpop.f32.mrf.mxu0
  %v445 = vadd.f32 %v84, %v444
  %v446 = vpop.f32.mrf.mxu0
  %v447 = vadd.f32 %v88, %v446
  %448 = vmatprep.mubr.bf16.mxu0 0
  %449 = vmatmul.mubr.bf16.gmra.mxu0 %v36
  %v450 = vpop.f32.mrf.mxu0
  %v451 = vadd.f32 %v84, %v450
  %v452 = vpop.f32.mrf.mxu0
  %v453 = vadd.f32 %v88, %v452
  %v454 = vpop.f32.mrf.mxu0
  %v455 = vadd.f32 %v84, %v454
  %v456 = vpop.f32.mrf.mxu0
  %v457 = vadd.f32 %v88, %v456
  %458 = vmatprep.mubr.bf16.mxu0 0
  %459 = vmatmul.mubr.bf16.gmra.mxu0 %v37
  %v460 = vpop.f32.mrf.mxu0
  %v461 = vadd.f32 %v84, %v460
  %v462 = vpop.f32.mrf.mxu0
  %v463 = vadd.f32 %v88, %v462
  %v464 = vpop.f32.mrf.mxu0
  %v465 = vadd.f32 %v84, %v464
  %v466 = vpop.f32.mrf.mxu0
  %v467 = vadd.f32 %v88, %v466
  %468 = vmatprep.mubr.bf16.mxu0 0
  %469 = vmatmul.mubr.bf16.gmra.mxu0 %v38
  %v470 = vpop.f32.mrf.mxu0
  %v471 = vadd.f32 %v84, %v470
  %v472 = vpop.f32.mrf.mxu0
  %v473 = vadd.f32 %v88, %v472
  %v474 = vpop.f32.mrf.mxu0
  %v475 = vadd.f32 %v84, %v474
  %v476 = vpop.f32.mrf.mxu0
  %v477 = vadd.f32 %v88, %v476
  %478 = vdwg.mxu0
  %479 = vst [vmem:[%s3] sm:$0xff] %v288
  %480 = vst [vmem:[%s3 + $0x8] sm:$0xff] %v290
  %481 = vst [vmem:[%s3 + $0x10] sm:$0xff] %v401
  %482 = vst [vmem:[%s3 + $0x18] sm:$0xff] %v403
  %483 = vst [vmem:[%s3 + $0x20] sm:$0xff] %v292
  %484 = vst [vmem:[%s3 + $0x28] sm:$0xff] %v294
  %485 = vst [vmem:[%s3 + $0x30] sm:$0xff] %v405
  %486 = vst [vmem:[%s3 + $0x38] sm:$0xff] %v407
  %487 = vst [vmem:[%s3 + $0x40] sm:$0xff] %v298
  %488 = vst [vmem:[%s3 + $0x48] sm:$0xff] %v300
  %489 = vst [vmem:[%s3 + $0x50] sm:$0xff] %v411
  %490 = vst [vmem:[%s3 + $0x58] sm:$0xff] %v413
  %491 = vst [vmem:[%s3 + $0x60] sm:$0xff] %v302
  %492 = vst [vmem:[%s3 + $0x68] sm:$0xff] %v304
  %493 = vst [vmem:[%s3 + $0x70] sm:$0xff] %v415
  %494 = vst [vmem:[%s3 + $0x78] sm:$0xff] %v417
  %495 = vst [vmem:[%s3 + $0x80] sm:$0xff] %v308
  %496 = vst [vmem:[%s3 + $0x88] sm:$0xff] %v310
  %497 = vst [vmem:[%s3 + $0x90] sm:$0xff] %v421
  %498 = vst [vmem:[%s3 + $0x98] sm:$0xff] %v423
  %499 = vst [vmem:[%s3 + $0xa0] sm:$0xff] %v312
  %500 = vst [vmem:[%s3 + $0xa8] sm:$0xff] %v314
  %501 = vst [vmem:[%s3 + $0xb0] sm:$0xff] %v425
  %502 = vst [vmem:[%s3 + $0xb8] sm:$0xff] %v427
  %503 = vst [vmem:[%s3 + $0xc0] sm:$0xff] %v318
  %504 = vst [vmem:[%s3 + $0xc8] sm:$0xff] %v320
  %505 = vst [vmem:[%s3 + $0xd0] sm:$0xff] %v431
  %506 = vst [vmem:[%s3 + $0xd8] sm:$0xff] %v433
  %507 = vst [vmem:[%s3 + $0xe0] sm:$0xff] %v322
  %508 = vst [vmem:[%s3 + $0xe8] sm:$0xff] %v324
  %509 = vst [vmem:[%s3 + $0xf0] sm:$0xff] %v435
  %510 = vst [vmem:[%s3 + $0xf8] sm:$0xff] %v437
  %511 = vst [vmem:[%s3 + $0x100] sm:$0xff] %v328
  %512 = vst [vmem:[%s3 + $0x108] sm:$0xff] %v330
  %513 = vst [vmem:[%s3 + $0x110] sm:$0xff] %v441
  %514 = vst [vmem:[%s3 + $0x118] sm:$0xff] %v443
  %515 = vst [vmem:[%s3 + $0x120] sm:$0xff] %v332
  %516 = vst [vmem:[%s3 + $0x128] sm:$0xff] %v334
  %517 = vst [vmem:[%s3 + $0x130] sm:$0xff] %v445
  %518 = vst [vmem:[%s3 + $0x138] sm:$0xff] %v447
  %519 = vst [vmem:[%s3 + $0x140] sm:$0xff] %v338
  %520 = vst [vmem:[%s3 + $0x148] sm:$0xff] %v340
  %521 = vst [vmem:[%s3 + $0x150] sm:$0xff] %v451
  %522 = vst [vmem:[%s3 + $0x158] sm:$0xff] %v453
  %523 = vst [vmem:[%s3 + $0x160] sm:$0xff] %v342
  %524 = vst [vmem:[%s3 + $0x168] sm:$0xff] %v344
  %525 = vst [vmem:[%s3 + $0x170] sm:$0xff] %v455
  %526 = vst [vmem:[%s3 + $0x178] sm:$0xff] %v457
  %527 = vst [vmem:[%s3 + $0x180] sm:$0xff] %v348
  %528 = vst [vmem:[%s3 + $0x188] sm:$0xff] %v350
  %529 = vst [vmem:[%s3 + $0x190] sm:$0xff] %v461
  %530 = vst [vmem:[%s3 + $0x198] sm:$0xff] %v463
  %531 = vst [vmem:[%s3 + $0x1a0] sm:$0xff] %v352
  %532 = vst [vmem:[%s3 + $0x1a8] sm:$0xff] %v354
  %533 = vst [vmem:[%s3 + $0x1b0] sm:$0xff] %v465
  %534 = vst [vmem:[%s3 + $0x1b8] sm:$0xff] %v467
  %535 = vst [vmem:[%s3 + $0x1c0] sm:$0xff] %v358
  %536 = vst [vmem:[%s3 + $0x1c8] sm:$0xff] %v360
  %537 = vst [vmem:[%s3 + $0x1d0] sm:$0xff] %v471
  %538 = vst [vmem:[%s3 + $0x1d8] sm:$0xff] %v473
  %539 = vst [vmem:[%s3 + $0x1e0] sm:$0xff] %v362
  %540 = vst [vmem:[%s3 + $0x1e8] sm:$0xff] %v364
  %541 = vst [vmem:[%s3 + $0x1f0] sm:$0xff] %v475
  %542 = vst [vmem:[%s3 + $0x1f8] sm:$0xff] %v477
  // Predicated region
  $region14: #{decoder_block_forward.5} parent=0 // pred_check
    _
  $region15: #{decoder_block_forward.5} parent=0 // pred_check_branch
    %544 = sbr.rel (0) target = $region17
  $region16: #{decoder_block_forward.5} parent=0 // pred_region
    _
  $region17: #{decoder_block_forward.5} parent=0 // pred_fallthru
    _
  // Predicated region
  $region18: #{decoder_block_forward.5} parent=0 // pred_check
    _
  $region19: #{decoder_block_forward.5} parent=0 // pred_check_branch
    %546 = sbr.rel (0) target = $region21
  $region20: #{decoder_block_forward.5} parent=0 // pred_region
    _
  $region21: #{decoder_block_forward.5} parent=0 // pred_fallthru
    _

// kernel: decoder_block_forward.7
$region0: #{decoder_block_forward.7}
  #allocation0 [shape = 'u32[]', space=smem, size = 0x4, offset = 0x4, fixed_abs, tag = 'smem constant byte address 0x4 - core index']
  #allocation1 [shape = 'u32[144,128]{1,0:T(1,128)}', space=vmem, size = 0x12000, scoped, tag = 'internal scratch']
  %s0 = inlined_call_operand.vmem [shape: f32[512,128], index: 0, kind: input, shape index: {}]
  %s1 = inlined_call_operand.vmem [shape: f32[2,128], index: 1, kind: input, shape index: {}]
  %s2 = inlined_call_operand.vmem [shape: f32[1,128], index: 2, kind: input, shape index: {}]
  %s3 = inlined_call_operand.vmem [shape: f32[1,128], index: 3, kind: input, shape index: {}]
  %s4 = inlined_call_operand.vmem [shape: f32[512,128], index: 4, kind: output, shape index: {}]
  %s5 = sld [smem:[#allocation0]]
  $region49: #{decoder_block_forward.7} parent=0
    _
  %s7 = ssub.s32 1, %s5
  %s8 = scalar_select 0, %s7, %s5
  loop: start=0, step=1, limit=4
  $region2: #{decoder_block_forward.7} parent=0 // loop_pre_header
    _
  $region3: #{decoder_block_forward.7} parent=0 // loop_header
    %s10 = sphi 0, %s14
    %p11 = scmp.ge.s32.totalorder %s10, 4
    %s20 = sphi 0, %s22
    %s23 = sphi 0, %s20
    %s24 = sphi 0, %s23
    %s40 = sphi 0, %s24
    %s44 = sphi 0, %s44
    %s46 = sphi 0, %s44
    %s47 = sphi 0, %s46
    %s61 = sphi 0, %s47
    %s65 = sphi 0, %s65
    %s67 = sphi 0, %s65
    %s68 = sphi 0, %s67
    %s82 = sphi 0, %s68
    %s86 = sphi 0, %s86
    %s88 = sphi 0, %s86
    %s89 = sphi 0, %s88
    %s103 = sphi 0, %s89
    %s109 = sphi 0, %s111
    %s112 = sphi 0, %s109
    %s113 = sphi 0, %s112
    %s129 = sphi 0, %s113
  $region4: #{decoder_block_forward.7} parent=0 // loop_header_branch
    %13 = sbr.rel (%p11) target = $region8
  $region5: #{decoder_block_forward.7} parent=0 // loop_body
    %s15 = ssub.s32 %s10, 1
    %s16 = ssub.s32 %s10, 2
    %s17 = sadd.s32 %s10, 1
    %s18 = ssub.s32 %s10, %s17
    %p19 = scmp.eq.s32.totalorder %s18, 0
    %s21 = sadd.s32 %s20, 1
    %s22 = scalar_select %p19, %s20, %s21
    %p25 = pneg %p19
    %p26 = scmp.eq.s32.totalorder %s10, 1
    %p27 = por %p25, %p26
    %p28 = scmp.ne.s32.totalorder %s20, %s23
    %p29 = scmp.eq.s32.totalorder %s10, 0
    %p30 = por %p28, %p29
    %p31 = scmp.ne.s32.totalorder %s20, %s23
    %p32 = scmp.eq.s32.totalorder %s15, 1
    %p33 = por %p31, %p32
    %p34 = scmp.ne.s32.totalorder %s23, %s24
    %p35 = scmp.eq.s32.totalorder %s15, 0
    %p36 = por %p34, %p35
    %p37 = scmp.ne.s32.totalorder %s23, %s24
    %p38 = scmp.eq.s32.totalorder %s16, 1
    %p39 = por %p37, %p38
    %p41 = scmp.ne.s32.totalorder %s24, %s40
    %p42 = scmp.eq.s32.totalorder %s16, 0
    %p43 = por %p41, %p42
    %s45 = sadd.s32 %s44, 1
    %p48 = scmp.eq.s32.totalorder %s10, 1
    %p49 = scmp.ne.s32.totalorder %s44, %s46
    %p50 = scmp.eq.s32.totalorder %s10, 0
    %p51 = por %p49, %p50
    %p52 = scmp.ne.s32.totalorder %s44, %s46
    %p53 = scmp.eq.s32.totalorder %s15, 1
    %p54 = por %p52, %p53
    %p55 = scmp.ne.s32.totalorder %s46, %s47
    %p56 = scmp.eq.s32.totalorder %s15, 0
    %p57 = por %p55, %p56
    %p58 = scmp.ne.s32.totalorder %s46, %s47
    %p59 = scmp.eq.s32.totalorder %s16, 1
    %p60 = por %p58, %p59
    %p62 = scmp.ne.s32.totalorder %s47, %s61
    %p63 = scmp.eq.s32.totalorder %s16, 0
    %p64 = por %p62, %p63
    %s66 = sadd.s32 %s65, 1
    %p69 = scmp.eq.s32.totalorder %s10, 1
    %p70 = scmp.ne.s32.totalorder %s65, %s67
    %p71 = scmp.eq.s32.totalorder %s10, 0
    %p72 = por %p70, %p71
    %p73 = scmp.ne.s32.totalorder %s65, %s67
    %p74 = scmp.eq.s32.totalorder %s15, 1
    %p75 = por %p73, %p74
    %p76 = scmp.ne.s32.totalorder %s67, %s68
    %p77 = scmp.eq.s32.totalorder %s15, 0
    %p78 = por %p76, %p77
    %p79 = scmp.ne.s32.totalorder %s67, %s68
    %p80 = scmp.eq.s32.totalorder %s16, 1
    %p81 = por %p79, %p80
    %p83 = scmp.ne.s32.totalorder %s68, %s82
    %p84 = scmp.eq.s32.totalorder %s16, 0
    %p85 = por %p83, %p84
    %s87 = sadd.s32 %s86, 1
    %p90 = scmp.eq.s32.totalorder %s10, 1
    %p91 = scmp.ne.s32.totalorder %s86, %s88
    %p92 = scmp.eq.s32.totalorder %s10, 0
    %p93 = por %p91, %p92
    %p94 = scmp.ne.s32.totalorder %s86, %s88
    %p95 = scmp.eq.s32.totalorder %s15, 1
    %p96 = por %p94, %p95
    %p97 = scmp.ne.s32.totalorder %s88, %s89
    %p98 = scmp.eq.s32.totalorder %s15, 0
    %p99 = por %p97, %p98
    %p100 = scmp.ne.s32.totalorder %s88, %s89
    %p101 = scmp.eq.s32.totalorder %s16, 1
    %p102 = por %p100, %p101
    %p104 = scmp.ne.s32.totalorder %s89, %s103
    %p105 = scmp.eq.s32.totalorder %s16, 0
    %p106 = por %p104, %p105
    %s107 = ssub.s32 %s10, %s17
    %p108 = scmp.eq.s32.totalorder %s107, 0
    %s110 = sadd.s32 %s109, 1
    %s111 = scalar_select %p108, %s109, %s110
    %p114 = pneg %p108
    %p115 = scmp.eq.s32.totalorder %s10, 1
    %p116 = por %p114, %p115
    %p117 = scmp.ne.s32.totalorder %s109, %s112
    %p118 = scmp.eq.s32.totalorder %s10, 0
    %p119 = por %p117, %p118
    %p120 = scmp.ne.s32.totalorder %s109, %s112
    %p121 = scmp.eq.s32.totalorder %s15, 1
    %p122 = por %p120, %p121
    %p123 = scmp.ne.s32.totalorder %s112, %s113
    %p124 = scmp.eq.s32.totalorder %s15, 0
    %p125 = por %p123, %p124
    %p126 = scmp.ne.s32.totalorder %s112, %s113
    %p127 = scmp.eq.s32.totalorder %s16, 1
    %p128 = por %p126, %p127
    %p130 = scmp.ne.s32.totalorder %s113, %s129
    %p131 = scmp.eq.s32.totalorder %s16, 0
    %p132 = por %p130, %p131
    %p133 = scmp.le.s32.totalorder 1, %s10
    %p134 = scmp.lt.s32.totalorder %s10, 3
    %p135 = pnand %p133, %p134
    %p136 = pneg %p135
    // Predicated region
    $region9: #{decoder_block_forward.7} parent=5 // pred_check
      _
    $region10: #{decoder_block_forward.7} parent=5 // pred_check_branch
      %138 = sbr.rel (%p135) target = $region12
    $region11: #{decoder_block_forward.7} parent=5 // pred_region
      %s139 = ssub.s32 %s10, 1
      // Predicated region
      $region13: #{decoder_block_forward.7} parent=11 // pred_check
        %p140 = pneg %p57
      $region14: #{decoder_block_forward.7} parent=11 // pred_check_branch
        %142 = sbr.rel (%p140) target = $region16
      $region15: #{decoder_block_forward.7} parent=11 // pred_region
        _
      $region16: #{decoder_block_forward.7} parent=11 // pred_fallthru
        _
      // Predicated region
      $region17: #{decoder_block_forward.7} parent=11 // pred_check
        %p143 = pneg %p78
      $region18: #{decoder_block_forward.7} parent=11 // pred_check_branch
        %145 = sbr.rel (%p143) target = $region20
      $region19: #{decoder_block_forward.7} parent=11 // pred_region
        _
      $region20: #{decoder_block_forward.7} parent=11 // pred_fallthru
        _
      // Predicated region
      $region21: #{decoder_block_forward.7} parent=11 // pred_check
        %p146 = pneg %p99
      $region22: #{decoder_block_forward.7} parent=11 // pred_check_branch
        %148 = sbr.rel (%p146) target = $region24
      $region23: #{decoder_block_forward.7} parent=11 // pred_region
        _
      $region24: #{decoder_block_forward.7} parent=11 // pred_fallthru
        _
    $region12: #{decoder_block_forward.7} parent=5 // pred_fallthru
      _
    %p149 = scmp.lt.s32.totalorder %s10, 2
    // Predicated region
    $region25: #{decoder_block_forward.7} parent=5 // pred_check
      %p150 = pneg %p149
    $region26: #{decoder_block_forward.7} parent=5 // pred_check_branch
      %152 = sbr.rel (%p150) target = $region28
    $region27: #{decoder_block_forward.7} parent=5 // pred_region
      // Predicated region
      $region29: #{decoder_block_forward.7} parent=27 // pred_check
        %p153 = pneg %p30
      $region30: #{decoder_block_forward.7} parent=27 // pred_check_branch
        %155 = sbr.rel (%p153) target = $region32
      $region31: #{decoder_block_forward.7} parent=27 // pred_region
        %s156 = smul.u32 32, %s10
        %p157 = scmp.lt.s32.totalorder %s156, 63
        %s158 = scalar_select %p157, %s156, 63
        %s159 = smul.addr %s158, 8
        %s160 = scalar_lea.vmem %s0, %s159
        %s161 = smul.u32 32, %s10
      $region32: #{decoder_block_forward.7} parent=27 // pred_fallthru
        _
    $region28: #{decoder_block_forward.7} parent=5 // pred_fallthru
      _
    %p162 = scmp.le.s32.totalorder 1, %s10
    %p163 = scmp.lt.s32.totalorder %s10, 3
    %p164 = pnand %p162, %p163
    %p165 = pneg %p164
    // Predicated region
    $region33: #{decoder_block_forward.7} parent=5 // pred_check
      _
    $region34: #{decoder_block_forward.7} parent=5 // pred_check_branch
      %167 = sbr.rel (%p164) target = $region36
    $region35: #{decoder_block_forward.7} parent=5 // pred_region
      %s168 = ssub.s32 %s10, 1
      %s169 = smul.u32 32, %s15
      %p170 = scmp.lt.s32.totalorder %s169, 63
      %s171 = scalar_select %p170, %s169, 63
      %s172 = smul.addr %s171, 8
      %s173 = scalar_lea.vmem %s0, %s172
      %p174 = pneg %p36
      %p175 = pneg %p33
      %p176 = pneg %p57
      %p177 = pneg %p54
      %p178 = pneg %p78
      %p179 = pneg %p75
      %p180 = pneg %p99
      %p181 = pneg %p96
      %p182 = pneg %p125
      %p183 = pneg %p122
      %s184 = smul.u32 32, %s15
      %p185 = scmp.lt.s32.totalorder %s184, 63
      %s186 = scalar_select %p185, %s184, 63
      %s187 = smul.addr %s186, 8
      %s188 = scalar_lea.vmem %s4, %s187
      %s189 = smul.u32 32, %s15
      %p190 = scmp.lt.s32.totalorder %s189, 63
      %s191 = scalar_select %p190, %s189, 63
      %s192 = smul.addr %s191, 8
      %s193 = scalar_lea.vmem %s0, %s192
      %s194 = smul.u32 32, %s15
      %s195 = smul.u32 32, %s15
      %p196 = scmp.lt.s32.totalorder %s195, 63
      %s197 = scalar_select %p196, %s195, 63
      %s198 = smul.addr %s197, 8
      %s199 = scalar_lea.vmem %s4, %s198
      %s200 = smul.u32 32, %s15
      %v201 = vld [vmem:[%s1] sm:$0x3]
      %v202 = vmul.f32 %v201, 0.001953125
      %v203 = vmul.f32 %v202, %v202
      %v205 = vrot.slane %v203, 7
      %v207 = vsub.f32 %v202, %v205
      %v208 = vmax.f32 %v207, 0.0
      %v209 = vld [vmem:[%s2] sm:$0x1]
      %v210 = vadd.f32 %v208, 1e-05
      %v211 = vrsqrt.pop %v210
      %v214 = vunpack.c.l.s4 1966171168
      %v215 = vunpack.c.0.s8 %v214
      %v216 = vlaneseq
      %v217 = vshrl.u32 %v216, 7
      %v218 = vsub.s32 %v215, %v217
      %v219 = vrot.slane %v211, %v218
      %v220 = vcombine.high %v219, %v219
      %v222 = vunpack.c.l.s4 1966171168
      %v223 = vunpack.c.0.s8 %v222
      %v224 = vlaneseq
      %v225 = vshrl.u32 %v224, 7
      %v226 = vsub.s32 %v223, %v225
      %v227 = vrot.slane %v220, %v226
      %v229 = vmul.f32 %v209, %v227
      %v230 = vld [vmem:[%s3] sm:$0x1]
      %v231 = vmul.f32 %v202, %v229
      %v232 = vsub.f32 %v230, %v231
      %v233 = vld [vmem:[%s193] sm:$0xff]
      %v234 = vld [vmem:[%s193 + $0x8] sm:$0xff]
      %v235 = vld [vmem:[%s193 + $0x10] sm:$0xff]
      %v236 = vld [vmem:[%s193 + $0x18] sm:$0xff]
      %v237 = vld [vmem:[%s193 + $0x20] sm:$0xff]
      %v238 = vld [vmem:[%s193 + $0x28] sm:$0xff]
      %v239 = vld [vmem:[%s193 + $0x30] sm:$0xff]
      %v240 = vld [vmem:[%s193 + $0x38] sm:$0xff]
      %v241 = vld [vmem:[%s193 + $0x40] sm:$0xff]
      %v242 = vld [vmem:[%s193 + $0x48] sm:$0xff]
      %v243 = vld [vmem:[%s193 + $0x50] sm:$0xff]
      %v244 = vld [vmem:[%s193 + $0x58] sm:$0xff]
      %v245 = vld [vmem:[%s193 + $0x60] sm:$0xff]
      %v246 = vld [vmem:[%s193 + $0x68] sm:$0xff]
      %v247 = vld [vmem:[%s193 + $0x70] sm:$0xff]
      %v248 = vld [vmem:[%s193 + $0x78] sm:$0xff]
      %v249 = vld [vmem:[%s193 + $0x80] sm:$0xff]
      %v250 = vld [vmem:[%s193 + $0x88] sm:$0xff]
      %v251 = vld [vmem:[%s193 + $0x90] sm:$0xff]
      %v252 = vld [vmem:[%s193 + $0x98] sm:$0xff]
      %v253 = vld [vmem:[%s193 + $0xa0] sm:$0xff]
      %v254 = vld [vmem:[%s193 + $0xa8] sm:$0xff]
      %v255 = vld [vmem:[%s193 + $0xb0] sm:$0xff]
      %v256 = vld [vmem:[%s193 + $0xb8] sm:$0xff]
      %v257 = vld [vmem:[%s193 + $0xc0] sm:$0xff]
      %v258 = vld [vmem:[%s193 + $0xc8] sm:$0xff]
      %v259 = vld [vmem:[%s193 + $0xd0] sm:$0xff]
      %v260 = vld [vmem:[%s193 + $0xd8] sm:$0xff]
      %v261 = vld [vmem:[%s193 + $0xe0] sm:$0xff]
      %v262 = vld [vmem:[%s193 + $0xe8] sm:$0xff]
      %v263 = vld [vmem:[%s193 + $0xf0] sm:$0xff]
      %v264 = vld [vmem:[%s193 + $0xf8] sm:$0xff]
      %v266 = vlaneseq
      %v267 = vshrl.u32 %v266, 7
      %v268 = vsub.s32 0, %v267
      %v269 = vrot.slane %v229, %v268
      %v271 = vmul.f32 %v233, %v269
      %v272 = vmul.f32 %v234, %v269
      %v273 = vmul.f32 %v235, %v269
      %v274 = vmul.f32 %v236, %v269
      %v275 = vmul.f32 %v237, %v269
      %v276 = vmul.f32 %v238, %v269
      %v277 = vmul.f32 %v239, %v269
      %v278 = vmul.f32 %v240, %v269
      %v279 = vmul.f32 %v241, %v269
      %v280 = vmul.f32 %v242, %v269
      %v281 = vmul.f32 %v243, %v269
      %v282 = vmul.f32 %v244, %v269
      %v283 = vmul.f32 %v245, %v269
      %v284 = vmul.f32 %v246, %v269
      %v285 = vmul.f32 %v247, %v269
      %v286 = vmul.f32 %v248, %v269
      %v287 = vmul.f32 %v249, %v269
      %v288 = vmul.f32 %v250, %v269
      %v289 = vmul.f32 %v251, %v269
      %v290 = vmul.f32 %v252, %v269
      %v291 = vmul.f32 %v253, %v269
      %v292 = vmul.f32 %v254, %v269
      %v293 = vmul.f32 %v255, %v269
      %v294 = vmul.f32 %v256, %v269
      %v295 = vmul.f32 %v257, %v269
      %v296 = vmul.f32 %v258, %v269
      %v297 = vmul.f32 %v259, %v269
      %v298 = vmul.f32 %v260, %v269
      %v299 = vmul.f32 %v261, %v269
      %v300 = vmul.f32 %v262, %v269
      %v301 = vmul.f32 %v263, %v269
      %v302 = vmul.f32 %v264, %v269
      %v304 = vlaneseq
      %v305 = vshrl.u32 %v304, 7
      %v306 = vsub.s32 0, %v305
      %v307 = vrot.slane %v232, %v306
      %v309 = vadd.f32 %v271, %v307
      %v310 = vadd.f32 %v272, %v307
      %v311 = vadd.f32 %v273, %v307
      %v312 = vadd.f32 %v274, %v307
      %v313 = vadd.f32 %v275, %v307
      %v314 = vadd.f32 %v276, %v307
      %v315 = vadd.f32 %v277, %v307
      %v316 = vadd.f32 %v278, %v307
      %v317 = vadd.f32 %v279, %v307
      %v318 = vadd.f32 %v280, %v307
      %v319 = vadd.f32 %v281, %v307
      %v320 = vadd.f32 %v282, %v307
      %v321 = vadd.f32 %v283, %v307
      %v322 = vadd.f32 %v284, %v307
      %v323 = vadd.f32 %v285, %v307
      %v324 = vadd.f32 %v286, %v307
      %v325 = vadd.f32 %v287, %v307
      %v326 = vadd.f32 %v288, %v307
      %v327 = vadd.f32 %v289, %v307
      %v328 = vadd.f32 %v290, %v307
      %v329 = vadd.f32 %v291, %v307
      %v330 = vadd.f32 %v292, %v307
      %v331 = vadd.f32 %v293, %v307
      %v332 = vadd.f32 %v294, %v307
      %v333 = vadd.f32 %v295, %v307
      %v334 = vadd.f32 %v296, %v307
      %v335 = vadd.f32 %v297, %v307
      %v336 = vadd.f32 %v298, %v307
      %v337 = vadd.f32 %v299, %v307
      %v338 = vadd.f32 %v300, %v307
      %v339 = vadd.f32 %v301, %v307
      %v340 = vadd.f32 %v302, %v307
      %341 = vst [vmem:[%s199] sm:$0xff] %v309
      %342 = vst [vmem:[%s199 + $0x8] sm:$0xff] %v310
      %343 = vst [vmem:[%s199 + $0x10] sm:$0xff] %v311
      %344 = vst [vmem:[%s199 + $0x18] sm:$0xff] %v312
      %345 = vst [vmem:[%s199 + $0x20] sm:$0xff] %v313
      %346 = vst [vmem:[%s199 + $0x28] sm:$0xff] %v314
      %347 = vst [vmem:[%s199 + $0x30] sm:$0xff] %v315
      %348 = vst [vmem:[%s199 + $0x38] sm:$0xff] %v316
      %349 = vst [vmem:[%s199 + $0x40] sm:$0xff] %v317
      %350 = vst [vmem:[%s199 + $0x48] sm:$0xff] %v318
      %351 = vst [vmem:[%s199 + $0x50] sm:$0xff] %v319
      %352 = vst [vmem:[%s199 + $0x58] sm:$0xff] %v320
      %353 = vst [vmem:[%s199 + $0x60] sm:$0xff] %v321
      %354 = vst [vmem:[%s199 + $0x68] sm:$0xff] %v322
      %355 = vst [vmem:[%s199 + $0x70] sm:$0xff] %v323
      %356 = vst [vmem:[%s199 + $0x78] sm:$0xff] %v324
      %357 = vst [vmem:[%s199 + $0x80] sm:$0xff] %v325
      %358 = vst [vmem:[%s199 + $0x88] sm:$0xff] %v326
      %359 = vst [vmem:[%s199 + $0x90] sm:$0xff] %v327
      %360 = vst [vmem:[%s199 + $0x98] sm:$0xff] %v328
      %361 = vst [vmem:[%s199 + $0xa0] sm:$0xff] %v329
      %362 = vst [vmem:[%s199 + $0xa8] sm:$0xff] %v330
      %363 = vst [vmem:[%s199 + $0xb0] sm:$0xff] %v331
      %364 = vst [vmem:[%s199 + $0xb8] sm:$0xff] %v332
      %365 = vst [vmem:[%s199 + $0xc0] sm:$0xff] %v333
      %366 = vst [vmem:[%s199 + $0xc8] sm:$0xff] %v334
      %367 = vst [vmem:[%s199 + $0xd0] sm:$0xff] %v335
      %368 = vst [vmem:[%s199 + $0xd8] sm:$0xff] %v336
      %369 = vst [vmem:[%s199 + $0xe0] sm:$0xff] %v337
      %370 = vst [vmem:[%s199 + $0xe8] sm:$0xff] %v338
      %371 = vst [vmem:[%s199 + $0xf0] sm:$0xff] %v339
      %372 = vst [vmem:[%s199 + $0xf8] sm:$0xff] %v340
      %s373 = smul.u32 32, %s15
      %p374 = scmp.lt.s32.totalorder %s373, 63
      %s375 = scalar_select %p374, %s373, 63
      %s376 = smul.addr %s375, 8
      %s377 = scalar_lea.vmem %s4, %s376
      // Predicated region
      $region37: #{decoder_block_forward.7} parent=35 // pred_check
        %p378 = pneg %p122
      $region38: #{decoder_block_forward.7} parent=35 // pred_check_branch
        %380 = sbr.rel (%p378) target = $region40
      $region39: #{decoder_block_forward.7} parent=35 // pred_region
        %s381 = smul.u32 32, %s15
      $region40: #{decoder_block_forward.7} parent=35 // pred_fallthru
        _
    $region36: #{decoder_block_forward.7} parent=5 // pred_fallthru
      _
    %p382 = scmp.le.s32.totalorder 2, %s10
    // Predicated region
    $region41: #{decoder_block_forward.7} parent=5 // pred_check
      %p383 = pneg %p382
    $region42: #{decoder_block_forward.7} parent=5 // pred_check_branch
      %385 = sbr.rel (%p383) target = $region44
    $region43: #{decoder_block_forward.7} parent=5 // pred_region
      %s386 = ssub.s32 %s10, 2
      // Predicated region
      $region45: #{decoder_block_forward.7} parent=43 // pred_check
        %p387 = pneg %p128
      $region46: #{decoder_block_forward.7} parent=43 // pred_check_branch
        %389 = sbr.rel (%p387) target = $region48
      $region47: #{decoder_block_forward.7} parent=43 // pred_region
        %s390 = smul.u32 32, %s16
        %p391 = scmp.lt.s32.totalorder %s390, 63
        %s392 = scalar_select %p391, %s390, 63
        %s393 = smul.addr %s392, 8
        %s394 = scalar_lea.vmem %s4, %s393
      $region48: #{decoder_block_forward.7} parent=43 // pred_fallthru
        _
    $region44: #{decoder_block_forward.7} parent=5 // pred_fallthru
      _
  $region6: #{decoder_block_forward.7} parent=0 // loop_footer
    %s14 = sadd.s32 1, %s10
  $region7: #{decoder_block_forward.7} parent=0 // loop_footer_branch
    %9 = sbr.rel target = $region3
  $region8: #{decoder_block_forward.7} parent=0 // loop_exit
    _

// kernel: decoder_block_forward.9
$region0: #{decoder_block_forward.9}
  #allocation0 [shape = 'u32[]', space=smem, size = 0x4, offset = 0x4, fixed_abs, tag = 'smem constant byte address 0x4 - core index']
  #allocation1 [shape = 'u32[144,128]{1,0:T(1,128)}', space=vmem, size = 0x12000, scoped, tag = 'internal scratch']
  %s0 = inlined_call_operand.vmem [shape: f32[512,128], index: 0, kind: input, shape index: {}]
  %s1 = inlined_call_operand.vmem [shape: f32[2,128], index: 1, kind: input, shape index: {}]
  %s2 = inlined_call_operand.vmem [shape: f32[1,128], index: 2, kind: input, shape index: {}]
  %s3 = inlined_call_operand.vmem [shape: f32[1,128], index: 3, kind: input, shape index: {}]
  %s4 = inlined_call_operand.vmem [shape: f32[512,128], index: 4, kind: output, shape index: {}]
  %s5 = sld [smem:[#allocation0]]
  $region49: #{decoder_block_forward.9} parent=0
    _
  %s7 = ssub.s32 1, %s5
  %s8 = scalar_select 0, %s7, %s5
  loop: start=0, step=1, limit=4
  $region2: #{decoder_block_forward.9} parent=0 // loop_pre_header
    _
  $region3: #{decoder_block_forward.9} parent=0 // loop_header
    %s10 = sphi 0, %s14
    %p11 = scmp.ge.s32.totalorder %s10, 4
    %s20 = sphi 0, %s22
    %s23 = sphi 0, %s20
    %s24 = sphi 0, %s23
    %s40 = sphi 0, %s24
    %s44 = sphi 0, %s44
    %s46 = sphi 0, %s44
    %s47 = sphi 0, %s46
    %s61 = sphi 0, %s47
    %s65 = sphi 0, %s65
    %s67 = sphi 0, %s65
    %s68 = sphi 0, %s67
    %s82 = sphi 0, %s68
    %s86 = sphi 0, %s86
    %s88 = sphi 0, %s86
    %s89 = sphi 0, %s88
    %s103 = sphi 0, %s89
    %s109 = sphi 0, %s111
    %s112 = sphi 0, %s109
    %s113 = sphi 0, %s112
    %s129 = sphi 0, %s113
  $region4: #{decoder_block_forward.9} parent=0 // loop_header_branch
    %13 = sbr.rel (%p11) target = $region8
  $region5: #{decoder_block_forward.9} parent=0 // loop_body
    %s15 = ssub.s32 %s10, 1
    %s16 = ssub.s32 %s10, 2
    %s17 = sadd.s32 %s10, 1
    %s18 = ssub.s32 %s10, %s17
    %p19 = scmp.eq.s32.totalorder %s18, 0
    %s21 = sadd.s32 %s20, 1
    %s22 = scalar_select %p19, %s20, %s21
    %p25 = pneg %p19
    %p26 = scmp.eq.s32.totalorder %s10, 1
    %p27 = por %p25, %p26
    %p28 = scmp.ne.s32.totalorder %s20, %s23
    %p29 = scmp.eq.s32.totalorder %s10, 0
    %p30 = por %p28, %p29
    %p31 = scmp.ne.s32.totalorder %s20, %s23
    %p32 = scmp.eq.s32.totalorder %s15, 1
    %p33 = por %p31, %p32
    %p34 = scmp.ne.s32.totalorder %s23, %s24
    %p35 = scmp.eq.s32.totalorder %s15, 0
    %p36 = por %p34, %p35
    %p37 = scmp.ne.s32.totalorder %s23, %s24
    %p38 = scmp.eq.s32.totalorder %s16, 1
    %p39 = por %p37, %p38
    %p41 = scmp.ne.s32.totalorder %s24, %s40
    %p42 = scmp.eq.s32.totalorder %s16, 0
    %p43 = por %p41, %p42
    %s45 = sadd.s32 %s44, 1
    %p48 = scmp.eq.s32.totalorder %s10, 1
    %p49 = scmp.ne.s32.totalorder %s44, %s46
    %p50 = scmp.eq.s32.totalorder %s10, 0
    %p51 = por %p49, %p50
    %p52 = scmp.ne.s32.totalorder %s44, %s46
    %p53 = scmp.eq.s32.totalorder %s15, 1
    %p54 = por %p52, %p53
    %p55 = scmp.ne.s32.totalorder %s46, %s47
    %p56 = scmp.eq.s32.totalorder %s15, 0
    %p57 = por %p55, %p56
    %p58 = scmp.ne.s32.totalorder %s46, %s47
    %p59 = scmp.eq.s32.totalorder %s16, 1
    %p60 = por %p58, %p59
    %p62 = scmp.ne.s32.totalorder %s47, %s61
    %p63 = scmp.eq.s32.totalorder %s16, 0
    %p64 = por %p62, %p63
    %s66 = sadd.s32 %s65, 1
    %p69 = scmp.eq.s32.totalorder %s10, 1
    %p70 = scmp.ne.s32.totalorder %s65, %s67
    %p71 = scmp.eq.s32.totalorder %s10, 0
    %p72 = por %p70, %p71
    %p73 = scmp.ne.s32.totalorder %s65, %s67
    %p74 = scmp.eq.s32.totalorder %s15, 1
    %p75 = por %p73, %p74
    %p76 = scmp.ne.s32.totalorder %s67, %s68
    %p77 = scmp.eq.s32.totalorder %s15, 0
    %p78 = por %p76, %p77
    %p79 = scmp.ne.s32.totalorder %s67, %s68
    %p80 = scmp.eq.s32.totalorder %s16, 1
    %p81 = por %p79, %p80
    %p83 = scmp.ne.s32.totalorder %s68, %s82
    %p84 = scmp.eq.s32.totalorder %s16, 0
    %p85 = por %p83, %p84
    %s87 = sadd.s32 %s86, 1
    %p90 = scmp.eq.s32.totalorder %s10, 1
    %p91 = scmp.ne.s32.totalorder %s86, %s88
    %p92 = scmp.eq.s32.totalorder %s10, 0
    %p93 = por %p91, %p92
    %p94 = scmp.ne.s32.totalorder %s86, %s88
    %p95 = scmp.eq.s32.totalorder %s15, 1
    %p96 = por %p94, %p95
    %p97 = scmp.ne.s32.totalorder %s88, %s89
    %p98 = scmp.eq.s32.totalorder %s15, 0
    %p99 = por %p97, %p98
    %p100 = scmp.ne.s32.totalorder %s88, %s89
    %p101 = scmp.eq.s32.totalorder %s16, 1
    %p102 = por %p100, %p101
    %p104 = scmp.ne.s32.totalorder %s89, %s103
    %p105 = scmp.eq.s32.totalorder %s16, 0
    %p106 = por %p104, %p105
    %s107 = ssub.s32 %s10, %s17
    %p108 = scmp.eq.s32.totalorder %s107, 0
    %s110 = sadd.s32 %s109, 1
    %s111 = scalar_select %p108, %s109, %s110
    %p114 = pneg %p108
    %p115 = scmp.eq.s32.totalorder %s10, 1
    %p116 = por %p114, %p115
    %p117 = scmp.ne.s32.totalorder %s109, %s112
    %p118 = scmp.eq.s32.totalorder %s10, 0
    %p119 = por %p117, %p118
    %p120 = scmp.ne.s32.totalorder %s109, %s112
    %p121 = scmp.eq.s32.totalorder %s15, 1
    %p122 = por %p120, %p121
    %p123 = scmp.ne.s32.totalorder %s112, %s113
    %p124 = scmp.eq.s32.totalorder %s15, 0
    %p125 = por %p123, %p124
    %p126 = scmp.ne.s32.totalorder %s112, %s113
    %p127 = scmp.eq.s32.totalorder %s16, 1
    %p128 = por %p126, %p127
    %p130 = scmp.ne.s32.totalorder %s113, %s129
    %p131 = scmp.eq.s32.totalorder %s16, 0
    %p132 = por %p130, %p131
    %p133 = scmp.le.s32.totalorder 1, %s10
    %p134 = scmp.lt.s32.totalorder %s10, 3
    %p135 = pnand %p133, %p134
    %p136 = pneg %p135
    // Predicated region
    $region9: #{decoder_block_forward.9} parent=5 // pred_check
      _
    $region10: #{decoder_block_forward.9} parent=5 // pred_check_branch
      %138 = sbr.rel (%p135) target = $region12
    $region11: #{decoder_block_forward.9} parent=5 // pred_region
      %s139 = ssub.s32 %s10, 1
      // Predicated region
      $region13: #{decoder_block_forward.9} parent=11 // pred_check
        %p140 = pneg %p57
      $region14: #{decoder_block_forward.9} parent=11 // pred_check_branch
        %142 = sbr.rel (%p140) target = $region16
      $region15: #{decoder_block_forward.9} parent=11 // pred_region
        _
      $region16: #{decoder_block_forward.9} parent=11 // pred_fallthru
        _
      // Predicated region
      $region17: #{decoder_block_forward.9} parent=11 // pred_check
        %p143 = pneg %p78
      $region18: #{decoder_block_forward.9} parent=11 // pred_check_branch
        %145 = sbr.rel (%p143) target = $region20
      $region19: #{decoder_block_forward.9} parent=11 // pred_region
        _
      $region20: #{decoder_block_forward.9} parent=11 // pred_fallthru
        _
      // Predicated region
      $region21: #{decoder_block_forward.9} parent=11 // pred_check
        %p146 = pneg %p99
      $region22: #{decoder_block_forward.9} parent=11 // pred_check_branch
        %148 = sbr.rel (%p146) target = $region24
      $region23: #{decoder_block_forward.9} parent=11 // pred_region
        _
      $region24: #{decoder_block_forward.9} parent=11 // pred_fallthru
        _
    $region12: #{decoder_block_forward.9} parent=5 // pred_fallthru
      _
    %p149 = scmp.lt.s32.totalorder %s10, 2
    // Predicated region
    $region25: #{decoder_block_forward.9} parent=5 // pred_check
      %p150 = pneg %p149
    $region26: #{decoder_block_forward.9} parent=5 // pred_check_branch
      %152 = sbr.rel (%p150) target = $region28
    $region27: #{decoder_block_forward.9} parent=5 // pred_region
      // Predicated region
      $region29: #{decoder_block_forward.9} parent=27 // pred_check
        %p153 = pneg %p30
      $region30: #{decoder_block_forward.9} parent=27 // pred_check_branch
        %155 = sbr.rel (%p153) target = $region32
      $region31: #{decoder_block_forward.9} parent=27 // pred_region
        %s156 = smul.u32 32, %s10
        %p157 = scmp.lt.s32.totalorder %s156, 63
        %s158 = scalar_select %p157, %s156, 63
        %s159 = smul.addr %s158, 8
        %s160 = scalar_lea.vmem %s0, %s159
        %s161 = smul.u32 32, %s10
      $region32: #{decoder_block_forward.9} parent=27 // pred_fallthru
        _
    $region28: #{decoder_block_forward.9} parent=5 // pred_fallthru
      _
    %p162 = scmp.le.s32.totalorder 1, %s10
    %p163 = scmp.lt.s32.totalorder %s10, 3
    %p164 = pnand %p162, %p163
    %p165 = pneg %p164
    // Predicated region
    $region33: #{decoder_block_forward.9} parent=5 // pred_check
      _
    $region34: #{decoder_block_forward.9} parent=5 // pred_check_branch
      %167 = sbr.rel (%p164) target = $region36
    $region35: #{decoder_block_forward.9} parent=5 // pred_region
      %s168 = ssub.s32 %s10, 1
      %s169 = smul.u32 32, %s15
      %p170 = scmp.lt.s32.totalorder %s169, 63
      %s171 = scalar_select %p170, %s169, 63
      %s172 = smul.addr %s171, 8
      %s173 = scalar_lea.vmem %s0, %s172
      %p174 = pneg %p36
      %p175 = pneg %p33
      %p176 = pneg %p57
      %p177 = pneg %p54
      %p178 = pneg %p78
      %p179 = pneg %p75
      %p180 = pneg %p99
      %p181 = pneg %p96
      %p182 = pneg %p125
      %p183 = pneg %p122
      %s184 = smul.u32 32, %s15
      %p185 = scmp.lt.s32.totalorder %s184, 63
      %s186 = scalar_select %p185, %s184, 63
      %s187 = smul.addr %s186, 8
      %s188 = scalar_lea.vmem %s4, %s187
      %s189 = smul.u32 32, %s15
      %p190 = scmp.lt.s32.totalorder %s189, 63
      %s191 = scalar_select %p190, %s189, 63
      %s192 = smul.addr %s191, 8
      %s193 = scalar_lea.vmem %s0, %s192
      %s194 = smul.u32 32, %s15
      %s195 = smul.u32 32, %s15
      %p196 = scmp.lt.s32.totalorder %s195, 63
      %s197 = scalar_select %p196, %s195, 63
      %s198 = smul.addr %s197, 8
      %s199 = scalar_lea.vmem %s4, %s198
      %s200 = smul.u32 32, %s15
      %v201 = vld [vmem:[%s1] sm:$0x3]
      %v202 = vmul.f32 %v201, 0.001953125
      %v203 = vmul.f32 %v202, %v202
      %v205 = vrot.slane %v203, 7
      %v207 = vsub.f32 %v202, %v205
      %v208 = vmax.f32 %v207, 0.0
      %v209 = vld [vmem:[%s2] sm:$0x1]
      %v210 = vadd.f32 %v208, 1e-05
      %v211 = vrsqrt.pop %v210
      %v214 = vunpack.c.l.s4 1966171168
      %v215 = vunpack.c.0.s8 %v214
      %v216 = vlaneseq
      %v217 = vshrl.u32 %v216, 7
      %v218 = vsub.s32 %v215, %v217
      %v219 = vrot.slane %v211, %v218
      %v220 = vcombine.high %v219, %v219
      %v222 = vunpack.c.l.s4 1966171168
      %v223 = vunpack.c.0.s8 %v222
      %v224 = vlaneseq
      %v225 = vshrl.u32 %v224, 7
      %v226 = vsub.s32 %v223, %v225
      %v227 = vrot.slane %v220, %v226
      %v229 = vmul.f32 %v209, %v227
      %v230 = vld [vmem:[%s3] sm:$0x1]
      %v231 = vmul.f32 %v202, %v229
      %v232 = vsub.f32 %v230, %v231
      %v233 = vld [vmem:[%s193] sm:$0xff]
      %v234 = vld [vmem:[%s193 + $0x8] sm:$0xff]
      %v235 = vld [vmem:[%s193 + $0x10] sm:$0xff]
      %v236 = vld [vmem:[%s193 + $0x18] sm:$0xff]
      %v237 = vld [vmem:[%s193 + $0x20] sm:$0xff]
      %v238 = vld [vmem:[%s193 + $0x28] sm:$0xff]
      %v239 = vld [vmem:[%s193 + $0x30] sm:$0xff]
      %v240 = vld [vmem:[%s193 + $0x38] sm:$0xff]
      %v241 = vld [vmem:[%s193 + $0x40] sm:$0xff]
      %v242 = vld [vmem:[%s193 + $0x48] sm:$0xff]
      %v243 = vld [vmem:[%s193 + $0x50] sm:$0xff]
      %v244 = vld [vmem:[%s193 + $0x58] sm:$0xff]
      %v245 = vld [vmem:[%s193 + $0x60] sm:$0xff]
      %v246 = vld [vmem:[%s193 + $0x68] sm:$0xff]
      %v247 = vld [vmem:[%s193 + $0x70] sm:$0xff]
      %v248 = vld [vmem:[%s193 + $0x78] sm:$0xff]
      %v249 = vld [vmem:[%s193 + $0x80] sm:$0xff]
      %v250 = vld [vmem:[%s193 + $0x88] sm:$0xff]
      %v251 = vld [vmem:[%s193 + $0x90] sm:$0xff]
      %v252 = vld [vmem:[%s193 + $0x98] sm:$0xff]
      %v253 = vld [vmem:[%s193 + $0xa0] sm:$0xff]
      %v254 = vld [vmem:[%s193 + $0xa8] sm:$0xff]
      %v255 = vld [vmem:[%s193 + $0xb0] sm:$0xff]
      %v256 = vld [vmem:[%s193 + $0xb8] sm:$0xff]
      %v257 = vld [vmem:[%s193 + $0xc0] sm:$0xff]
      %v258 = vld [vmem:[%s193 + $0xc8] sm:$0xff]
      %v259 = vld [vmem:[%s193 + $0xd0] sm:$0xff]
      %v260 = vld [vmem:[%s193 + $0xd8] sm:$0xff]
      %v261 = vld [vmem:[%s193 + $0xe0] sm:$0xff]
      %v262 = vld [vmem:[%s193 + $0xe8] sm:$0xff]
      %v263 = vld [vmem:[%s193 + $0xf0] sm:$0xff]
      %v264 = vld [vmem:[%s193 + $0xf8] sm:$0xff]
      %v266 = vlaneseq
      %v267 = vshrl.u32 %v266, 7
      %v268 = vsub.s32 0, %v267
      %v269 = vrot.slane %v229, %v268
      %v271 = vmul.f32 %v233, %v269
      %v272 = vmul.f32 %v234, %v269
      %v273 = vmul.f32 %v235, %v269
      %v274 = vmul.f32 %v236, %v269
      %v275 = vmul.f32 %v237, %v269
      %v276 = vmul.f32 %v238, %v269
      %v277 = vmul.f32 %v239, %v269
      %v278 = vmul.f32 %v240, %v269
      %v279 = vmul.f32 %v241, %v269
      %v280 = vmul.f32 %v242, %v269
      %v281 = vmul.f32 %v243, %v269
      %v282 = vmul.f32 %v244, %v269
      %v283 = vmul.f32 %v245, %v269
      %v284 = vmul.f32 %v246, %v269
      %v285 = vmul.f32 %v247, %v269
      %v286 = vmul.f32 %v248, %v269
      %v287 = vmul.f32 %v249, %v269
      %v288 = vmul.f32 %v250, %v269
      %v289 = vmul.f32 %v251, %v269
      %v290 = vmul.f32 %v252, %v269
      %v291 = vmul.f32 %v253, %v269
      %v292 = vmul.f32 %v254, %v269
      %v293 = vmul.f32 %v255, %v269
      %v294 = vmul.f32 %v256, %v269
      %v295 = vmul.f32 %v257, %v269
      %v296 = vmul.f32 %v258, %v269
      %v297 = vmul.f32 %v259, %v269
      %v298 = vmul.f32 %v260, %v269
      %v299 = vmul.f32 %v261, %v269
      %v300 = vmul.f32 %v262, %v269
      %v301 = vmul.f32 %v263, %v269
      %v302 = vmul.f32 %v264, %v269
      %v304 = vlaneseq
      %v305 = vshrl.u32 %v304, 7
      %v306 = vsub.s32 0, %v305
      %v307 = vrot.slane %v232, %v306
      %v309 = vadd.f32 %v271, %v307
      %v310 = vadd.f32 %v272, %v307
      %v311 = vadd.f32 %v273, %v307
      %v312 = vadd.f32 %v274, %v307
      %v313 = vadd.f32 %v275, %v307
      %v314 = vadd.f32 %v276, %v307
      %v315 = vadd.f32 %v277, %v307
      %v316 = vadd.f32 %v278, %v307
      %v317 = vadd.f32 %v279, %v307
      %v318 = vadd.f32 %v280, %v307
      %v319 = vadd.f32 %v281, %v307
      %v320 = vadd.f32 %v282, %v307
      %v321 = vadd.f32 %v283, %v307
      %v322 = vadd.f32 %v284, %v307
      %v323 = vadd.f32 %v285, %v307
      %v324 = vadd.f32 %v286, %v307
      %v325 = vadd.f32 %v287, %v307
      %v326 = vadd.f32 %v288, %v307
      %v327 = vadd.f32 %v289, %v307
      %v328 = vadd.f32 %v290, %v307
      %v329 = vadd.f32 %v291, %v307
      %v330 = vadd.f32 %v292, %v307
      %v331 = vadd.f32 %v293, %v307
      %v332 = vadd.f32 %v294, %v307
      %v333 = vadd.f32 %v295, %v307
      %v334 = vadd.f32 %v296, %v307
      %v335 = vadd.f32 %v297, %v307
      %v336 = vadd.f32 %v298, %v307
      %v337 = vadd.f32 %v299, %v307
      %v338 = vadd.f32 %v300, %v307
      %v339 = vadd.f32 %v301, %v307
      %v340 = vadd.f32 %v302, %v307
      %v341 = vmax.f32 %v309, 0.0
      %v342 = vmax.f32 %v310, 0.0
      %v343 = vmax.f32 %v311, 0.0
      %v344 = vmax.f32 %v312, 0.0
      %v345 = vmax.f32 %v313, 0.0
      %v346 = vmax.f32 %v314, 0.0
      %v347 = vmax.f32 %v315, 0.0
      %v348 = vmax.f32 %v316, 0.0
      %v349 = vmax.f32 %v317, 0.0
      %v350 = vmax.f32 %v318, 0.0
      %v351 = vmax.f32 %v319, 0.0
      %v352 = vmax.f32 %v320, 0.0
      %v353 = vmax.f32 %v321, 0.0
      %v354 = vmax.f32 %v322, 0.0
      %v355 = vmax.f32 %v323, 0.0
      %v356 = vmax.f32 %v324, 0.0
      %v357 = vmax.f32 %v325, 0.0
      %v358 = vmax.f32 %v326, 0.0
      %v359 = vmax.f32 %v327, 0.0
      %v360 = vmax.f32 %v328, 0.0
      %v361 = vmax.f32 %v329, 0.0
      %v362 = vmax.f32 %v330, 0.0
      %v363 = vmax.f32 %v331, 0.0
      %v364 = vmax.f32 %v332, 0.0
      %v365 = vmax.f32 %v333, 0.0
      %v366 = vmax.f32 %v334, 0.0
      %v367 = vmax.f32 %v335, 0.0
      %v368 = vmax.f32 %v336, 0.0
      %v369 = vmax.f32 %v337, 0.0
      %v370 = vmax.f32 %v338, 0.0
      %v371 = vmax.f32 %v339, 0.0
      %v372 = vmax.f32 %v340, 0.0
      %373 = vst [vmem:[%s199] sm:$0xff] %v341
      %374 = vst [vmem:[%s199 + $0x8] sm:$0xff] %v342
      %375 = vst [vmem:[%s199 + $0x10] sm:$0xff] %v343
      %376 = vst [vmem:[%s199 + $0x18] sm:$0xff] %v344
      %377 = vst [vmem:[%s199 + $0x20] sm:$0xff] %v345
      %378 = vst [vmem:[%s199 + $0x28] sm:$0xff] %v346
      %379 = vst [vmem:[%s199 + $0x30] sm:$0xff] %v347
      %380 = vst [vmem:[%s199 + $0x38] sm:$0xff] %v348
      %381 = vst [vmem:[%s199 + $0x40] sm:$0xff] %v349
      %382 = vst [vmem:[%s199 + $0x48] sm:$0xff] %v350
      %383 = vst [vmem:[%s199 + $0x50] sm:$0xff] %v351
      %384 = vst [vmem:[%s199 + $0x58] sm:$0xff] %v352
      %385 = vst [vmem:[%s199 + $0x60] sm:$0xff] %v353
      %386 = vst [vmem:[%s199 + $0x68] sm:$0xff] %v354
      %387 = vst [vmem:[%s199 + $0x70] sm:$0xff] %v355
      %388 = vst [vmem:[%s199 + $0x78] sm:$0xff] %v356
      %389 = vst [vmem:[%s199 + $0x80] sm:$0xff] %v357
      %390 = vst [vmem:[%s199 + $0x88] sm:$0xff] %v358
      %391 = vst [vmem:[%s199 + $0x90] sm:$0xff] %v359
      %392 = vst [vmem:[%s199 + $0x98] sm:$0xff] %v360
      %393 = vst [vmem:[%s199 + $0xa0] sm:$0xff] %v361
      %394 = vst [vmem:[%s199 + $0xa8] sm:$0xff] %v362
      %395 = vst [vmem:[%s199 + $0xb0] sm:$0xff] %v363
      %396 = vst [vmem:[%s199 + $0xb8] sm:$0xff] %v364
      %397 = vst [vmem:[%s199 + $0xc0] sm:$0xff] %v365
      %398 = vst [vmem:[%s199 + $0xc8] sm:$0xff] %v366
      %399 = vst [vmem:[%s199 + $0xd0] sm:$0xff] %v367
      %400 = vst [vmem:[%s199 + $0xd8] sm:$0xff] %v368
      %401 = vst [vmem:[%s199 + $0xe0] sm:$0xff] %v369
      %402 = vst [vmem:[%s199 + $0xe8] sm:$0xff] %v370
      %403 = vst [vmem:[%s199 + $0xf0] sm:$0xff] %v371
      %404 = vst [vmem:[%s199 + $0xf8] sm:$0xff] %v372
      %s405 = smul.u32 32, %s15
      %p406 = scmp.lt.s32.totalorder %s405, 63
      %s407 = scalar_select %p406, %s405, 63
      %s408 = smul.addr %s407, 8
      %s409 = scalar_lea.vmem %s4, %s408
      // Predicated region
      $region37: #{decoder_block_forward.9} parent=35 // pred_check
        %p410 = pneg %p122
      $region38: #{decoder_block_forward.9} parent=35 // pred_check_branch
        %412 = sbr.rel (%p410) target = $region40
      $region39: #{decoder_block_forward.9} parent=35 // pred_region
        %s413 = smul.u32 32, %s15
      $region40: #{decoder_block_forward.9} parent=35 // pred_fallthru
        _
    $region36: #{decoder_block_forward.9} parent=5 // pred_fallthru
      _
    %p414 = scmp.le.s32.totalorder 2, %s10
    // Predicated region
    $region41: #{decoder_block_forward.9} parent=5 // pred_check
      %p415 = pneg %p414
    $region42: #{decoder_block_forward.9} parent=5 // pred_check_branch
      %417 = sbr.rel (%p415) target = $region44
    $region43: #{decoder_block_forward.9} parent=5 // pred_region
      %s418 = ssub.s32 %s10, 2
      // Predicated region
      $region45: #{decoder_block_forward.9} parent=43 // pred_check
        %p419 = pneg %p128
      $region46: #{decoder_block_forward.9} parent=43 // pred_check_branch
        %421 = sbr.rel (%p419) target = $region48
      $region47: #{decoder_block_forward.9} parent=43 // pred_region
        %s422 = smul.u32 32, %s16
        %p423 = scmp.lt.s32.totalorder %s422, 63
        %s424 = scalar_select %p423, %s422, 63
        %s425 = smul.addr %s424, 8
        %s426 = scalar_lea.vmem %s4, %s425
      $region48: #{decoder_block_forward.9} parent=43 // pred_fallthru
        _
    $region44: #{decoder_block_forward.9} parent=5 // pred_fallthru
      _
  $region6: #{decoder_block_forward.9} parent=0 // loop_footer
    %s14 = sadd.s32 1, %s10
  $region7: #{decoder_block_forward.9} parent=0 // loop_footer_branch
    %9 = sbr.rel target = $region3
  $region8: #{decoder_block_forward.9} parent=0 // loop_exit
    _

// kernel: decoder_block_forward.6
$region0: #{decoder_block_forward.6}
  #allocation0 [shape = 'u32[]', space=smem, size = 0x4, offset = 0x4, fixed_abs, tag = 'smem constant byte address 0x4 - core index']
  #allocation1 [shape = 'u32[144,128]{1,0:T(1,128)}', space=vmem, size = 0x12000, scoped, tag = 'internal scratch']
  %s0 = inlined_call_operand.vmem [shape: f32[32,18,128], index: 0, kind: input, shape index: {}]
  %s1 = inlined_call_operand.vmem [shape: f32[32,18,128], index: 1, kind: input, shape index: {}]
  %s2 = inlined_call_operand.vmem [shape: f32[32,18,128], index: 2, kind: input, shape index: {}]
  %s3 = inlined_call_operand.vmem [shape: bf16[9,128,128], index: 3, kind: input, shape index: {}]
  %s4 = inlined_call_operand.vmem [shape: f32[512,128], index: 4, kind: output, shape index: {0}]
  %s5 = inlined_call_operand.vmem [shape: f32[2,128], index: 5, kind: output, shape index: {1}]
  %6 = xla_tuple %s4, %s5
  %s7 = sld [smem:[#allocation0]]
  $region61: #{decoder_block_forward.6} parent=0
    _
  %s9 = ssub.s32 1, %s7
  %s10 = scalar_select 0, %s9, %s7
  loop: start=0, step=1, limit=6
  $region2: #{decoder_block_forward.6} parent=0 // loop_pre_header
    _
  $region3: #{decoder_block_forward.6} parent=0 // loop_header
    %s12 = sphi 0, %s16
    %p13 = scmp.ge.s32.totalorder %s12, 6
    %s22 = sphi 0, %s24
    %s25 = sphi 0, %s22
    %s26 = sphi 0, %s25
    %s42 = sphi 0, %s26
    %s48 = sphi 0, %s50
    %s51 = sphi 0, %s48
    %s52 = sphi 0, %s51
    %s68 = sphi 0, %s52
    %s74 = sphi 0, %s76
    %s77 = sphi 0, %s74
    %s78 = sphi 0, %s77
    %s94 = sphi 0, %s78
    %s98 = sphi 0, %s98
    %s100 = sphi 0, %s98
    %s101 = sphi 0, %s100
    %s115 = sphi 0, %s101
    %s121 = sphi 0, %s123
    %s124 = sphi 0, %s121
    %s125 = sphi 0, %s124
    %s141 = sphi 0, %s125
    %s145 = sphi 0, %s145
    %s147 = sphi 0, %s145
    %s148 = sphi 0, %s147
    %s162 = sphi 0, %s148
  $region4: #{decoder_block_forward.6} parent=0 // loop_header_branch
    %15 = sbr.rel (%p13) target = $region8
  $region5: #{decoder_block_forward.6} parent=0 // loop_body
    %s17 = ssub.s32 %s12, 1
    %s18 = ssub.s32 %s12, 2
    %s19 = sadd.s32 %s12, 1
    %s20 = ssub.s32 %s12, %s19
    %p21 = scmp.eq.s32.totalorder %s20, 0
    %s23 = sadd.s32 %s22, 1
    %s24 = scalar_select %p21, %s22, %s23
    %p27 = pneg %p21
    %p28 = scmp.eq.s32.totalorder %s12, 3
    %p29 = por %p27, %p28
    %p30 = scmp.ne.s32.totalorder %s22, %s25
    %p31 = scmp.eq.s32.totalorder %s12, 0
    %p32 = por %p30, %p31
    %p33 = scmp.ne.s32.totalorder %s22, %s25
    %p34 = scmp.eq.s32.totalorder %s17, 3
    %p35 = por %p33, %p34
    %p36 = scmp.ne.s32.totalorder %s25, %s26
    %p37 = scmp.eq.s32.totalorder %s17, 0
    %p38 = por %p36, %p37
    %p39 = scmp.ne.s32.totalorder %s25, %s26
    %p40 = scmp.eq.s32.totalorder %s18, 3
    %p41 = por %p39, %p40
    %p43 = scmp.ne.s32.totalorder %s26, %s42
    %p44 = scmp.eq.s32.totalorder %s18, 0
    %p45 = por %p43, %p44
    %s46 = ssub.s32 %s12, %s19
    %p47 = scmp.eq.s32.totalorder %s46, 0
    %s49 = sadd.s32 %s48, 1
    %s50 = scalar_select %p47, %s48, %s49
    %p53 = pneg %p47
    %p54 = scmp.eq.s32.totalorder %s12, 3
    %p55 = por %p53, %p54
    %p56 = scmp.ne.s32.totalorder %s48, %s51
    %p57 = scmp.eq.s32.totalorder %s12, 0
    %p58 = por %p56, %p57
    %p59 = scmp.ne.s32.totalorder %s48, %s51
    %p60 = scmp.eq.s32.totalorder %s17, 3
    %p61 = por %p59, %p60
    %p62 = scmp.ne.s32.totalorder %s51, %s52
    %p63 = scmp.eq.s32.totalorder %s17, 0
    %p64 = por %p62, %p63
    %p65 = scmp.ne.s32.totalorder %s51, %s52
    %p66 = scmp.eq.s32.totalorder %s18, 3
    %p67 = por %p65, %p66
    %p69 = scmp.ne.s32.totalorder %s52, %s68
    %p70 = scmp.eq.s32.totalorder %s18, 0
    %p71 = por %p69, %p70
    %s72 = ssub.s32 %s12, %s19
    %p73 = scmp.eq.s32.totalorder %s72, 0
    %s75 = sadd.s32 %s74, 1
    %s76 = scalar_select %p73, %s74, %s75
    %p79 = pneg %p73
    %p80 = scmp.eq.s32.totalorder %s12, 3
    %p81 = por %p79, %p80
    %p82 = scmp.ne.s32.totalorder %s74, %s77
    %p83 = scmp.eq.s32.totalorder %s12, 0
    %p84 = por %p82, %p83
    %p85 = scmp.ne.s32.totalorder %s74, %s77
    %p86 = scmp.eq.s32.totalorder %s17, 3
    %p87 = por %p85, %p86
    %p88 = scmp.ne.s32.totalorder %s77, %s78
    %p89 = scmp.eq.s32.totalorder %s17, 0
    %p90 = por %p88, %p89
    %p91 = scmp.ne.s32.totalorder %s77, %s78
    %p92 = scmp.eq.s32.totalorder %s18, 3
    %p93 = por %p91, %p92
    %p95 = scmp.ne.s32.totalorder %s78, %s94
    %p96 = scmp.eq.s32.totalorder %s18, 0
    %p97 = por %p95, %p96
    %s99 = sadd.s32 %s98, 1
    %p102 = scmp.eq.s32.totalorder %s12, 3
    %p103 = scmp.ne.s32.totalorder %s98, %s100
    %p104 = scmp.eq.s32.totalorder %s12, 0
    %p105 = por %p103, %p104
    %p106 = scmp.ne.s32.totalorder %s98, %s100
    %p107 = scmp.eq.s32.totalorder %s17, 3
    %p108 = por %p106, %p107
    %p109 = scmp.ne.s32.totalorder %s100, %s101
    %p110 = scmp.eq.s32.totalorder %s17, 0
    %p111 = por %p109, %p110
    %p112 = scmp.ne.s32.totalorder %s100, %s101
    %p113 = scmp.eq.s32.totalorder %s18, 3
    %p114 = por %p112, %p113
    %p116 = scmp.ne.s32.totalorder %s101, %s115
    %p117 = scmp.eq.s32.totalorder %s18, 0
    %p118 = por %p116, %p117
    %s119 = ssub.s32 %s12, %s19
    %p120 = scmp.eq.s32.totalorder %s119, 0
    %s122 = sadd.s32 %s121, 1
    %s123 = scalar_select %p120, %s121, %s122
    %p126 = pneg %p120
    %p127 = scmp.eq.s32.totalorder %s12, 3
    %p128 = por %p126, %p127
    %p129 = scmp.ne.s32.totalorder %s121, %s124
    %p130 = scmp.eq.s32.totalorder %s12, 0
    %p131 = por %p129, %p130
    %p132 = scmp.ne.s32.totalorder %s121, %s124
    %p133 = scmp.eq.s32.totalorder %s17, 3
    %p134 = por %p132, %p133
    %p135 = scmp.ne.s32.totalorder %s124, %s125
    %p136 = scmp.eq.s32.totalorder %s17, 0
    %p137 = por %p135, %p136
    %p138 = scmp.ne.s32.totalorder %s124, %s125
    %p139 = scmp.eq.s32.totalorder %s18, 3
    %p140 = por %p138, %p139
    %p142 = scmp.ne.s32.totalorder %s125, %s141
    %p143 = scmp.eq.s32.totalorder %s18, 0
    %p144 = por %p142, %p143
    %s146 = sadd.s32 %s145, 1
    %p149 = scmp.eq.s32.totalorder %s12, 3
    %p150 = scmp.ne.s32.totalorder %s145, %s147
    %p151 = scmp.eq.s32.totalorder %s12, 0
    %p152 = por %p150, %p151
    %p153 = scmp.ne.s32.totalorder %s145, %s147
    %p154 = scmp.eq.s32.totalorder %s17, 3
    %p155 = por %p153, %p154
    %p156 = scmp.ne.s32.totalorder %s147, %s148
    %p157 = scmp.eq.s32.totalorder %s17, 0
    %p158 = por %p156, %p157
    %p159 = scmp.ne.s32.totalorder %s147, %s148
    %p160 = scmp.eq.s32.totalorder %s18, 3
    %p161 = por %p159, %p160
    %p163 = scmp.ne.s32.totalorder %s148, %s162
    %p164 = scmp.eq.s32.totalorder %s18, 0
    %p165 = por %p163, %p164
    %p166 = scmp.le.s32.totalorder 1, %s12
    %p167 = scmp.lt.s32.totalorder %s12, 5
    %p168 = pnand %p166, %p167
    %p169 = pneg %p168
    // Predicated region
    $region9: #{decoder_block_forward.6} parent=5 // pred_check
      _
    $region10: #{decoder_block_forward.6} parent=5 // pred_check_branch
      %171 = sbr.rel (%p168) target = $region12
    $region11: #{decoder_block_forward.6} parent=5 // pred_region
      %s172 = ssub.s32 %s12, 1
      // Predicated region
      $region13: #{decoder_block_forward.6} parent=11 // pred_check
        %p173 = pneg %p111
      $region14: #{decoder_block_forward.6} parent=11 // pred_check_branch
        %175 = sbr.rel (%p173) target = $region16
      $region15: #{decoder_block_forward.6} parent=11 // pred_region
        _
      $region16: #{decoder_block_forward.6} parent=11 // pred_fallthru
        _
    $region12: #{decoder_block_forward.6} parent=5 // pred_fallthru
      _
    %p176 = scmp.lt.s32.totalorder %s12, 4
    // Predicated region
    $region17: #{decoder_block_forward.6} parent=5 // pred_check
      %p177 = pneg %p176
    $region18: #{decoder_block_forward.6} parent=5 // pred_check_branch
      %179 = sbr.rel (%p177) target = $region20
    $region19: #{decoder_block_forward.6} parent=5 // pred_region
      // Predicated region
      $region21: #{decoder_block_forward.6} parent=19 // pred_check
        %p180 = pneg %p32
      $region22: #{decoder_block_forward.6} parent=19 // pred_check_branch
        %182 = sbr.rel (%p180) target = $region24
      $region23: #{decoder_block_forward.6} parent=19 // pred_region
        %s183 = smul.u32 8, %s12
        %p184 = scmp.lt.s32.totalorder %s183, 31
        %s185 = scalar_select %p184, %s183, 31
        %s186 = smul.addr %s185, 3
        %s187 = smul.addr %s186, 8
        %s188 = scalar_lea.vmem %s0, %s187
        %s189 = smul.u32 8, %s12
      $region24: #{decoder_block_forward.6} parent=19 // pred_fallthru
        _
      // Predicated region
      $region25: #{decoder_block_forward.6} parent=19 // pred_check
        %p190 = pneg %p58
      $region26: #{decoder_block_forward.6} parent=19 // pred_check_branch
        %192 = sbr.rel (%p190) target = $region28
      $region27: #{decoder_block_forward.6} parent=19 // pred_region
        %s193 = smul.u32 8, %s12
        %p194 = scmp.lt.s32.totalorder %s193, 31
        %s195 = scalar_select %p194, %s193, 31
        %s196 = smul.addr %s195, 3
        %s197 = smul.addr %s196, 8
        %s198 = scalar_lea.vmem %s1, %s197
        %s199 = smul.u32 8, %s12
      $region28: #{decoder_block_forward.6} parent=19 // pred_fallthru
        _
      // Predicated region
      $region29: #{decoder_block_forward.6} parent=19 // pred_check
        %p200 = pneg %p84
      $region30: #{decoder_block_forward.6} parent=19 // pred_check_branch
        %202 = sbr.rel (%p200) target = $region32
      $region31: #{decoder_block_forward.6} parent=19 // pred_region
        %s203 = smul.u32 8, %s12
        %p204 = scmp.lt.s32.totalorder %s203, 31
        %s205 = scalar_select %p204, %s203, 31
        %s206 = smul.addr %s205, 3
        %s207 = smul.addr %s206, 8
        %s208 = scalar_lea.vmem %s2, %s207
        %s209 = smul.u32 8, %s12
      $region32: #{decoder_block_forward.6} parent=19 // pred_fallthru
        _
    $region20: #{decoder_block_forward.6} parent=5 // pred_fallthru
      _
    %p210 = scmp.le.s32.totalorder 1, %s12
    %p211 = scmp.lt.s32.totalorder %s12, 5
    %p212 = pnand %p210, %p211
    %p213 = pneg %p212
    // Predicated region
    $region33: #{decoder_block_forward.6} parent=5 // pred_check
      _
    $region34: #{decoder_block_forward.6} parent=5 // pred_check_branch
      %215 = sbr.rel (%p212) target = $region36
    $region35: #{decoder_block_forward.6} parent=5 // pred_region
      %s216 = ssub.s32 %s12, 1
      %s217 = smul.u32 8, %s17
      %p218 = scmp.lt.s32.totalorder %s217, 31
      %s219 = scalar_select %p218, %s217, 31
      %s220 = smul.addr %s219, 3
      %s221 = smul.addr %s220, 8
      %s222 = scalar_lea.vmem %s0, %s221
      %p223 = pneg %p38
      %p224 = pneg %p35
      %s225 = smul.u32 8, %s17
      %p226 = scmp.lt.s32.totalorder %s225, 31
      %s227 = scalar_select %p226, %s225, 31
      %s228 = smul.addr %s227, 3
      %s229 = smul.addr %s228, 8
      %s230 = scalar_lea.vmem %s1, %s229
      %p231 = pneg %p64
      %p232 = pneg %p61
      %s233 = smul.u32 8, %s17
      %p234 = scmp.lt.s32.totalorder %s233, 31
      %s235 = scalar_select %p234, %s233, 31
      %s236 = smul.addr %s235, 3
      %s237 = smul.addr %s236, 8
      %s238 = scalar_lea.vmem %s2, %s237
      %p239 = pneg %p90
      %p240 = pneg %p87
      %p241 = pneg %p111
      %p242 = pneg %p108
      %p243 = pneg %p137
      %p244 = pneg %p134
      %s245 = smul.u32 16, %s17
      %p246 = scmp.lt.s32.totalorder %s245, 63
      %s247 = scalar_select %p246, %s245, 63
      %s248 = smul.addr %s247, 8
      %s249 = scalar_lea.vmem %s4, %s248
      %p250 = pneg %p158
      %p251 = pneg %p155
      %s252 = smul.u32 8, %s17
      %p253 = scmp.lt.s32.totalorder %s252, 31
      %s254 = scalar_select %p253, %s252, 31
      %s255 = smul.addr %s254, 3
      %s256 = smul.addr %s255, 8
      %s257 = scalar_lea.vmem %s0, %s256
      %s258 = smul.u32 8, %s17
      %s259 = smul.u32 8, %s17
      %p260 = scmp.lt.s32.totalorder %s259, 31
      %s261 = scalar_select %p260, %s259, 31
      %s262 = smul.addr %s261, 3
      %s263 = smul.addr %s262, 8
      %s264 = scalar_lea.vmem %s1, %s263
      %s265 = smul.u32 8, %s17
      %s266 = smul.u32 8, %s17
      %p267 = scmp.lt.s32.totalorder %s266, 31
      %s268 = scalar_select %p267, %s266, 31
      %s269 = smul.addr %s268, 3
      %s270 = smul.addr %s269, 8
      %s271 = scalar_lea.vmem %s2, %s270
      %s272 = smul.u32 8, %s17
      %s273 = smul.u32 16, %s17
      %p274 = scmp.lt.s32.totalorder %s273, 63
      %s275 = scalar_select %p274, %s273, 63
      %s276 = smul.addr %s275, 8
      %s277 = scalar_lea.vmem %s4, %s276
      %s278 = smul.u32 16, %s17
      %v280 = vld [vmem:[%s257] sm:$0xff]
      %v281 = vld [vmem:[%s257 + $0x8] sm:$0xff]
      %v282 = vld [vmem:[%s257 + $0x18] sm:$0xff]
      %v283 = vld [vmem:[%s257 + $0x20] sm:$0xff]
      %v284 = vld [vmem:[%s257 + $0x30] sm:$0xff]
      %v285 = vld [vmem:[%s257 + $0x38] sm:$0xff]
      %v286 = vld [vmem:[%s257 + $0x48] sm:$0xff]
      %v287 = vld [vmem:[%s257 + $0x50] sm:$0xff]
      %v288 = vld [vmem:[%s257 + $0x60] sm:$0xff]
      %v289 = vld [vmem:[%s257 + $0x68] sm:$0xff]
      %v290 = vld [vmem:[%s257 + $0x78] sm:$0xff]
      %v291 = vld [vmem:[%s257 + $0x80] sm:$0xff]
      %v292 = vld [vmem:[%s257 + $0x90] sm:$0xff]
      %v293 = vld [vmem:[%s257 + $0x98] sm:$0xff]
      %v294 = vld [vmem:[%s257 + $0xa8] sm:$0xff]
      %v295 = vld [vmem:[%s257 + $0xb0] sm:$0xff]
      %v296 = vpack.c.bf16 %v281, %v280
      %v297 = vpack.c.bf16 %v283, %v282
      %v298 = vpack.c.bf16 %v285, %v284
      %v299 = vpack.c.bf16 %v287, %v286
      %v300 = vpack.c.bf16 %v289, %v288
      %v301 = vpack.c.bf16 %v291, %v290
      %v302 = vpack.c.bf16 %v293, %v292
      %v303 = vpack.c.bf16 %v295, %v294
      %v304 = vld [vmem:[%s3] sm:$0xf]
      %v305 = vld [vmem:[%s3 + $0x4] sm:$0xf]
      %v306 = vld [vmem:[%s3 + $0x8] sm:$0xf]
      %v307 = vld [vmem:[%s3 + $0xc] sm:$0xf]
      %v308 = vld [vmem:[%s3 + $0x10] sm:$0xf]
      %v309 = vld [vmem:[%s3 + $0x14] sm:$0xf]
      %v310 = vld [vmem:[%s3 + $0x18] sm:$0xf]
      %v311 = vld [vmem:[%s3 + $0x1c] sm:$0xf]
      %v312 = vld [vmem:[%s3 + $0x20] sm:$0xf]
      %v313 = vld [vmem:[%s3 + $0x24] sm:$0xf]
      %v314 = vld [vmem:[%s3 + $0x28] sm:$0xf]
      %v315 = vld [vmem:[%s3 + $0x2c] sm:$0xf]
      %v316 = vld [vmem:[%s3 + $0x30] sm:$0xf]
      %v317 = vld [vmem:[%s3 + $0x34] sm:$0xf]
      %v318 = vld [vmem:[%s3 + $0x38] sm:$0xf]
      %v319 = vld [vmem:[%s3 + $0x3c] sm:$0xf]
      %v320 = vld [vmem:[%s257 + $0x1] sm:$0xff]
      %v321 = vld [vmem:[%s257 + $0x9] sm:$0xff]
      %v322 = vld [vmem:[%s257 + $0x19] sm:$0xff]
      %v323 = vld [vmem:[%s257 + $0x21] sm:$0xff]
      %v324 = vld [vmem:[%s257 + $0x31] sm:$0xff]
      %v325 = vld [vmem:[%s257 + $0x39] sm:$0xff]
      %v326 = vld [vmem:[%s257 + $0x49] sm:$0xff]
      %v327 = vld [vmem:[%s257 + $0x51] sm:$0xff]
      %v328 = vld [vmem:[%s257 + $0x61] sm:$0xff]
      %v329 = vld [vmem:[%s257 + $0x69] sm:$0xff]
      %v330 = vld [vmem:[%s257 + $0x79] sm:$0xff]
      %v331 = vld [vmem:[%s257 + $0x81] sm:$0xff]
      %v332 = vld [vmem:[%s257 + $0x91] sm:$0xff]
      %v333 = vld [vmem:[%s257 + $0x99] sm:$0xff]
      %v334 = vld [vmem:[%s257 + $0xa9] sm:$0xff]
      %v335 = vld [vmem:[%s257 + $0xb1] sm:$0xff]
      %v336 = vpack.c.bf16 %v321, %v320
      %v337 = vpack.c.bf16 %v323, %v322
      %v338 = vpack.c.bf16 %v325, %v324
      %v339 = vpack.c.bf16 %v327, %v326
      %v340 = vpack.c.bf16 %v329, %v328
      %v341 = vpack.c.bf16 %v331, %v330
      %v342 = vpack.c.bf16 %v333, %v332
      %v343 = vpack.c.bf16 %v335, %v334
      %s344 = scalar_lea.vmem %s3, 64
      %v345 = vld [vmem:[%s344] sm:$0xf]
      %v346 = vld [vmem:[%s344 + $0x4] sm:$0xf]
      %v347 = vld [vmem:[%s344 + $0x8] sm:$0xf]
      %v348 = vld [vmem:[%s344 + $0xc] sm:$0xf]
      %v349 = vld [vmem:[%s344 + $0x10] sm:$0xf]
      %v350 = vld [vmem:[%s344 + $0x14] sm:$0xf]
      %v351 = vld [vmem:[%s344 + $0x18] sm:$0xf]
      %v352 = vld [vmem:[%s344 + $0x1c] sm:$0xf]
      %v353 = vld [vmem:[%s344 + $0x20] sm:$0xf]
      %v354 = vld [vmem:[%s344 + $0x24] sm:$0xf]
      %v355 = vld [vmem:[%s344 + $0x28] sm:$0xf]
      %v356 = vld [vmem:[%s344 + $0x2c] sm:$0xf]
      %v357 = vld [vmem:[%s344 + $0x30] sm:$0xf]
      %v358 = vld [vmem:[%s344 + $0x34] sm:$0xf]
      %v359 = vld [vmem:[%s344 + $0x38] sm:$0xf]
      %v360 = vld [vmem:[%s344 + $0x3c] sm:$0xf]
      %v377 = vunpack.c.l.b16 %v345
      %v378 = vunpack.c.l.b16 %v346
      %v379 = vunpack.c.l.b16 %v347
      %v380 = vunpack.c.l.b16 %v348
      %v381 = vunpack.c.l.b16 %v349
      %v382 = vunpack.c.l.b16 %v350
      %v383 = vunpack.c.l.b16 %v351
      %v384 = vunpack.c.l.b16 %v352
      %v385 = vunpack.c.l.b16 %v353
      %v386 = vunpack.c.l.b16 %v354
      %v387 = vunpack.c.l.b16 %v355
      %v388 = vunpack.c.l.b16 %v356
      %v389 = vunpack.c.l.b16 %v357
      %v390 = vunpack.c.l.b16 %v358
      %v391 = vunpack.c.l.b16 %v359
      %v392 = vunpack.c.l.b16 %v360
      %v393 = vpack.c.b16 %v378, %v377
      %v394 = vpack.c.b16 %v380, %v379
      %v395 = vpack.c.b16 %v382, %v381
      %v396 = vpack.c.b16 %v384, %v383
      %v397 = vpack.c.b16 %v386, %v385
      %v398 = vpack.c.b16 %v388, %v387
      %v399 = vpack.c.b16 %v390, %v389
      %v400 = vpack.c.b16 %v392, %v391
      %409 = vmatprep.subr.bf16.mxu0 0
      %410 = vmatpush1.bf16.msra.mxu0 %v400
      %411 = vmatprep.subr.bf16.mxu0 0
      %412 = vmatpush1.bf16.msra.mxu0 %v399
      %413 = vmatprep.subr.bf16.mxu0 0
      %414 = vmatpush1.bf16.msra.mxu0 %v398
      %415 = vmatprep.subr.bf16.mxu0 0
      %416 = vmatpush1.bf16.msra.mxu0 %v397
      %417 = vmatprep.subr.bf16.mxu0 0
      %418 = vmatpush1.bf16.msra.mxu0 %v396
      %419 = vmatprep.subr.bf16.mxu0 0
      %420 = vmatpush1.bf16.msra.mxu0 %v395
      %421 = vmatprep.subr.bf16.mxu0 0
      %422 = vmatpush1.bf16.msra.mxu0 %v394
      %423 = vmatprep.subr.bf16.mxu0 0
      %424 = vmatpush1.bf16.msra.mxu0 %v393
      %425 = vmatprep.subr.bf16.mxu0 0
      %426 = vmatpush2.bf16.msra.mxu0 0
      %427 = vmatprep.subr.bf16.mxu0 0
      %428 = vmatpush2.bf16.msra.mxu0 0
      %429 = vmatprep.subr.bf16.mxu0 0
      %430 = vmatpush2.bf16.msra.mxu0 0
      %431 = vmatprep.subr.bf16.mxu0 0
      %432 = vmatpush2.bf16.msra.mxu0 0
      %433 = vmatprep.subr.bf16.mxu0 0
      %434 = vmatpush2.bf16.msra.mxu0 0
      %435 = vmatprep.subr.bf16.mxu0 0
      %436 = vmatpush2.bf16.msra.mxu0 0
      %437 = vmatprep.subr.bf16.mxu0 0
      %438 = vmatpush2.bf16.msra.mxu0 0
      %439 = vmatprep.subr.bf16.mxu0 0
      %440 = vmatpush2.bf16.msra.mxu0 0
      %441 = vmatprep.mubr.bf16.mxu0 0
      %442 = vmatmul.mubr.bf16.gmra.mxu0 %v336
      %v443 = vpop.f32.mrf.mxu0
      %v444 = vadd.f32 0.0, %v443
      %v445 = vpop.f32.mrf.mxu0
      %v446 = vpop.f32.mrf.mxu0
      %v447 = vadd.f32 0.0, %v446
      %v448 = vpop.f32.mrf.mxu0
      %449 = vmatprep.mubr.bf16.mxu0 0
      %450 = vmatmul.mubr.bf16.gmra.mxu0 %v337
      %v451 = vpop.f32.mrf.mxu0
      %v452 = vadd.f32 0.0, %v451
      %v453 = vpop.f32.mrf.mxu0
      %v454 = vpop.f32.mrf.mxu0
      %v455 = vadd.f32 0.0, %v454
      %v456 = vpop.f32.mrf.mxu0
      %457 = vmatprep.mubr.bf16.mxu0 0
      %458 = vmatmul.mubr.bf16.gmra.mxu0 %v338
      %v459 = vpop.f32.mrf.mxu0
      %v460 = vadd.f32 0.0, %v459
      %v461 = vpop.f32.mrf.mxu0
      %v462 = vpop.f32.mrf.mxu0
      %v463 = vadd.f32 0.0, %v462
      %v464 = vpop.f32.mrf.mxu0
      %465 = vmatprep.mubr.bf16.mxu0 0
      %466 = vmatmul.mubr.bf16.gmra.mxu0 %v339
      %v467 = vpop.f32.mrf.mxu0
      %v468 = vadd.f32 0.0, %v467
      %v469 = vpop.f32.mrf.mxu0
      %v470 = vpop.f32.mrf.mxu0
      %v471 = vadd.f32 0.0, %v470
      %v472 = vpop.f32.mrf.mxu0
      %473 = vmatprep.mubr.bf16.mxu0 0
      %474 = vmatmul.mubr.bf16.gmra.mxu0 %v340
      %v475 = vpop.f32.mrf.mxu0
      %v476 = vadd.f32 0.0, %v475
      %v477 = vpop.f32.mrf.mxu0
      %v478 = vpop.f32.mrf.mxu0
      %v479 = vadd.f32 0.0, %v478
      %v480 = vpop.f32.mrf.mxu0
      %481 = vmatprep.mubr.bf16.mxu0 0
      %482 = vmatmul.mubr.bf16.gmra.mxu0 %v341
      %v483 = vpop.f32.mrf.mxu0
      %v484 = vadd.f32 0.0, %v483
      %v485 = vpop.f32.mrf.mxu0
      %v486 = vpop.f32.mrf.mxu0
      %v487 = vadd.f32 0.0, %v486
      %v488 = vpop.f32.mrf.mxu0
      %489 = vmatprep.mubr.bf16.mxu0 0
      %490 = vmatmul.mubr.bf16.gmra.mxu0 %v342
      %v491 = vpop.f32.mrf.mxu0
      %v492 = vadd.f32 0.0, %v491
      %v493 = vpop.f32.mrf.mxu0
      %v494 = vpop.f32.mrf.mxu0
      %v495 = vadd.f32 0.0, %v494
      %v496 = vpop.f32.mrf.mxu0
      %497 = vmatprep.mubr.bf16.mxu0 0
      %498 = vmatmul.mubr.bf16.gmra.mxu0 %v343
      %v499 = vpop.f32.mrf.mxu0
      %v500 = vadd.f32 0.0, %v499
      %v501 = vpop.f32.mrf.mxu0
      %v502 = vpop.f32.mrf.mxu0
      %v503 = vadd.f32 0.0, %v502
      %v504 = vpop.f32.mrf.mxu0
      %505 = vdwg.mxu0
      %v522 = vunpack.c.l.b16 %v304
      %v523 = vunpack.c.l.b16 %v305
      %v524 = vunpack.c.l.b16 %v306
      %v525 = vunpack.c.l.b16 %v307
      %v526 = vunpack.c.l.b16 %v308
      %v527 = vunpack.c.l.b16 %v309
      %v528 = vunpack.c.l.b16 %v310
      %v529 = vunpack.c.l.b16 %v311
      %v530 = vunpack.c.l.b16 %v312
      %v531 = vunpack.c.l.b16 %v313
      %v532 = vunpack.c.l.b16 %v314
      %v533 = vunpack.c.l.b16 %v315
      %v534 = vunpack.c.l.b16 %v316
      %v535 = vunpack.c.l.b16 %v317
      %v536 = vunpack.c.l.b16 %v318
      %v537 = vunpack.c.l.b16 %v319
      %v538 = vpack.c.b16 %v523, %v522
      %v539 = vpack.c.b16 %v525, %v524
      %v540 = vpack.c.b16 %v527, %v526
      %v541 = vpack.c.b16 %v529, %v528
      %v542 = vpack.c.b16 %v531, %v530
      %v543 = vpack.c.b16 %v533, %v532
      %v544 = vpack.c.b16 %v535, %v534
      %v545 = vpack.c.b16 %v537, %v536
      %554 = vmatprep.subr.bf16.mxu0 0
      %555 = vmatpush1.bf16.msra.mxu0 %v545
      %556 = vmatprep.subr.bf16.mxu0 0
      %557 = vmatpush1.bf16.msra.mxu0 %v544
      %558 = vmatprep.subr.bf16.mxu0 0
      %559 = vmatpush1.bf16.msra.mxu0 %v543
      %560 = vmatprep.subr.bf16.mxu0 0
      %561 = vmatpush1.bf16.msra.mxu0 %v542
      %562 = vmatprep.subr.bf16.mxu0 0
      %563 = vmatpush1.bf16.msra.mxu0 %v541
      %564 = vmatprep.subr.bf16.mxu0 0
      %565 = vmatpush1.bf16.msra.mxu0 %v540
      %566 = vmatprep.subr.bf16.mxu0 0
      %567 = vmatpush1.bf16.msra.mxu0 %v539
      %568 = vmatprep.subr.bf16.mxu0 0
      %569 = vmatpush1.bf16.msra.mxu0 %v538
      %570 = vmatprep.subr.bf16.mxu0 0
      %571 = vmatpush2.bf16.msra.mxu0 0
      %572 = vmatprep.subr.bf16.mxu0 0
      %573 = vmatpush2.bf16.msra.mxu0 0
      %574 = vmatprep.subr.bf16.mxu0 0
      %575 = vmatpush2.bf16.msra.mxu0 0
      %576 = vmatprep.subr.bf16.mxu0 0
      %577 = vmatpush2.bf16.msra.mxu0 0
      %578 = vmatprep.subr.bf16.mxu0 0
      %579 = vmatpush2.bf16.msra.mxu0 0
      %580 = vmatprep.subr.bf16.mxu0 0
      %581 = vmatpush2.bf16.msra.mxu0 0
      %582 = vmatprep.subr.bf16.mxu0 0
      %583 = vmatpush2.bf16.msra.mxu0 0
      %584 = vmatprep.subr.bf16.mxu0 0
      %585 = vmatpush2.bf16.msra.mxu0 0
      %586 = vmatprep.mubr.bf16.mxu0 0
      %587 = vmatmul.mubr.bf16.gmra.mxu0 %v296
      %v588 = vpop.f32.mrf.mxu0
      %v589 = vadd.f32 %v444, %v588
      %v590 = vpop.f32.mrf.mxu0
      %v591 = vpop.f32.mrf.mxu0
      %v592 = vadd.f32 %v447, %v591
      %v593 = vpop.f32.mrf.mxu0
      %594 = vmatprep.mubr.bf16.mxu0 0
      %595 = vmatmul.mubr.bf16.gmra.mxu0 %v297
      %v596 = vpop.f32.mrf.mxu0
      %v597 = vadd.f32 %v452, %v596
      %v598 = vpop.f32.mrf.mxu0
      %v599 = vpop.f32.mrf.mxu0
      %v600 = vadd.f32 %v455, %v599
      %v601 = vpop.f32.mrf.mxu0
      %602 = vmatprep.mubr.bf16.mxu0 0
      %603 = vmatmul.mubr.bf16.gmra.mxu0 %v298
      %v604 = vpop.f32.mrf.mxu0
      %v605 = vadd.f32 %v460, %v604
      %v606 = vpop.f32.mrf.mxu0
      %v607 = vpop.f32.mrf.mxu0
      %v608 = vadd.f32 %v463, %v607
      %v609 = vpop.f32.mrf.mxu0
      %610 = vmatprep.mubr.bf16.mxu0 0
      %611 = vmatmul.mubr.bf16.gmra.mxu0 %v299
      %v612 = vpop.f32.mrf.mxu0
      %v613 = vadd.f32 %v468, %v612
      %v614 = vpop.f32.mrf.mxu0
      %v615 = vpop.f32.mrf.mxu0
      %v616 = vadd.f32 %v471, %v615
      %v617 = vpop.f32.mrf.mxu0
      %618 = vmatprep.mubr.bf16.mxu0 0
      %619 = vmatmul.mubr.bf16.gmra.mxu0 %v300
      %v620 = vpop.f32.mrf.mxu0
      %v621 = vadd.f32 %v476, %v620
      %v622 = vpop.f32.mrf.mxu0
      %v623 = vpop.f32.mrf.mxu0
      %v624 = vadd.f32 %v479, %v623
      %v625 = vpop.f32.mrf.mxu0
      %626 = vmatprep.mubr.bf16.mxu0 0
      %627 = vmatmul.mubr.bf16.gmra.mxu0 %v301
      %v628 = vpop.f32.mrf.mxu0
      %v629 = vadd.f32 %v484, %v628
      %v630 = vpop.f32.mrf.mxu0
      %v631 = vpop.f32.mrf.mxu0
      %v632 = vadd.f32 %v487, %v631
      %v633 = vpop.f32.mrf.mxu0
      %634 = vmatprep.mubr.bf16.mxu0 0
      %635 = vmatmul.mubr.bf16.gmra.mxu0 %v302
      %v636 = vpop.f32.mrf.mxu0
      %v637 = vadd.f32 %v492, %v636
      %v638 = vpop.f32.mrf.mxu0
      %v639 = vpop.f32.mrf.mxu0
      %v640 = vadd.f32 %v495, %v639
      %v641 = vpop.f32.mrf.mxu0
      %642 = vmatprep.mubr.bf16.mxu0 0
      %643 = vmatmul.mubr.bf16.gmra.mxu0 %v303
      %v644 = vpop.f32.mrf.mxu0
      %v645 = vadd.f32 %v500, %v644
      %v646 = vpop.f32.mrf.mxu0
      %v647 = vpop.f32.mrf.mxu0
      %v648 = vadd.f32 %v503, %v647
      %v649 = vpop.f32.mrf.mxu0
      %650 = vdwg.mxu0
      %v651 = vld [vmem:[%s257 + $0x2] sm:$0xff]
      %v652 = vld [vmem:[%s257 + $0xa] sm:$0xff]
      %v653 = vld [vmem:[%s257 + $0x1a] sm:$0xff]
      %v654 = vld [vmem:[%s257 + $0x22] sm:$0xff]
      %v655 = vld [vmem:[%s257 + $0x32] sm:$0xff]
      %v656 = vld [vmem:[%s257 + $0x3a] sm:$0xff]
      %v657 = vld [vmem:[%s257 + $0x4a] sm:$0xff]
      %v658 = vld [vmem:[%s257 + $0x52] sm:$0xff]
      %v659 = vld [vmem:[%s257 + $0x62] sm:$0xff]
      %v660 = vld [vmem:[%s257 + $0x6a] sm:$0xff]
      %v661 = vld [vmem:[%s257 + $0x7a] sm:$0xff]
      %v662 = vld [vmem:[%s257 + $0x82] sm:$0xff]
      %v663 = vld [vmem:[%s257 + $0x92] sm:$0xff]
      %v664 = vld [vmem:[%s257 + $0x9a] sm:$0xff]
      %v665 = vld [vmem:[%s257 + $0xaa] sm:$0xff]
      %v666 = vld [vmem:[%s257 + $0xb2] sm:$0xff]
      %v667 = vpack.c.bf16 %v652, %v651
      %v668 = vpack.c.bf16 %v654, %v653
      %v669 = vpack.c.bf16 %v656, %v655
      %v670 = vpack.c.bf16 %v658, %v657
      %v671 = vpack.c.bf16 %v660, %v659
      %v672 = vpack.c.bf16 %v662, %v661
      %v673 = vpack.c.bf16 %v664, %v663
      %v674 = vpack.c.bf16 %v666, %v665
      %s675 = scalar_lea.vmem %s3, 128
      %v676 = vld [vmem:[%s675] sm:$0xf]
      %v677 = vld [vmem:[%s675 + $0x4] sm:$0xf]
      %v678 = vld [vmem:[%s675 + $0x8] sm:$0xf]
      %v679 = vld [vmem:[%s675 + $0xc] sm:$0xf]
      %v680 = vld [vmem:[%s675 + $0x10] sm:$0xf]
      %v681 = vld [vmem:[%s675 + $0x14] sm:$0xf]
      %v682 = vld [vmem:[%s675 + $0x18] sm:$0xf]
      %v683 = vld [vmem:[%s675 + $0x1c] sm:$0xf]
      %v684 = vld [vmem:[%s675 + $0x20] sm:$0xf]
      %v685 = vld [vmem:[%s675 + $0x24] sm:$0xf]
      %v686 = vld [vmem:[%s675 + $0x28] sm:$0xf]
      %v687 = vld [vmem:[%s675 + $0x2c] sm:$0xf]
      %v688 = vld [vmem:[%s675 + $0x30] sm:$0xf]
      %v689 = vld [vmem:[%s675 + $0x34] sm:$0xf]
      %v690 = vld [vmem:[%s675 + $0x38] sm:$0xf]
      %v691 = vld [vmem:[%s675 + $0x3c] sm:$0xf]
      %v708 = vunpack.c.l.b16 %v676
      %v709 = vunpack.c.l.b16 %v677
      %v710 = vunpack.c.l.b16 %v678
      %v711 = vunpack.c.l.b16 %v679
      %v712 = vunpack.c.l.b16 %v680
      %v713 = vunpack.c.l.b16 %v681
      %v714 = vunpack.c.l.b16 %v682
      %v715 = vunpack.c.l.b16 %v683
      %v716 = vunpack.c.l.b16 %v684
      %v717 = vunpack.c.l.b16 %v685
      %v718 = vunpack.c.l.b16 %v686
      %v719 = vunpack.c.l.b16 %v687
      %v720 = vunpack.c.l.b16 %v688
      %v721 = vunpack.c.l.b16 %v689
      %v722 = vunpack.c.l.b16 %v690
      %v723 = vunpack.c.l.b16 %v691
      %v724 = vpack.c.b16 %v709, %v708
      %v725 = vpack.c.b16 %v711, %v710
      %v726 = vpack.c.b16 %v713, %v712
      %v727 = vpack.c.b16 %v715, %v714
      %v728 = vpack.c.b16 %v717, %v716
      %v729 = vpack.c.b16 %v719, %v718
      %v730 = vpack.c.b16 %v721, %v720
      %v731 = vpack.c.b16 %v723, %v722
      %740 = vmatprep.subr.bf16.mxu0 0
      %741 = vmatpush1.bf16.msra.mxu0 %v731
      %742 = vmatprep.subr.bf16.mxu0 0
      %743 = vmatpush1.bf16.msra.mxu0 %v730
      %744 = vmatprep.subr.bf16.mxu0 0
      %745 = vmatpush1.bf16.msra.mxu0 %v729
      %746 = vmatprep.subr.bf16.mxu0 0
      %747 = vmatpush1.bf16.msra.mxu0 %v728
      %748 = vmatprep.subr.bf16.mxu0 0
      %749 = vmatpush1.bf16.msra.mxu0 %v727
      %750 = vmatprep.subr.bf16.mxu0 0
      %751 = vmatpush1.bf16.msra.mxu0 %v726
      %752 = vmatprep.subr.bf16.mxu0 0
      %753 = vmatpush1.bf16.msra.mxu0 %v725
      %754 = vmatprep.subr.bf16.mxu0 0
      %755 = vmatpush1.bf16.msra.mxu0 %v724
      %756 = vmatprep.subr.bf16.mxu0 0
      %757 = vmatpush2.bf16.msra.mxu0 0
      %758 = vmatprep.subr.bf16.mxu0 0
      %759 = vmatpush2.bf16.msra.mxu0 0
      %760 = vmatprep.subr.bf16.mxu0 0
      %761 = vmatpush2.bf16.msra.mxu0 0
      %762 = vmatprep.subr.bf16.mxu0 0
      %763 = vmatpush2.bf16.msra.mxu0 0
      %764 = vmatprep.subr.bf16.mxu0 0
      %765 = vmatpush2.bf16.msra.mxu0 0
      %766 = vmatprep.subr.bf16.mxu0 0
      %767 = vmatpush2.bf16.msra.mxu0 0
      %768 = vmatprep.subr.bf16.mxu0 0
      %769 = vmatpush2.bf16.msra.mxu0 0
      %770 = vmatprep.subr.bf16.mxu0 0
      %771 = vmatpush2.bf16.msra.mxu0 0
      %772 = vmatprep.mubr.bf16.mxu0 0
      %773 = vmatmul.mubr.bf16.gmra.mxu0 %v667
      %v774 = vpop.f32.mrf.mxu0
      %v775 = vadd.f32 0.0, %v774
      %v776 = vpop.f32.mrf.mxu0
      %v777 = vpop.f32.mrf.mxu0
      %v778 = vadd.f32 0.0, %v777
      %v779 = vpop.f32.mrf.mxu0
      %780 = vmatprep.mubr.bf16.mxu0 0
      %781 = vmatmul.mubr.bf16.gmra.mxu0 %v668
      %v782 = vpop.f32.mrf.mxu0
      %v783 = vadd.f32 0.0, %v782
      %v784 = vpop.f32.mrf.mxu0
      %v785 = vpop.f32.mrf.mxu0
      %v786 = vadd.f32 0.0, %v785
      %v787 = vpop.f32.mrf.mxu0
      %788 = vmatprep.mubr.bf16.mxu0 0
      %789 = vmatmul.mubr.bf16.gmra.mxu0 %v669
      %v790 = vpop.f32.mrf.mxu0
      %v791 = vadd.f32 0.0, %v790
      %v792 = vpop.f32.mrf.mxu0
      %v793 = vpop.f32.mrf.mxu0
      %v794 = vadd.f32 0.0, %v793
      %v795 = vpop.f32.mrf.mxu0
      %796 = vmatprep.mubr.bf16.mxu0 0
      %797 = vmatmul.mubr.bf16.gmra.mxu0 %v670
      %v798 = vpop.f32.mrf.mxu0
      %v799 = vadd.f32 0.0, %v798
      %v800 = vpop.f32.mrf.mxu0
      %v801 = vpop.f32.mrf.mxu0
      %v802 = vadd.f32 0.0, %v801
      %v803 = vpop.f32.mrf.mxu0
      %804 = vmatprep.mubr.bf16.mxu0 0
      %805 = vmatmul.mubr.bf16.gmra.mxu0 %v671
      %v806 = vpop.f32.mrf.mxu0
      %v807 = vadd.f32 0.0, %v806
      %v808 = vpop.f32.mrf.mxu0
      %v809 = vpop.f32.mrf.mxu0
      %v810 = vadd.f32 0.0, %v809
      %v811 = vpop.f32.mrf.mxu0
      %812 = vmatprep.mubr.bf16.mxu0 0
      %813 = vmatmul.mubr.bf16.gmra.mxu0 %v672
      %v814 = vpop.f32.mrf.mxu0
      %v815 = vadd.f32 0.0, %v814
      %v816 = vpop.f32.mrf.mxu0
      %v817 = vpop.f32.mrf.mxu0
      %v818 = vadd.f32 0.0, %v817
      %v819 = vpop.f32.mrf.mxu0
      %820 = vmatprep.mubr.bf16.mxu0 0
      %821 = vmatmul.mubr.bf16.gmra.mxu0 %v673
      %v822 = vpop.f32.mrf.mxu0
      %v823 = vadd.f32 0.0, %v822
      %v824 = vpop.f32.mrf.mxu0
      %v825 = vpop.f32.mrf.mxu0
      %v826 = vadd.f32 0.0, %v825
      %v827 = vpop.f32.mrf.mxu0
      %828 = vmatprep.mubr.bf16.mxu0 0
      %829 = vmatmul.mubr.bf16.gmra.mxu0 %v674
      %v830 = vpop.f32.mrf.mxu0
      %v831 = vadd.f32 0.0, %v830
      %v832 = vpop.f32.mrf.mxu0
      %v833 = vpop.f32.mrf.mxu0
      %v834 = vadd.f32 0.0, %v833
      %v835 = vpop.f32.mrf.mxu0
      %836 = vdwg.mxu0
      %v837 = vadd.f32 %v589, %v775
      %v838 = vadd.f32 %v592, %v778
      %v839 = vadd.f32 %v597, %v783
      %v840 = vadd.f32 %v600, %v786
      %v841 = vadd.f32 %v605, %v791
      %v842 = vadd.f32 %v608, %v794
      %v843 = vadd.f32 %v613, %v799
      %v844 = vadd.f32 %v616, %v802
      %v845 = vadd.f32 %v621, %v807
      %v846 = vadd.f32 %v624, %v810
      %v847 = vadd.f32 %v629, %v815
      %v848 = vadd.f32 %v632, %v818
      %v849 = vadd.f32 %v637, %v823
      %v850 = vadd.f32 %v640, %v826
      %v851 = vadd.f32 %v645, %v831
      %v852 = vadd.f32 %v648, %v834
      %v853 = vld [vmem:[%s264] sm:$0xff]
      %v854 = vld [vmem:[%s264 + $0x8] sm:$0xff]
      %v855 = vld [vmem:[%s264 + $0x18] sm:$0xff]
      %v856 = vld [vmem:[%s264 + $0x20] sm:$0xff]
      %v857 = vld [vmem:[%s264 + $0x30] sm:$0xff]
      %v858 = vld [vmem:[%s264 + $0x38] sm:$0xff]
      %v859 = vld [vmem:[%s264 + $0x48] sm:$0xff]
      %v860 = vld [vmem:[%s264 + $0x50] sm:$0xff]
      %v861 = vld [vmem:[%s264 + $0x60] sm:$0xff]
      %v862 = vld [vmem:[%s264 + $0x68] sm:$0xff]
      %v863 = vld [vmem:[%s264 + $0x78] sm:$0xff]
      %v864 = vld [vmem:[%s264 + $0x80] sm:$0xff]
      %v865 = vld [vmem:[%s264 + $0x90] sm:$0xff]
      %v866 = vld [vmem:[%s264 + $0x98] sm:$0xff]
      %v867 = vld [vmem:[%s264 + $0xa8] sm:$0xff]
      %v868 = vld [vmem:[%s264 + $0xb0] sm:$0xff]
      %v869 = vpack.c.bf16 %v854, %v853
      %v870 = vpack.c.bf16 %v856, %v855
      %v871 = vpack.c.bf16 %v858, %v857
      %v872 = vpack.c.bf16 %v860, %v859
      %v873 = vpack.c.bf16 %v862, %v861
      %v874 = vpack.c.bf16 %v864, %v863
      %v875 = vpack.c.bf16 %v866, %v865
      %v876 = vpack.c.bf16 %v868, %v867
      %s877 = scalar_lea.vmem %s3, 192
      %v878 = vld [vmem:[%s877] sm:$0xf]
      %v879 = vld [vmem:[%s877 + $0x4] sm:$0xf]
      %v880 = vld [vmem:[%s877 + $0x8] sm:$0xf]
      %v881 = vld [vmem:[%s877 + $0xc] sm:$0xf]
      %v882 = vld [vmem:[%s877 + $0x10] sm:$0xf]
      %v883 = vld [vmem:[%s877 + $0x14] sm:$0xf]
      %v884 = vld [vmem:[%s877 + $0x18] sm:$0xf]
      %v885 = vld [vmem:[%s877 + $0x1c] sm:$0xf]
      %v886 = vld [vmem:[%s877 + $0x20] sm:$0xf]
      %v887 = vld [vmem:[%s877 + $0x24] sm:$0xf]
      %v888 = vld [vmem:[%s877 + $0x28] sm:$0xf]
      %v889 = vld [vmem:[%s877 + $0x2c] sm:$0xf]
      %v890 = vld [vmem:[%s877 + $0x30] sm:$0xf]
      %v891 = vld [vmem:[%s877 + $0x34] sm:$0xf]
      %v892 = vld [vmem:[%s877 + $0x38] sm:$0xf]
      %v893 = vld [vmem:[%s877 + $0x3c] sm:$0xf]
      %v910 = vunpack.c.l.b16 %v878
      %v911 = vunpack.c.l.b16 %v879
      %v912 = vunpack.c.l.b16 %v880
      %v913 = vunpack.c.l.b16 %v881
      %v914 = vunpack.c.l.b16 %v882
      %v915 = vunpack.c.l.b16 %v883
      %v916 = vunpack.c.l.b16 %v884
      %v917 = vunpack.c.l.b16 %v885
      %v918 = vunpack.c.l.b16 %v886
      %v919 = vunpack.c.l.b16 %v887
      %v920 = vunpack.c.l.b16 %v888
      %v921 = vunpack.c.l.b16 %v889
      %v922 = vunpack.c.l.b16 %v890
      %v923 = vunpack.c.l.b16 %v891
      %v924 = vunpack.c.l.b16 %v892
      %v925 = vunpack.c.l.b16 %v893
      %v926 = vpack.c.b16 %v911, %v910
      %v927 = vpack.c.b16 %v913, %v912
      %v928 = vpack.c.b16 %v915, %v914
      %v929 = vpack.c.b16 %v917, %v916
      %v930 = vpack.c.b16 %v919, %v918
      %v931 = vpack.c.b16 %v921, %v920
      %v932 = vpack.c.b16 %v923, %v922
      %v933 = vpack.c.b16 %v925, %v924
      %942 = vmatprep.subr.bf16.mxu0 0
      %943 = vmatpush1.bf16.msra.mxu0 %v933
      %944 = vmatprep.subr.bf16.mxu0 0
      %945 = vmatpush1.bf16.msra.mxu0 %v932
      %946 = vmatprep.subr.bf16.mxu0 0
      %947 = vmatpush1.bf16.msra.mxu0 %v931
      %948 = vmatprep.subr.bf16.mxu0 0
      %949 = vmatpush1.bf16.msra.mxu0 %v930
      %950 = vmatprep.subr.bf16.mxu0 0
      %951 = vmatpush1.bf16.msra.mxu0 %v929
      %952 = vmatprep.subr.bf16.mxu0 0
      %953 = vmatpush1.bf16.msra.mxu0 %v928
      %954 = vmatprep.subr.bf16.mxu0 0
      %955 = vmatpush1.bf16.msra.mxu0 %v927
      %956 = vmatprep.subr.bf16.mxu0 0
      %957 = vmatpush1.bf16.msra.mxu0 %v926
      %958 = vmatprep.subr.bf16.mxu0 0
      %959 = vmatpush2.bf16.msra.mxu0 0
      %960 = vmatprep.subr.bf16.mxu0 0
      %961 = vmatpush2.bf16.msra.mxu0 0
      %962 = vmatprep.subr.bf16.mxu0 0
      %963 = vmatpush2.bf16.msra.mxu0 0
      %964 = vmatprep.subr.bf16.mxu0 0
      %965 = vmatpush2.bf16.msra.mxu0 0
      %966 = vmatprep.subr.bf16.mxu0 0
      %967 = vmatpush2.bf16.msra.mxu0 0
      %968 = vmatprep.subr.bf16.mxu0 0
      %969 = vmatpush2.bf16.msra.mxu0 0
      %970 = vmatprep.subr.bf16.mxu0 0
      %971 = vmatpush2.bf16.msra.mxu0 0
      %972 = vmatprep.subr.bf16.mxu0 0
      %973 = vmatpush2.bf16.msra.mxu0 0
      %974 = vmatprep.mubr.bf16.mxu0 0
      %975 = vmatmul.mubr.bf16.gmra.mxu0 %v869
      %v976 = vpop.f32.mrf.mxu0
      %v977 = vadd.f32 0.0, %v976
      %v978 = vpop.f32.mrf.mxu0
      %v979 = vpop.f32.mrf.mxu0
      %v980 = vadd.f32 0.0, %v979
      %v981 = vpop.f32.mrf.mxu0
      %982 = vmatprep.mubr.bf16.mxu0 0
      %983 = vmatmul.mubr.bf16.gmra.mxu0 %v870
      %v984 = vpop.f32.mrf.mxu0
      %v985 = vadd.f32 0.0, %v984
      %v986 = vpop.f32.mrf.mxu0
      %v987 = vpop.f32.mrf.mxu0
      %v988 = vadd.f32 0.0, %v987
      %v989 = vpop.f32.mrf.mxu0
      %990 = vmatprep.mubr.bf16.mxu0 0
      %991 = vmatmul.mubr.bf16.gmra.mxu0 %v871
      %v992 = vpop.f32.mrf.mxu0
      %v993 = vadd.f32 0.0, %v992
      %v994 = vpop.f32.mrf.mxu0
      %v995 = vpop.f32.mrf.mxu0
      %v996 = vadd.f32 0.0, %v995
      %v997 = vpop.f32.mrf.mxu0
      %998 = vmatprep.mubr.bf16.mxu0 0
      %999 = vmatmul.mubr.bf16.gmra.mxu0 %v872
      %v1000 = vpop.f32.mrf.mxu0
      %v1001 = vadd.f32 0.0, %v1000
      %v1002 = vpop.f32.mrf.mxu0
      %v1003 = vpop.f32.mrf.mxu0
      %v1004 = vadd.f32 0.0, %v1003
      %v1005 = vpop.f32.mrf.mxu0
      %1006 = vmatprep.mubr.bf16.mxu0 0
      %1007 = vmatmul.mubr.bf16.gmra.mxu0 %v873
      %v1008 = vpop.f32.mrf.mxu0
      %v1009 = vadd.f32 0.0, %v1008
      %v1010 = vpop.f32.mrf.mxu0
      %v1011 = vpop.f32.mrf.mxu0
      %v1012 = vadd.f32 0.0, %v1011
      %v1013 = vpop.f32.mrf.mxu0
      %1014 = vmatprep.mubr.bf16.mxu0 0
      %1015 = vmatmul.mubr.bf16.gmra.mxu0 %v874
      %v1016 = vpop.f32.mrf.mxu0
      %v1017 = vadd.f32 0.0, %v1016
      %v1018 = vpop.f32.mrf.mxu0
      %v1019 = vpop.f32.mrf.mxu0
      %v1020 = vadd.f32 0.0, %v1019
      %v1021 = vpop.f32.mrf.mxu0
      %1022 = vmatprep.mubr.bf16.mxu0 0
      %1023 = vmatmul.mubr.bf16.gmra.mxu0 %v875
      %v1024 = vpop.f32.mrf.mxu0
      %v1025 = vadd.f32 0.0, %v1024
      %v1026 = vpop.f32.mrf.mxu0
      %v1027 = vpop.f32.mrf.mxu0
      %v1028 = vadd.f32 0.0, %v1027
      %v1029 = vpop.f32.mrf.mxu0
      %1030 = vmatprep.mubr.bf16.mxu0 0
      %1031 = vmatmul.mubr.bf16.gmra.mxu0 %v876
      %v1032 = vpop.f32.mrf.mxu0
      %v1033 = vadd.f32 0.0, %v1032
      %v1034 = vpop.f32.mrf.mxu0
      %v1035 = vpop.f32.mrf.mxu0
      %v1036 = vadd.f32 0.0, %v1035
      %v1037 = vpop.f32.mrf.mxu0
      %1038 = vdwg.mxu0
      %v1039 = vadd.f32 %v837, %v977
      %v1040 = vadd.f32 %v838, %v980
      %v1041 = vadd.f32 %v839, %v985
      %v1042 = vadd.f32 %v840, %v988
      %v1043 = vadd.f32 %v841, %v993
      %v1044 = vadd.f32 %v842, %v996
      %v1045 = vadd.f32 %v843, %v1001
      %v1046 = vadd.f32 %v844, %v1004
      %v1047 = vadd.f32 %v845, %v1009
      %v1048 = vadd.f32 %v846, %v1012
      %v1049 = vadd.f32 %v847, %v1017
      %v1050 = vadd.f32 %v848, %v1020
      %v1051 = vadd.f32 %v849, %v1025
      %v1052 = vadd.f32 %v850, %v1028
      %v1053 = vadd.f32 %v851, %v1033
      %v1054 = vadd.f32 %v852, %v1036
      %v1055 = vld [vmem:[%s264 + $0x1] sm:$0xff]
      %v1056 = vld [vmem:[%s264 + $0x9] sm:$0xff]
      %v1057 = vld [vmem:[%s264 + $0x19] sm:$0xff]
      %v1058 = vld [vmem:[%s264 + $0x21] sm:$0xff]
      %v1059 = vld [vmem:[%s264 + $0x31] sm:$0xff]
      %v1060 = vld [vmem:[%s264 + $0x39] sm:$0xff]
      %v1061 = vld [vmem:[%s264 + $0x49] sm:$0xff]
      %v1062 = vld [vmem:[%s264 + $0x51] sm:$0xff]
      %v1063 = vld [vmem:[%s264 + $0x61] sm:$0xff]
      %v1064 = vld [vmem:[%s264 + $0x69] sm:$0xff]
      %v1065 = vld [vmem:[%s264 + $0x79] sm:$0xff]
      %v1066 = vld [vmem:[%s264 + $0x81] sm:$0xff]
      %v1067 = vld [vmem:[%s264 + $0x91] sm:$0xff]
      %v1068 = vld [vmem:[%s264 + $0x99] sm:$0xff]
      %v1069 = vld [vmem:[%s264 + $0xa9] sm:$0xff]
      %v1070 = vld [vmem:[%s264 + $0xb1] sm:$0xff]
      %v1071 = vpack.c.bf16 %v1056, %v1055
      %v1072 = vpack.c.bf16 %v1058, %v1057
      %v1073 = vpack.c.bf16 %v1060, %v1059
      %v1074 = vpack.c.bf16 %v1062, %v1061
      %v1075 = vpack.c.bf16 %v1064, %v1063
      %v1076 = vpack.c.bf16 %v1066, %v1065
      %v1077 = vpack.c.bf16 %v1068, %v1067
      %v1078 = vpack.c.bf16 %v1070, %v1069
      %s1079 = scalar_lea.vmem %s3, 256
      %v1080 = vld [vmem:[%s1079] sm:$0xf]
      %v1081 = vld [vmem:[%s1079 + $0x4] sm:$0xf]
      %v1082 = vld [vmem:[%s1079 + $0x8] sm:$0xf]
      %v1083 = vld [vmem:[%s1079 + $0xc] sm:$0xf]
      %v1084 = vld [vmem:[%s1079 + $0x10] sm:$0xf]
      %v1085 = vld [vmem:[%s1079 + $0x14] sm:$0xf]
      %v1086 = vld [vmem:[%s1079 + $0x18] sm:$0xf]
      %v1087 = vld [vmem:[%s1079 + $0x1c] sm:$0xf]
      %v1088 = vld [vmem:[%s1079 + $0x20] sm:$0xf]
      %v1089 = vld [vmem:[%s1079 + $0x24] sm:$0xf]
      %v1090 = vld [vmem:[%s1079 + $0x28] sm:$0xf]
      %v1091 = vld [vmem:[%s1079 + $0x2c] sm:$0xf]
      %v1092 = vld [vmem:[%s1079 + $0x30] sm:$0xf]
      %v1093 = vld [vmem:[%s1079 + $0x34] sm:$0xf]
      %v1094 = vld [vmem:[%s1079 + $0x38] sm:$0xf]
      %v1095 = vld [vmem:[%s1079 + $0x3c] sm:$0xf]
      %v1112 = vunpack.c.l.b16 %v1080
      %v1113 = vunpack.c.l.b16 %v1081
      %v1114 = vunpack.c.l.b16 %v1082
      %v1115 = vunpack.c.l.b16 %v1083
      %v1116 = vunpack.c.l.b16 %v1084
      %v1117 = vunpack.c.l.b16 %v1085
      %v1118 = vunpack.c.l.b16 %v1086
      %v1119 = vunpack.c.l.b16 %v1087
      %v1120 = vunpack.c.l.b16 %v1088
      %v1121 = vunpack.c.l.b16 %v1089
      %v1122 = vunpack.c.l.b16 %v1090
      %v1123 = vunpack.c.l.b16 %v1091
      %v1124 = vunpack.c.l.b16 %v1092
      %v1125 = vunpack.c.l.b16 %v1093
      %v1126 = vunpack.c.l.b16 %v1094
      %v1127 = vunpack.c.l.b16 %v1095
      %v1128 = vpack.c.b16 %v1113, %v1112
      %v1129 = vpack.c.b16 %v1115, %v1114
      %v1130 = vpack.c.b16 %v1117, %v1116
      %v1131 = vpack.c.b16 %v1119, %v1118
      %v1132 = vpack.c.b16 %v1121, %v1120
      %v1133 = vpack.c.b16 %v1123, %v1122
      %v1134 = vpack.c.b16 %v1125, %v1124
      %v1135 = vpack.c.b16 %v1127, %v1126
      %1144 = vmatprep.subr.bf16.mxu0 0
      %1145 = vmatpush1.bf16.msra.mxu0 %v1135
      %1146 = vmatprep.subr.bf16.mxu0 0
      %1147 = vmatpush1.bf16.msra.mxu0 %v1134
      %1148 = vmatprep.subr.bf16.mxu0 0
      %1149 = vmatpush1.bf16.msra.mxu0 %v1133
      %1150 = vmatprep.subr.bf16.mxu0 0
      %1151 = vmatpush1.bf16.msra.mxu0 %v1132
      %1152 = vmatprep.subr.bf16.mxu0 0
      %1153 = vmatpush1.bf16.msra.mxu0 %v1131
      %1154 = vmatprep.subr.bf16.mxu0 0
      %1155 = vmatpush1.bf16.msra.mxu0 %v1130
      %1156 = vmatprep.subr.bf16.mxu0 0
      %1157 = vmatpush1.bf16.msra.mxu0 %v1129
      %1158 = vmatprep.subr.bf16.mxu0 0
      %1159 = vmatpush1.bf16.msra.mxu0 %v1128
      %1160 = vmatprep.subr.bf16.mxu0 0
      %1161 = vmatpush2.bf16.msra.mxu0 0
      %1162 = vmatprep.subr.bf16.mxu0 0
      %1163 = vmatpush2.bf16.msra.mxu0 0
      %1164 = vmatprep.subr.bf16.mxu0 0
      %1165 = vmatpush2.bf16.msra.mxu0 0
      %1166 = vmatprep.subr.bf16.mxu0 0
      %1167 = vmatpush2.bf16.msra.mxu0 0
      %1168 = vmatprep.subr.bf16.mxu0 0
      %1169 = vmatpush2.bf16.msra.mxu0 0
      %1170 = vmatprep.subr.bf16.mxu0 0
      %1171 = vmatpush2.bf16.msra.mxu0 0
      %1172 = vmatprep.subr.bf16.mxu0 0
      %1173 = vmatpush2.bf16.msra.mxu0 0
      %1174 = vmatprep.subr.bf16.mxu0 0
      %1175 = vmatpush2.bf16.msra.mxu0 0
      %1176 = vmatprep.mubr.bf16.mxu0 0
      %1177 = vmatmul.mubr.bf16.gmra.mxu0 %v1071
      %v1178 = vpop.f32.mrf.mxu0
      %v1179 = vadd.f32 0.0, %v1178
      %v1180 = vpop.f32.mrf.mxu0
      %v1181 = vpop.f32.mrf.mxu0
      %v1182 = vadd.f32 0.0, %v1181
      %v1183 = vpop.f32.mrf.mxu0
      %1184 = vmatprep.mubr.bf16.mxu0 0
      %1185 = vmatmul.mubr.bf16.gmra.mxu0 %v1072
      %v1186 = vpop.f32.mrf.mxu0
      %v1187 = vadd.f32 0.0, %v1186
      %v1188 = vpop.f32.mrf.mxu0
      %v1189 = vpop.f32.mrf.mxu0
      %v1190 = vadd.f32 0.0, %v1189
      %v1191 = vpop.f32.mrf.mxu0
      %1192 = vmatprep.mubr.bf16.mxu0 0
      %1193 = vmatmul.mubr.bf16.gmra.mxu0 %v1073
      %v1194 = vpop.f32.mrf.mxu0
      %v1195 = vadd.f32 0.0, %v1194
      %v1196 = vpop.f32.mrf.mxu0
      %v1197 = vpop.f32.mrf.mxu0
      %v1198 = vadd.f32 0.0, %v1197
      %v1199 = vpop.f32.mrf.mxu0
      %1200 = vmatprep.mubr.bf16.mxu0 0
      %1201 = vmatmul.mubr.bf16.gmra.mxu0 %v1074
      %v1202 = vpop.f32.mrf.mxu0
      %v1203 = vadd.f32 0.0, %v1202
      %v1204 = vpop.f32.mrf.mxu0
      %v1205 = vpop.f32.mrf.mxu0
      %v1206 = vadd.f32 0.0, %v1205
      %v1207 = vpop.f32.mrf.mxu0
      %1208 = vmatprep.mubr.bf16.mxu0 0
      %1209 = vmatmul.mubr.bf16.gmra.mxu0 %v1075
      %v1210 = vpop.f32.mrf.mxu0
      %v1211 = vadd.f32 0.0, %v1210
      %v1212 = vpop.f32.mrf.mxu0
      %v1213 = vpop.f32.mrf.mxu0
      %v1214 = vadd.f32 0.0, %v1213
      %v1215 = vpop.f32.mrf.mxu0
      %1216 = vmatprep.mubr.bf16.mxu0 0
      %1217 = vmatmul.mubr.bf16.gmra.mxu0 %v1076
      %v1218 = vpop.f32.mrf.mxu0
      %v1219 = vadd.f32 0.0, %v1218
      %v1220 = vpop.f32.mrf.mxu0
      %v1221 = vpop.f32.mrf.mxu0
      %v1222 = vadd.f32 0.0, %v1221
      %v1223 = vpop.f32.mrf.mxu0
      %1224 = vmatprep.mubr.bf16.mxu0 0
      %1225 = vmatmul.mubr.bf16.gmra.mxu0 %v1077
      %v1226 = vpop.f32.mrf.mxu0
      %v1227 = vadd.f32 0.0, %v1226
      %v1228 = vpop.f32.mrf.mxu0
      %v1229 = vpop.f32.mrf.mxu0
      %v1230 = vadd.f32 0.0, %v1229
      %v1231 = vpop.f32.mrf.mxu0
      %1232 = vmatprep.mubr.bf16.mxu0 0
      %1233 = vmatmul.mubr.bf16.gmra.mxu0 %v1078
      %v1234 = vpop.f32.mrf.mxu0
      %v1235 = vadd.f32 0.0, %v1234
      %v1236 = vpop.f32.mrf.mxu0
      %v1237 = vpop.f32.mrf.mxu0
      %v1238 = vadd.f32 0.0, %v1237
      %v1239 = vpop.f32.mrf.mxu0
      %1240 = vdwg.mxu0
      %v1241 = vadd.f32 %v1039, %v1179
      %v1242 = vadd.f32 %v1040, %v1182
      %v1243 = vadd.f32 %v1041, %v1187
      %v1244 = vadd.f32 %v1042, %v1190
      %v1245 = vadd.f32 %v1043, %v1195
      %v1246 = vadd.f32 %v1044, %v1198
      %v1247 = vadd.f32 %v1045, %v1203
      %v1248 = vadd.f32 %v1046, %v1206
      %v1249 = vadd.f32 %v1047, %v1211
      %v1250 = vadd.f32 %v1048, %v1214
      %v1251 = vadd.f32 %v1049, %v1219
      %v1252 = vadd.f32 %v1050, %v1222
      %v1253 = vadd.f32 %v1051, %v1227
      %v1254 = vadd.f32 %v1052, %v1230
      %v1255 = vadd.f32 %v1053, %v1235
      %v1256 = vadd.f32 %v1054, %v1238
      %v1257 = vld [vmem:[%s264 + $0x2] sm:$0xff]
      %v1258 = vld [vmem:[%s264 + $0xa] sm:$0xff]
      %v1259 = vld [vmem:[%s264 + $0x1a] sm:$0xff]
      %v1260 = vld [vmem:[%s264 + $0x22] sm:$0xff]
      %v1261 = vld [vmem:[%s264 + $0x32] sm:$0xff]
      %v1262 = vld [vmem:[%s264 + $0x3a] sm:$0xff]
      %v1263 = vld [vmem:[%s264 + $0x4a] sm:$0xff]
      %v1264 = vld [vmem:[%s264 + $0x52] sm:$0xff]
      %v1265 = vld [vmem:[%s264 + $0x62] sm:$0xff]
      %v1266 = vld [vmem:[%s264 + $0x6a] sm:$0xff]
      %v1267 = vld [vmem:[%s264 + $0x7a] sm:$0xff]
      %v1268 = vld [vmem:[%s264 + $0x82] sm:$0xff]
      %v1269 = vld [vmem:[%s264 + $0x92] sm:$0xff]
      %v1270 = vld [vmem:[%s264 + $0x9a] sm:$0xff]
      %v1271 = vld [vmem:[%s264 + $0xaa] sm:$0xff]
      %v1272 = vld [vmem:[%s264 + $0xb2] sm:$0xff]
      %v1273 = vpack.c.bf16 %v1258, %v1257
      %v1274 = vpack.c.bf16 %v1260, %v1259
      %v1275 = vpack.c.bf16 %v1262, %v1261
      %v1276 = vpack.c.bf16 %v1264, %v1263
      %v1277 = vpack.c.bf16 %v1266, %v1265
      %v1278 = vpack.c.bf16 %v1268, %v1267
      %v1279 = vpack.c.bf16 %v1270, %v1269
      %v1280 = vpack.c.bf16 %v1272, %v1271
      %s1281 = scalar_lea.vmem %s3, 320
      %v1282 = vld [vmem:[%s1281] sm:$0xf]
      %v1283 = vld [vmem:[%s1281 + $0x4] sm:$0xf]
      %v1284 = vld [vmem:[%s1281 + $0x8] sm:$0xf]
      %v1285 = vld [vmem:[%s1281 + $0xc] sm:$0xf]
      %v1286 = vld [vmem:[%s1281 + $0x10] sm:$0xf]
      %v1287 = vld [vmem:[%s1281 + $0x14] sm:$0xf]
      %v1288 = vld [vmem:[%s1281 + $0x18] sm:$0xf]
      %v1289 = vld [vmem:[%s1281 + $0x1c] sm:$0xf]
      %v1290 = vld [vmem:[%s1281 + $0x20] sm:$0xf]
      %v1291 = vld [vmem:[%s1281 + $0x24] sm:$0xf]
      %v1292 = vld [vmem:[%s1281 + $0x28] sm:$0xf]
      %v1293 = vld [vmem:[%s1281 + $0x2c] sm:$0xf]
      %v1294 = vld [vmem:[%s1281 + $0x30] sm:$0xf]
      %v1295 = vld [vmem:[%s1281 + $0x34] sm:$0xf]
      %v1296 = vld [vmem:[%s1281 + $0x38] sm:$0xf]
      %v1297 = vld [vmem:[%s1281 + $0x3c] sm:$0xf]
      %v1314 = vunpack.c.l.b16 %v1282
      %v1315 = vunpack.c.l.b16 %v1283
      %v1316 = vunpack.c.l.b16 %v1284
      %v1317 = vunpack.c.l.b16 %v1285
      %v1318 = vunpack.c.l.b16 %v1286
      %v1319 = vunpack.c.l.b16 %v1287
      %v1320 = vunpack.c.l.b16 %v1288
      %v1321 = vunpack.c.l.b16 %v1289
      %v1322 = vunpack.c.l.b16 %v1290
      %v1323 = vunpack.c.l.b16 %v1291
      %v1324 = vunpack.c.l.b16 %v1292
      %v1325 = vunpack.c.l.b16 %v1293
      %v1326 = vunpack.c.l.b16 %v1294
      %v1327 = vunpack.c.l.b16 %v1295
      %v1328 = vunpack.c.l.b16 %v1296
      %v1329 = vunpack.c.l.b16 %v1297
      %v1330 = vpack.c.b16 %v1315, %v1314
      %v1331 = vpack.c.b16 %v1317, %v1316
      %v1332 = vpack.c.b16 %v1319, %v1318
      %v1333 = vpack.c.b16 %v1321, %v1320
      %v1334 = vpack.c.b16 %v1323, %v1322
      %v1335 = vpack.c.b16 %v1325, %v1324
      %v1336 = vpack.c.b16 %v1327, %v1326
      %v1337 = vpack.c.b16 %v1329, %v1328
      %1346 = vmatprep.subr.bf16.mxu0 0
      %1347 = vmatpush1.bf16.msra.mxu0 %v1337
      %1348 = vmatprep.subr.bf16.mxu0 0
      %1349 = vmatpush1.bf16.msra.mxu0 %v1336
      %1350 = vmatprep.subr.bf16.mxu0 0
      %1351 = vmatpush1.bf16.msra.mxu0 %v1335
      %1352 = vmatprep.subr.bf16.mxu0 0
      %1353 = vmatpush1.bf16.msra.mxu0 %v1334
      %1354 = vmatprep.subr.bf16.mxu0 0
      %1355 = vmatpush1.bf16.msra.mxu0 %v1333
      %1356 = vmatprep.subr.bf16.mxu0 0
      %1357 = vmatpush1.bf16.msra.mxu0 %v1332
      %1358 = vmatprep.subr.bf16.mxu0 0
      %1359 = vmatpush1.bf16.msra.mxu0 %v1331
      %1360 = vmatprep.subr.bf16.mxu0 0
      %1361 = vmatpush1.bf16.msra.mxu0 %v1330
      %1362 = vmatprep.subr.bf16.mxu0 0
      %1363 = vmatpush2.bf16.msra.mxu0 0
      %1364 = vmatprep.subr.bf16.mxu0 0
      %1365 = vmatpush2.bf16.msra.mxu0 0
      %1366 = vmatprep.subr.bf16.mxu0 0
      %1367 = vmatpush2.bf16.msra.mxu0 0
      %1368 = vmatprep.subr.bf16.mxu0 0
      %1369 = vmatpush2.bf16.msra.mxu0 0
      %1370 = vmatprep.subr.bf16.mxu0 0
      %1371 = vmatpush2.bf16.msra.mxu0 0
      %1372 = vmatprep.subr.bf16.mxu0 0
      %1373 = vmatpush2.bf16.msra.mxu0 0
      %1374 = vmatprep.subr.bf16.mxu0 0
      %1375 = vmatpush2.bf16.msra.mxu0 0
      %1376 = vmatprep.subr.bf16.mxu0 0
      %1377 = vmatpush2.bf16.msra.mxu0 0
      %1378 = vmatprep.mubr.bf16.mxu0 0
      %1379 = vmatmul.mubr.bf16.gmra.mxu0 %v1273
      %v1380 = vpop.f32.mrf.mxu0
      %v1381 = vadd.f32 0.0, %v1380
      %v1382 = vpop.f32.mrf.mxu0
      %v1383 = vpop.f32.mrf.mxu0
      %v1384 = vadd.f32 0.0, %v1383
      %v1385 = vpop.f32.mrf.mxu0
      %1386 = vmatprep.mubr.bf16.mxu0 0
      %1387 = vmatmul.mubr.bf16.gmra.mxu0 %v1274
      %v1388 = vpop.f32.mrf.mxu0
      %v1389 = vadd.f32 0.0, %v1388
      %v1390 = vpop.f32.mrf.mxu0
      %v1391 = vpop.f32.mrf.mxu0
      %v1392 = vadd.f32 0.0, %v1391
      %v1393 = vpop.f32.mrf.mxu0
      %1394 = vmatprep.mubr.bf16.mxu0 0
      %1395 = vmatmul.mubr.bf16.gmra.mxu0 %v1275
      %v1396 = vpop.f32.mrf.mxu0
      %v1397 = vadd.f32 0.0, %v1396
      %v1398 = vpop.f32.mrf.mxu0
      %v1399 = vpop.f32.mrf.mxu0
      %v1400 = vadd.f32 0.0, %v1399
      %v1401 = vpop.f32.mrf.mxu0
      %1402 = vmatprep.mubr.bf16.mxu0 0
      %1403 = vmatmul.mubr.bf16.gmra.mxu0 %v1276
      %v1404 = vpop.f32.mrf.mxu0
      %v1405 = vadd.f32 0.0, %v1404
      %v1406 = vpop.f32.mrf.mxu0
      %v1407 = vpop.f32.mrf.mxu0
      %v1408 = vadd.f32 0.0, %v1407
      %v1409 = vpop.f32.mrf.mxu0
      %1410 = vmatprep.mubr.bf16.mxu0 0
      %1411 = vmatmul.mubr.bf16.gmra.mxu0 %v1277
      %v1412 = vpop.f32.mrf.mxu0
      %v1413 = vadd.f32 0.0, %v1412
      %v1414 = vpop.f32.mrf.mxu0
      %v1415 = vpop.f32.mrf.mxu0
      %v1416 = vadd.f32 0.0, %v1415
      %v1417 = vpop.f32.mrf.mxu0
      %1418 = vmatprep.mubr.bf16.mxu0 0
      %1419 = vmatmul.mubr.bf16.gmra.mxu0 %v1278
      %v1420 = vpop.f32.mrf.mxu0
      %v1421 = vadd.f32 0.0, %v1420
      %v1422 = vpop.f32.mrf.mxu0
      %v1423 = vpop.f32.mrf.mxu0
      %v1424 = vadd.f32 0.0, %v1423
      %v1425 = vpop.f32.mrf.mxu0
      %1426 = vmatprep.mubr.bf16.mxu0 0
      %1427 = vmatmul.mubr.bf16.gmra.mxu0 %v1279
      %v1428 = vpop.f32.mrf.mxu0
      %v1429 = vadd.f32 0.0, %v1428
      %v1430 = vpop.f32.mrf.mxu0
      %v1431 = vpop.f32.mrf.mxu0
      %v1432 = vadd.f32 0.0, %v1431
      %v1433 = vpop.f32.mrf.mxu0
      %1434 = vmatprep.mubr.bf16.mxu0 0
      %1435 = vmatmul.mubr.bf16.gmra.mxu0 %v1280
      %v1436 = vpop.f32.mrf.mxu0
      %v1437 = vadd.f32 0.0, %v1436
      %v1438 = vpop.f32.mrf.mxu0
      %v1439 = vpop.f32.mrf.mxu0
      %v1440 = vadd.f32 0.0, %v1439
      %v1441 = vpop.f32.mrf.mxu0
      %1442 = vdwg.mxu0
      %v1443 = vadd.f32 %v1241, %v1381
      %v1444 = vadd.f32 %v1242, %v1384
      %v1445 = vadd.f32 %v1243, %v1389
      %v1446 = vadd.f32 %v1244, %v1392
      %v1447 = vadd.f32 %v1245, %v1397
      %v1448 = vadd.f32 %v1246, %v1400
      %v1449 = vadd.f32 %v1247, %v1405
      %v1450 = vadd.f32 %v1248, %v1408
      %v1451 = vadd.f32 %v1249, %v1413
      %v1452 = vadd.f32 %v1250, %v1416
      %v1453 = vadd.f32 %v1251, %v1421
      %v1454 = vadd.f32 %v1252, %v1424
      %v1455 = vadd.f32 %v1253, %v1429
      %v1456 = vadd.f32 %v1254, %v1432
      %v1457 = vadd.f32 %v1255, %v1437
      %v1458 = vadd.f32 %v1256, %v1440
      %v1459 = vld [vmem:[%s271] sm:$0xff]
      %v1460 = vld [vmem:[%s271 + $0x8] sm:$0xff]
      %v1461 = vld [vmem:[%s271 + $0x18] sm:$0xff]
      %v1462 = vld [vmem:[%s271 + $0x20] sm:$0xff]
      %v1463 = vld [vmem:[%s271 + $0x30] sm:$0xff]
      %v1464 = vld [vmem:[%s271 + $0x38] sm:$0xff]
      %v1465 = vld [vmem:[%s271 + $0x48] sm:$0xff]
      %v1466 = vld [vmem:[%s271 + $0x50] sm:$0xff]
      %v1467 = vld [vmem:[%s271 + $0x60] sm:$0xff]
      %v1468 = vld [vmem:[%s271 + $0x68] sm:$0xff]
      %v1469 = vld [vmem:[%s271 + $0x78] sm:$0xff]
      %v1470 = vld [vmem:[%s271 + $0x80] sm:$0xff]
      %v1471 = vld [vmem:[%s271 + $0x90] sm:$0xff]
      %v1472 = vld [vmem:[%s271 + $0x98] sm:$0xff]
      %v1473 = vld [vmem:[%s271 + $0xa8] sm:$0xff]
      %v1474 = vld [vmem:[%s271 + $0xb0] sm:$0xff]
      %v1475 = vpack.c.bf16 %v1460, %v1459
      %v1476 = vpack.c.bf16 %v1462, %v1461
      %v1477 = vpack.c.bf16 %v1464, %v1463
      %v1478 = vpack.c.bf16 %v1466, %v1465
      %v1479 = vpack.c.bf16 %v1468, %v1467
      %v1480 = vpack.c.bf16 %v1470, %v1469
      %v1481 = vpack.c.bf16 %v1472, %v1471
      %v1482 = vpack.c.bf16 %v1474, %v1473
      %s1483 = scalar_lea.vmem %s3, 384
      %v1484 = vld [vmem:[%s1483] sm:$0xf]
      %v1485 = vld [vmem:[%s1483 + $0x4] sm:$0xf]
      %v1486 = vld [vmem:[%s1483 + $0x8] sm:$0xf]
      %v1487 = vld [vmem:[%s1483 + $0xc] sm:$0xf]
      %v1488 = vld [vmem:[%s1483 + $0x10] sm:$0xf]
      %v1489 = vld [vmem:[%s1483 + $0x14] sm:$0xf]
      %v1490 = vld [vmem:[%s1483 + $0x18] sm:$0xf]
      %v1491 = vld [vmem:[%s1483 + $0x1c] sm:$0xf]
      %v1492 = vld [vmem:[%s1483 + $0x20] sm:$0xf]
      %v1493 = vld [vmem:[%s1483 + $0x24] sm:$0xf]
      %v1494 = vld [vmem:[%s1483 + $0x28] sm:$0xf]
      %v1495 = vld [vmem:[%s1483 + $0x2c] sm:$0xf]
      %v1496 = vld [vmem:[%s1483 + $0x30] sm:$0xf]
      %v1497 = vld [vmem:[%s1483 + $0x34] sm:$0xf]
      %v1498 = vld [vmem:[%s1483 + $0x38] sm:$0xf]
      %v1499 = vld [vmem:[%s1483 + $0x3c] sm:$0xf]
      %v1516 = vunpack.c.l.b16 %v1484
      %v1517 = vunpack.c.l.b16 %v1485
      %v1518 = vunpack.c.l.b16 %v1486
      %v1519 = vunpack.c.l.b16 %v1487
      %v1520 = vunpack.c.l.b16 %v1488
      %v1521 = vunpack.c.l.b16 %v1489
      %v1522 = vunpack.c.l.b16 %v1490
      %v1523 = vunpack.c.l.b16 %v1491
      %v1524 = vunpack.c.l.b16 %v1492
      %v1525 = vunpack.c.l.b16 %v1493
      %v1526 = vunpack.c.l.b16 %v1494
      %v1527 = vunpack.c.l.b16 %v1495
      %v1528 = vunpack.c.l.b16 %v1496
      %v1529 = vunpack.c.l.b16 %v1497
      %v1530 = vunpack.c.l.b16 %v1498
      %v1531 = vunpack.c.l.b16 %v1499
      %v1532 = vpack.c.b16 %v1517, %v1516
      %v1533 = vpack.c.b16 %v1519, %v1518
      %v1534 = vpack.c.b16 %v1521, %v1520
      %v1535 = vpack.c.b16 %v1523, %v1522
      %v1536 = vpack.c.b16 %v1525, %v1524
      %v1537 = vpack.c.b16 %v1527, %v1526
      %v1538 = vpack.c.b16 %v1529, %v1528
      %v1539 = vpack.c.b16 %v1531, %v1530
      %1548 = vmatprep.subr.bf16.mxu0 0
      %1549 = vmatpush1.bf16.msra.mxu0 %v1539
      %1550 = vmatprep.subr.bf16.mxu0 0
      %1551 = vmatpush1.bf16.msra.mxu0 %v1538
      %1552 = vmatprep.subr.bf16.mxu0 0
      %1553 = vmatpush1.bf16.msra.mxu0 %v1537
      %1554 = vmatprep.subr.bf16.mxu0 0
      %1555 = vmatpush1.bf16.msra.mxu0 %v1536
      %1556 = vmatprep.subr.bf16.mxu0 0
      %1557 = vmatpush1.bf16.msra.mxu0 %v1535
      %1558 = vmatprep.subr.bf16.mxu0 0
      %1559 = vmatpush1.bf16.msra.mxu0 %v1534
      %1560 = vmatprep.subr.bf16.mxu0 0
      %1561 = vmatpush1.bf16.msra.mxu0 %v1533
      %1562 = vmatprep.subr.bf16.mxu0 0
      %1563 = vmatpush1.bf16.msra.mxu0 %v1532
      %1564 = vmatprep.subr.bf16.mxu0 0
      %1565 = vmatpush2.bf16.msra.mxu0 0
      %1566 = vmatprep.subr.bf16.mxu0 0
      %1567 = vmatpush2.bf16.msra.mxu0 0
      %1568 = vmatprep.subr.bf16.mxu0 0
      %1569 = vmatpush2.bf16.msra.mxu0 0
      %1570 = vmatprep.subr.bf16.mxu0 0
      %1571 = vmatpush2.bf16.msra.mxu0 0
      %1572 = vmatprep.subr.bf16.mxu0 0
      %1573 = vmatpush2.bf16.msra.mxu0 0
      %1574 = vmatprep.subr.bf16.mxu0 0
      %1575 = vmatpush2.bf16.msra.mxu0 0
      %1576 = vmatprep.subr.bf16.mxu0 0
      %1577 = vmatpush2.bf16.msra.mxu0 0
      %1578 = vmatprep.subr.bf16.mxu0 0
      %1579 = vmatpush2.bf16.msra.mxu0 0
      %1580 = vmatprep.mubr.bf16.mxu0 0
      %1581 = vmatmul.mubr.bf16.gmra.mxu0 %v1475
      %v1582 = vpop.f32.mrf.mxu0
      %v1583 = vadd.f32 0.0, %v1582
      %v1584 = vpop.f32.mrf.mxu0
      %v1585 = vpop.f32.mrf.mxu0
      %v1586 = vadd.f32 0.0, %v1585
      %v1587 = vpop.f32.mrf.mxu0
      %1588 = vmatprep.mubr.bf16.mxu0 0
      %1589 = vmatmul.mubr.bf16.gmra.mxu0 %v1476
      %v1590 = vpop.f32.mrf.mxu0
      %v1591 = vadd.f32 0.0, %v1590
      %v1592 = vpop.f32.mrf.mxu0
      %v1593 = vpop.f32.mrf.mxu0
      %v1594 = vadd.f32 0.0, %v1593
      %v1595 = vpop.f32.mrf.mxu0
      %1596 = vmatprep.mubr.bf16.mxu0 0
      %1597 = vmatmul.mubr.bf16.gmra.mxu0 %v1477
      %v1598 = vpop.f32.mrf.mxu0
      %v1599 = vadd.f32 0.0, %v1598
      %v1600 = vpop.f32.mrf.mxu0
      %v1601 = vpop.f32.mrf.mxu0
      %v1602 = vadd.f32 0.0, %v1601
      %v1603 = vpop.f32.mrf.mxu0
      %1604 = vmatprep.mubr.bf16.mxu0 0
      %1605 = vmatmul.mubr.bf16.gmra.mxu0 %v1478
      %v1606 = vpop.f32.mrf.mxu0
      %v1607 = vadd.f32 0.0, %v1606
      %v1608 = vpop.f32.mrf.mxu0
      %v1609 = vpop.f32.mrf.mxu0
      %v1610 = vadd.f32 0.0, %v1609
      %v1611 = vpop.f32.mrf.mxu0
      %1612 = vmatprep.mubr.bf16.mxu0 0
      %1613 = vmatmul.mubr.bf16.gmra.mxu0 %v1479
      %v1614 = vpop.f32.mrf.mxu0
      %v1615 = vadd.f32 0.0, %v1614
      %v1616 = vpop.f32.mrf.mxu0
      %v1617 = vpop.f32.mrf.mxu0
      %v1618 = vadd.f32 0.0, %v1617
      %v1619 = vpop.f32.mrf.mxu0
      %1620 = vmatprep.mubr.bf16.mxu0 0
      %1621 = vmatmul.mubr.bf16.gmra.mxu0 %v1480
      %v1622 = vpop.f32.mrf.mxu0
      %v1623 = vadd.f32 0.0, %v1622
      %v1624 = vpop.f32.mrf.mxu0
      %v1625 = vpop.f32.mrf.mxu0
      %v1626 = vadd.f32 0.0, %v1625
      %v1627 = vpop.f32.mrf.mxu0
      %1628 = vmatprep.mubr.bf16.mxu0 0
      %1629 = vmatmul.mubr.bf16.gmra.mxu0 %v1481
      %v1630 = vpop.f32.mrf.mxu0
      %v1631 = vadd.f32 0.0, %v1630
      %v1632 = vpop.f32.mrf.mxu0
      %v1633 = vpop.f32.mrf.mxu0
      %v1634 = vadd.f32 0.0, %v1633
      %v1635 = vpop.f32.mrf.mxu0
      %1636 = vmatprep.mubr.bf16.mxu0 0
      %1637 = vmatmul.mubr.bf16.gmra.mxu0 %v1482
      %v1638 = vpop.f32.mrf.mxu0
      %v1639 = vadd.f32 0.0, %v1638
      %v1640 = vpop.f32.mrf.mxu0
      %v1641 = vpop.f32.mrf.mxu0
      %v1642 = vadd.f32 0.0, %v1641
      %v1643 = vpop.f32.mrf.mxu0
      %1644 = vdwg.mxu0
      %v1645 = vadd.f32 %v1443, %v1583
      %v1646 = vadd.f32 %v1444, %v1586
      %v1647 = vadd.f32 %v1445, %v1591
      %v1648 = vadd.f32 %v1446, %v1594
      %v1649 = vadd.f32 %v1447, %v1599
      %v1650 = vadd.f32 %v1448, %v1602
      %v1651 = vadd.f32 %v1449, %v1607
      %v1652 = vadd.f32 %v1450, %v1610
      %v1653 = vadd.f32 %v1451, %v1615
      %v1654 = vadd.f32 %v1452, %v1618
      %v1655 = vadd.f32 %v1453, %v1623
      %v1656 = vadd.f32 %v1454, %v1626
      %v1657 = vadd.f32 %v1455, %v1631
      %v1658 = vadd.f32 %v1456, %v1634
      %v1659 = vadd.f32 %v1457, %v1639
      %v1660 = vadd.f32 %v1458, %v1642
      %v1661 = vld [vmem:[%s271 + $0x1] sm:$0xff]
      %v1662 = vld [vmem:[%s271 + $0x9] sm:$0xff]
      %v1663 = vld [vmem:[%s271 + $0x19] sm:$0xff]
      %v1664 = vld [vmem:[%s271 + $0x21] sm:$0xff]
      %v1665 = vld [vmem:[%s271 + $0x31] sm:$0xff]
      %v1666 = vld [vmem:[%s271 + $0x39] sm:$0xff]
      %v1667 = vld [vmem:[%s271 + $0x49] sm:$0xff]
      %v1668 = vld [vmem:[%s271 + $0x51] sm:$0xff]
      %v1669 = vld [vmem:[%s271 + $0x61] sm:$0xff]
      %v1670 = vld [vmem:[%s271 + $0x69] sm:$0xff]
      %v1671 = vld [vmem:[%s271 + $0x79] sm:$0xff]
      %v1672 = vld [vmem:[%s271 + $0x81] sm:$0xff]
      %v1673 = vld [vmem:[%s271 + $0x91] sm:$0xff]
      %v1674 = vld [vmem:[%s271 + $0x99] sm:$0xff]
      %v1675 = vld [vmem:[%s271 + $0xa9] sm:$0xff]
      %v1676 = vld [vmem:[%s271 + $0xb1] sm:$0xff]
      %v1677 = vpack.c.bf16 %v1662, %v1661
      %v1678 = vpack.c.bf16 %v1664, %v1663
      %v1679 = vpack.c.bf16 %v1666, %v1665
      %v1680 = vpack.c.bf16 %v1668, %v1667
      %v1681 = vpack.c.bf16 %v1670, %v1669
      %v1682 = vpack.c.bf16 %v1672, %v1671
      %v1683 = vpack.c.bf16 %v1674, %v1673
      %v1684 = vpack.c.bf16 %v1676, %v1675
      %s1685 = scalar_lea.vmem %s3, 448
      %v1686 = vld [vmem:[%s1685] sm:$0xf]
      %v1687 = vld [vmem:[%s1685 + $0x4] sm:$0xf]
      %v1688 = vld [vmem:[%s1685 + $0x8] sm:$0xf]
      %v1689 = vld [vmem:[%s1685 + $0xc] sm:$0xf]
      %v1690 = vld [vmem:[%s1685 + $0x10] sm:$0xf]
      %v1691 = vld [vmem:[%s1685 + $0x14] sm:$0xf]
      %v1692 = vld [vmem:[%s1685 + $0x18] sm:$0xf]
      %v1693 = vld [vmem:[%s1685 + $0x1c] sm:$0xf]
      %v1694 = vld [vmem:[%s1685 + $0x20] sm:$0xf]
      %v1695 = vld [vmem:[%s1685 + $0x24] sm:$0xf]
      %v1696 = vld [vmem:[%s1685 + $0x28] sm:$0xf]
      %v1697 = vld [vmem:[%s1685 + $0x2c] sm:$0xf]
      %v1698 = vld [vmem:[%s1685 + $0x30] sm:$0xf]
      %v1699 = vld [vmem:[%s1685 + $0x34] sm:$0xf]
      %v1700 = vld [vmem:[%s1685 + $0x38] sm:$0xf]
      %v1701 = vld [vmem:[%s1685 + $0x3c] sm:$0xf]
      %v1718 = vunpack.c.l.b16 %v1686
      %v1719 = vunpack.c.l.b16 %v1687
      %v1720 = vunpack.c.l.b16 %v1688
      %v1721 = vunpack.c.l.b16 %v1689
      %v1722 = vunpack.c.l.b16 %v1690
      %v1723 = vunpack.c.l.b16 %v1691
      %v1724 = vunpack.c.l.b16 %v1692
      %v1725 = vunpack.c.l.b16 %v1693
      %v1726 = vunpack.c.l.b16 %v1694
      %v1727 = vunpack.c.l.b16 %v1695
      %v1728 = vunpack.c.l.b16 %v1696
      %v1729 = vunpack.c.l.b16 %v1697
      %v1730 = vunpack.c.l.b16 %v1698
      %v1731 = vunpack.c.l.b16 %v1699
      %v1732 = vunpack.c.l.b16 %v1700
      %v1733 = vunpack.c.l.b16 %v1701
      %v1734 = vpack.c.b16 %v1719, %v1718
      %v1735 = vpack.c.b16 %v1721, %v1720
      %v1736 = vpack.c.b16 %v1723, %v1722
      %v1737 = vpack.c.b16 %v1725, %v1724
      %v1738 = vpack.c.b16 %v1727, %v1726
      %v1739 = vpack.c.b16 %v1729, %v1728
      %v1740 = vpack.c.b16 %v1731, %v1730
      %v1741 = vpack.c.b16 %v1733, %v1732
      %1750 = vmatprep.subr.bf16.mxu0 0
      %1751 = vmatpush1.bf16.msra.mxu0 %v1741
      %1752 = vmatprep.subr.bf16.mxu0 0
      %1753 = vmatpush1.bf16.msra.mxu0 %v1740
      %1754 = vmatprep.subr.bf16.mxu0 0
      %1755 = vmatpush1.bf16.msra.mxu0 %v1739
      %1756 = vmatprep.subr.bf16.mxu0 0
      %1757 = vmatpush1.bf16.msra.mxu0 %v1738
      %1758 = vmatprep.subr.bf16.mxu0 0
      %1759 = vmatpush1.bf16.msra.mxu0 %v1737
      %1760 = vmatprep.subr.bf16.mxu0 0
      %1761 = vmatpush1.bf16.msra.mxu0 %v1736
      %1762 = vmatprep.subr.bf16.mxu0 0
      %1763 = vmatpush1.bf16.msra.mxu0 %v1735
      %1764 = vmatprep.subr.bf16.mxu0 0
      %1765 = vmatpush1.bf16.msra.mxu0 %v1734
      %1766 = vmatprep.subr.bf16.mxu0 0
      %1767 = vmatpush2.bf16.msra.mxu0 0
      %1768 = vmatprep.subr.bf16.mxu0 0
      %1769 = vmatpush2.bf16.msra.mxu0 0
      %1770 = vmatprep.subr.bf16.mxu0 0
      %1771 = vmatpush2.bf16.msra.mxu0 0
      %1772 = vmatprep.subr.bf16.mxu0 0
      %1773 = vmatpush2.bf16.msra.mxu0 0
      %1774 = vmatprep.subr.bf16.mxu0 0
      %1775 = vmatpush2.bf16.msra.mxu0 0
      %1776 = vmatprep.subr.bf16.mxu0 0
      %1777 = vmatpush2.bf16.msra.mxu0 0
      %1778 = vmatprep.subr.bf16.mxu0 0
      %1779 = vmatpush2.bf16.msra.mxu0 0
      %1780 = vmatprep.subr.bf16.mxu0 0
      %1781 = vmatpush2.bf16.msra.mxu0 0
      %1782 = vmatprep.mubr.bf16.mxu0 0
      %1783 = vmatmul.mubr.bf16.gmra.mxu0 %v1677
      %v1784 = vpop.f32.mrf.mxu0
      %v1785 = vadd.f32 0.0, %v1784
      %v1786 = vpop.f32.mrf.mxu0
      %v1787 = vpop.f32.mrf.mxu0
      %v1788 = vadd.f32 0.0, %v1787
      %v1789 = vpop.f32.mrf.mxu0
      %1790 = vmatprep.mubr.bf16.mxu0 0
      %1791 = vmatmul.mubr.bf16.gmra.mxu0 %v1678
      %v1792 = vpop.f32.mrf.mxu0
      %v1793 = vadd.f32 0.0, %v1792
      %v1794 = vpop.f32.mrf.mxu0
      %v1795 = vpop.f32.mrf.mxu0
      %v1796 = vadd.f32 0.0, %v1795
      %v1797 = vpop.f32.mrf.mxu0
      %1798 = vmatprep.mubr.bf16.mxu0 0
      %1799 = vmatmul.mubr.bf16.gmra.mxu0 %v1679
      %v1800 = vpop.f32.mrf.mxu0
      %v1801 = vadd.f32 0.0, %v1800
      %v1802 = vpop.f32.mrf.mxu0
      %v1803 = vpop.f32.mrf.mxu0
      %v1804 = vadd.f32 0.0, %v1803
      %v1805 = vpop.f32.mrf.mxu0
      %1806 = vmatprep.mubr.bf16.mxu0 0
      %1807 = vmatmul.mubr.bf16.gmra.mxu0 %v1680
      %v1808 = vpop.f32.mrf.mxu0
      %v1809 = vadd.f32 0.0, %v1808
      %v1810 = vpop.f32.mrf.mxu0
      %v1811 = vpop.f32.mrf.mxu0
      %v1812 = vadd.f32 0.0, %v1811
      %v1813 = vpop.f32.mrf.mxu0
      %1814 = vmatprep.mubr.bf16.mxu0 0
      %1815 = vmatmul.mubr.bf16.gmra.mxu0 %v1681
      %v1816 = vpop.f32.mrf.mxu0
      %v1817 = vadd.f32 0.0, %v1816
      %v1818 = vpop.f32.mrf.mxu0
      %v1819 = vpop.f32.mrf.mxu0
      %v1820 = vadd.f32 0.0, %v1819
      %v1821 = vpop.f32.mrf.mxu0
      %1822 = vmatprep.mubr.bf16.mxu0 0
      %1823 = vmatmul.mubr.bf16.gmra.mxu0 %v1682
      %v1824 = vpop.f32.mrf.mxu0
      %v1825 = vadd.f32 0.0, %v1824
      %v1826 = vpop.f32.mrf.mxu0
      %v1827 = vpop.f32.mrf.mxu0
      %v1828 = vadd.f32 0.0, %v1827
      %v1829 = vpop.f32.mrf.mxu0
      %1830 = vmatprep.mubr.bf16.mxu0 0
      %1831 = vmatmul.mubr.bf16.gmra.mxu0 %v1683
      %v1832 = vpop.f32.mrf.mxu0
      %v1833 = vadd.f32 0.0, %v1832
      %v1834 = vpop.f32.mrf.mxu0
      %v1835 = vpop.f32.mrf.mxu0
      %v1836 = vadd.f32 0.0, %v1835
      %v1837 = vpop.f32.mrf.mxu0
      %1838 = vmatprep.mubr.bf16.mxu0 0
      %1839 = vmatmul.mubr.bf16.gmra.mxu0 %v1684
      %v1840 = vpop.f32.mrf.mxu0
      %v1841 = vadd.f32 0.0, %v1840
      %v1842 = vpop.f32.mrf.mxu0
      %v1843 = vpop.f32.mrf.mxu0
      %v1844 = vadd.f32 0.0, %v1843
      %v1845 = vpop.f32.mrf.mxu0
      %1846 = vdwg.mxu0
      %v1847 = vadd.f32 %v1645, %v1785
      %v1848 = vadd.f32 %v1646, %v1788
      %v1849 = vadd.f32 %v1647, %v1793
      %v1850 = vadd.f32 %v1648, %v1796
      %v1851 = vadd.f32 %v1649, %v1801
      %v1852 = vadd.f32 %v1650, %v1804
      %v1853 = vadd.f32 %v1651, %v1809
      %v1854 = vadd.f32 %v1652, %v1812
      %v1855 = vadd.f32 %v1653, %v1817
      %v1856 = vadd.f32 %v1654, %v1820
      %v1857 = vadd.f32 %v1655, %v1825
      %v1858 = vadd.f32 %v1656, %v1828
      %v1859 = vadd.f32 %v1657, %v1833
      %v1860 = vadd.f32 %v1658, %v1836
      %v1861 = vadd.f32 %v1659, %v1841
      %v1862 = vadd.f32 %v1660, %v1844
      %v1863 = vld [vmem:[%s271 + $0x2] sm:$0xff]
      %v1864 = vld [vmem:[%s271 + $0xa] sm:$0xff]
      %v1865 = vld [vmem:[%s271 + $0x1a] sm:$0xff]
      %v1866 = vld [vmem:[%s271 + $0x22] sm:$0xff]
      %v1867 = vld [vmem:[%s271 + $0x32] sm:$0xff]
      %v1868 = vld [vmem:[%s271 + $0x3a] sm:$0xff]
      %v1869 = vld [vmem:[%s271 + $0x4a] sm:$0xff]
      %v1870 = vld [vmem:[%s271 + $0x52] sm:$0xff]
      %v1871 = vld [vmem:[%s271 + $0x62] sm:$0xff]
      %v1872 = vld [vmem:[%s271 + $0x6a] sm:$0xff]
      %v1873 = vld [vmem:[%s271 + $0x7a] sm:$0xff]
      %v1874 = vld [vmem:[%s271 + $0x82] sm:$0xff]
      %v1875 = vld [vmem:[%s271 + $0x92] sm:$0xff]
      %v1876 = vld [vmem:[%s271 + $0x9a] sm:$0xff]
      %v1877 = vld [vmem:[%s271 + $0xaa] sm:$0xff]
      %v1878 = vld [vmem:[%s271 + $0xb2] sm:$0xff]
      %v1879 = vpack.c.bf16 %v1864, %v1863
      %v1880 = vpack.c.bf16 %v1866, %v1865
      %v1881 = vpack.c.bf16 %v1868, %v1867
      %v1882 = vpack.c.bf16 %v1870, %v1869
      %v1883 = vpack.c.bf16 %v1872, %v1871
      %v1884 = vpack.c.bf16 %v1874, %v1873
      %v1885 = vpack.c.bf16 %v1876, %v1875
      %v1886 = vpack.c.bf16 %v1878, %v1877
      %s1887 = scalar_lea.vmem %s3, 512
      %v1888 = vld [vmem:[%s1887] sm:$0xf]
      %v1889 = vld [vmem:[%s1887 + $0x4] sm:$0xf]
      %v1890 = vld [vmem:[%s1887 + $0x8] sm:$0xf]
      %v1891 = vld [vmem:[%s1887 + $0xc] sm:$0xf]
      %v1892 = vld [vmem:[%s1887 + $0x10] sm:$0xf]
      %v1893 = vld [vmem:[%s1887 + $0x14] sm:$0xf]
      %v1894 = vld [vmem:[%s1887 + $0x18] sm:$0xf]
      %v1895 = vld [vmem:[%s1887 + $0x1c] sm:$0xf]
      %v1896 = vld [vmem:[%s1887 + $0x20] sm:$0xf]
      %v1897 = vld [vmem:[%s1887 + $0x24] sm:$0xf]
      %v1898 = vld [vmem:[%s1887 + $0x28] sm:$0xf]
      %v1899 = vld [vmem:[%s1887 + $0x2c] sm:$0xf]
      %v1900 = vld [vmem:[%s1887 + $0x30] sm:$0xf]
      %v1901 = vld [vmem:[%s1887 + $0x34] sm:$0xf]
      %v1902 = vld [vmem:[%s1887 + $0x38] sm:$0xf]
      %v1903 = vld [vmem:[%s1887 + $0x3c] sm:$0xf]
      %v1920 = vunpack.c.l.b16 %v1888
      %v1921 = vunpack.c.l.b16 %v1889
      %v1922 = vunpack.c.l.b16 %v1890
      %v1923 = vunpack.c.l.b16 %v1891
      %v1924 = vunpack.c.l.b16 %v1892
      %v1925 = vunpack.c.l.b16 %v1893
      %v1926 = vunpack.c.l.b16 %v1894
      %v1927 = vunpack.c.l.b16 %v1895
      %v1928 = vunpack.c.l.b16 %v1896
      %v1929 = vunpack.c.l.b16 %v1897
      %v1930 = vunpack.c.l.b16 %v1898
      %v1931 = vunpack.c.l.b16 %v1899
      %v1932 = vunpack.c.l.b16 %v1900
      %v1933 = vunpack.c.l.b16 %v1901
      %v1934 = vunpack.c.l.b16 %v1902
      %v1935 = vunpack.c.l.b16 %v1903
      %v1936 = vpack.c.b16 %v1921, %v1920
      %v1937 = vpack.c.b16 %v1923, %v1922
      %v1938 = vpack.c.b16 %v1925, %v1924
      %v1939 = vpack.c.b16 %v1927, %v1926
      %v1940 = vpack.c.b16 %v1929, %v1928
      %v1941 = vpack.c.b16 %v1931, %v1930
      %v1942 = vpack.c.b16 %v1933, %v1932
      %v1943 = vpack.c.b16 %v1935, %v1934
      %1952 = vmatprep.subr.bf16.mxu0 0
      %1953 = vmatpush1.bf16.msra.mxu0 %v1943
      %1954 = vmatprep.subr.bf16.mxu0 0
      %1955 = vmatpush1.bf16.msra.mxu0 %v1942
      %1956 = vmatprep.subr.bf16.mxu0 0
      %1957 = vmatpush1.bf16.msra.mxu0 %v1941
      %1958 = vmatprep.subr.bf16.mxu0 0
      %1959 = vmatpush1.bf16.msra.mxu0 %v1940
      %1960 = vmatprep.subr.bf16.mxu0 0
      %1961 = vmatpush1.bf16.msra.mxu0 %v1939
      %1962 = vmatprep.subr.bf16.mxu0 0
      %1963 = vmatpush1.bf16.msra.mxu0 %v1938
      %1964 = vmatprep.subr.bf16.mxu0 0
      %1965 = vmatpush1.bf16.msra.mxu0 %v1937
      %1966 = vmatprep.subr.bf16.mxu0 0
      %1967 = vmatpush1.bf16.msra.mxu0 %v1936
      %1968 = vmatprep.subr.bf16.mxu0 0
      %1969 = vmatpush2.bf16.msra.mxu0 0
      %1970 = vmatprep.subr.bf16.mxu0 0
      %1971 = vmatpush2.bf16.msra.mxu0 0
      %1972 = vmatprep.subr.bf16.mxu0 0
      %1973 = vmatpush2.bf16.msra.mxu0 0
      %1974 = vmatprep.subr.bf16.mxu0 0
      %1975 = vmatpush2.bf16.msra.mxu0 0
      %1976 = vmatprep.subr.bf16.mxu0 0
      %1977 = vmatpush2.bf16.msra.mxu0 0
      %1978 = vmatprep.subr.bf16.mxu0 0
      %1979 = vmatpush2.bf16.msra.mxu0 0
      %1980 = vmatprep.subr.bf16.mxu0 0
      %1981 = vmatpush2.bf16.msra.mxu0 0
      %1982 = vmatprep.subr.bf16.mxu0 0
      %1983 = vmatpush2.bf16.msra.mxu0 0
      %1984 = vmatprep.mubr.bf16.mxu0 0
      %1985 = vmatmul.mubr.bf16.gmra.mxu0 %v1879
      %v1986 = vpop.f32.mrf.mxu0
      %v1987 = vadd.f32 0.0, %v1986
      %v1988 = vpop.f32.mrf.mxu0
      %v1989 = vpop.f32.mrf.mxu0
      %v1990 = vadd.f32 0.0, %v1989
      %v1991 = vpop.f32.mrf.mxu0
      %1992 = vmatprep.mubr.bf16.mxu0 0
      %1993 = vmatmul.mubr.bf16.gmra.mxu0 %v1880
      %v1994 = vpop.f32.mrf.mxu0
      %v1995 = vadd.f32 0.0, %v1994
      %v1996 = vpop.f32.mrf.mxu0
      %v1997 = vpop.f32.mrf.mxu0
      %v1998 = vadd.f32 0.0, %v1997
      %v1999 = vpop.f32.mrf.mxu0
      %2000 = vmatprep.mubr.bf16.mxu0 0
      %2001 = vmatmul.mubr.bf16.gmra.mxu0 %v1881
      %v2002 = vpop.f32.mrf.mxu0
      %v2003 = vadd.f32 0.0, %v2002
      %v2004 = vpop.f32.mrf.mxu0
      %v2005 = vpop.f32.mrf.mxu0
      %v2006 = vadd.f32 0.0, %v2005
      %v2007 = vpop.f32.mrf.mxu0
      %2008 = vmatprep.mubr.bf16.mxu0 0
      %2009 = vmatmul.mubr.bf16.gmra.mxu0 %v1882
      %v2010 = vpop.f32.mrf.mxu0
      %v2011 = vadd.f32 0.0, %v2010
      %v2012 = vpop.f32.mrf.mxu0
      %v2013 = vpop.f32.mrf.mxu0
      %v2014 = vadd.f32 0.0, %v2013
      %v2015 = vpop.f32.mrf.mxu0
      %2016 = vmatprep.mubr.bf16.mxu0 0
      %2017 = vmatmul.mubr.bf16.gmra.mxu0 %v1883
      %v2018 = vpop.f32.mrf.mxu0
      %v2019 = vadd.f32 0.0, %v2018
      %v2020 = vpop.f32.mrf.mxu0
      %v2021 = vpop.f32.mrf.mxu0
      %v2022 = vadd.f32 0.0, %v2021
      %v2023 = vpop.f32.mrf.mxu0
      %2024 = vmatprep.mubr.bf16.mxu0 0
      %2025 = vmatmul.mubr.bf16.gmra.mxu0 %v1884
      %v2026 = vpop.f32.mrf.mxu0
      %v2027 = vadd.f32 0.0, %v2026
      %v2028 = vpop.f32.mrf.mxu0
      %v2029 = vpop.f32.mrf.mxu0
      %v2030 = vadd.f32 0.0, %v2029
      %v2031 = vpop.f32.mrf.mxu0
      %2032 = vmatprep.mubr.bf16.mxu0 0
      %2033 = vmatmul.mubr.bf16.gmra.mxu0 %v1885
      %v2034 = vpop.f32.mrf.mxu0
      %v2035 = vadd.f32 0.0, %v2034
      %v2036 = vpop.f32.mrf.mxu0
      %v2037 = vpop.f32.mrf.mxu0
      %v2038 = vadd.f32 0.0, %v2037
      %v2039 = vpop.f32.mrf.mxu0
      %2040 = vmatprep.mubr.bf16.mxu0 0
      %2041 = vmatmul.mubr.bf16.gmra.mxu0 %v1886
      %v2042 = vpop.f32.mrf.mxu0
      %v2043 = vadd.f32 0.0, %v2042
      %v2044 = vpop.f32.mrf.mxu0
      %v2045 = vpop.f32.mrf.mxu0
      %v2046 = vadd.f32 0.0, %v2045
      %v2047 = vpop.f32.mrf.mxu0
      %2048 = vdwg.mxu0
      %v2049 = vadd.f32 %v1847, %v1987
      %v2050 = vadd.f32 %v1848, %v1990
      %v2051 = vadd.f32 %v1849, %v1995
      %v2052 = vadd.f32 %v1850, %v1998
      %v2053 = vadd.f32 %v1851, %v2003
      %v2054 = vadd.f32 %v1852, %v2006
      %v2055 = vadd.f32 %v1853, %v2011
      %v2056 = vadd.f32 %v1854, %v2014
      %v2057 = vadd.f32 %v1855, %v2019
      %v2058 = vadd.f32 %v1856, %v2022
      %v2059 = vadd.f32 %v1857, %v2027
      %v2060 = vadd.f32 %v1858, %v2030
      %v2061 = vadd.f32 %v1859, %v2035
      %v2062 = vadd.f32 %v1860, %v2038
      %v2063 = vadd.f32 %v1861, %v2043
      %v2064 = vadd.f32 %v1862, %v2046
      %2065 = vst [vmem:[%s277] sm:$0xff] %v2049
      %2066 = vst [vmem:[%s277 + $0x8] sm:$0xff] %v2050
      %2067 = vst [vmem:[%s277 + $0x10] sm:$0xff] %v2051
      %2068 = vst [vmem:[%s277 + $0x18] sm:$0xff] %v2052
      %2069 = vst [vmem:[%s277 + $0x20] sm:$0xff] %v2053
      %2070 = vst [vmem:[%s277 + $0x28] sm:$0xff] %v2054
      %2071 = vst [vmem:[%s277 + $0x30] sm:$0xff] %v2055
      %2072 = vst [vmem:[%s277 + $0x38] sm:$0xff] %v2056
      %2073 = vst [vmem:[%s277 + $0x40] sm:$0xff] %v2057
      %2074 = vst [vmem:[%s277 + $0x48] sm:$0xff] %v2058
      %2075 = vst [vmem:[%s277 + $0x50] sm:$0xff] %v2059
      %2076 = vst [vmem:[%s277 + $0x58] sm:$0xff] %v2060
      %2077 = vst [vmem:[%s277 + $0x60] sm:$0xff] %v2061
      %2078 = vst [vmem:[%s277 + $0x68] sm:$0xff] %v2062
      %2079 = vst [vmem:[%s277 + $0x70] sm:$0xff] %v2063
      %2080 = vst [vmem:[%s277 + $0x78] sm:$0xff] %v2064
      %p2081 = scmp.eq.s32.totalorder %s17, 0
      // Predicated region
      $region37: #{decoder_block_forward.6} parent=35 // pred_check
        %p2082 = pneg %p2081
      $region38: #{decoder_block_forward.6} parent=35 // pred_check_branch
        %2084 = sbr.rel (%p2082) target = $region40
      $region39: #{decoder_block_forward.6} parent=35 // pred_region
        %2085 = vst [vmem:[%s5] sm:$0x3] 0.0
      $region40: #{decoder_block_forward.6} parent=35 // pred_fallthru
        _
      %v2086 = vld [vmem:[%s5] sm:$0x1]
      %v2087 = vadd.f32 %v2049, %v2050
      %v2088 = vadd.f32 %v2087, %v2051
      %v2089 = vadd.f32 %v2088, %v2052
      %v2090 = vadd.f32 %v2089, %v2053
      %v2091 = vadd.f32 %v2090, %v2054
      %v2092 = vadd.f32 %v2091, %v2055
      %v2093 = vadd.f32 %v2092, %v2056
      %v2094 = vadd.f32 %v2093, %v2057
      %v2095 = vadd.f32 %v2094, %v2058
      %v2096 = vadd.f32 %v2095, %v2059
      %v2097 = vadd.f32 %v2096, %v2060
      %v2098 = vadd.f32 %v2097, %v2061
      %v2099 = vadd.f32 %v2098, %v2062
      %v2100 = vadd.f32 %v2099, %v2063
      %v2101 = vadd.f32 %v2100, %v2064
      %v2102 = vrot.slane %v2101, 4
      %v2103 = vadd.f32 %v2101, %v2102
      %v2104 = vrot.slane %v2103, 2
      %v2105 = vadd.f32 %v2103, %v2104
      %v2106 = vrot.slane %v2105, 1
      %v2107 = vadd.f32 %v2105, %v2106
      %v2108 = vadd.f32 %v2086, %v2107
      %2109 = vst [vmem:[%s5] sm:$0x1] %v2108
      %v2110 = vld [vmem:[%s5 + $0x1] sm:$0x1]
      %v2111 = vmul.f32 %v2049, %v2049
      %v2112 = vmul.f32 %v2050, %v2050
      %v2113 = vmul.f32 %v2051, %v2051
      %v2114 = vmul.f32 %v2052, %v2052
      %v2115 = vmul.f32 %v2053, %v2053
      %v2116 = vmul.f32 %v2054, %v2054
      %v2117 = vmul.f32 %v2055, %v2055
      %v2118 = vmul.f32 %v2056, %v2056
      %v2119 = vmul.f32 %v2057, %v2057
      %v2120 = vmul.f32 %v2058, %v2058
      %v2121 = vmul.f32 %v2059, %v2059
      %v2122 = vmul.f32 %v2060, %v2060
      %v2123 = vmul.f32 %v2061, %v2061
      %v2124 = vmul.f32 %v2062, %v2062
      %v2125 = vmul.f32 %v2063, %v2063
      %v2126 = vmul.f32 %v2064, %v2064
      %v2127 = vadd.f32 %v2111, %v2112
      %v2128 = vadd.f32 %v2127, %v2113
      %v2129 = vadd.f32 %v2128, %v2114
      %v2130 = vadd.f32 %v2129, %v2115
      %v2131 = vadd.f32 %v2130, %v2116
      %v2132 = vadd.f32 %v2131, %v2117
      %v2133 = vadd.f32 %v2132, %v2118
      %v2134 = vadd.f32 %v2133, %v2119
      %v2135 = vadd.f32 %v2134, %v2120
      %v2136 = vadd.f32 %v2135, %v2121
      %v2137 = vadd.f32 %v2136, %v2122
      %v2138 = vadd.f32 %v2137, %v2123
      %v2139 = vadd.f32 %v2138, %v2124
      %v2140 = vadd.f32 %v2139, %v2125
      %v2141 = vadd.f32 %v2140, %v2126
      %v2142 = vrot.slane %v2141, 4
      %v2143 = vadd.f32 %v2141, %v2142
      %v2144 = vrot.slane %v2143, 2
      %v2145 = vadd.f32 %v2143, %v2144
      %v2146 = vrot.slane %v2145, 1
      %v2147 = vadd.f32 %v2145, %v2146
      %v2148 = vadd.f32 %v2110, %v2147
      %2149 = vst [vmem:[%s5 + $0x1] sm:$0x1] %v2148
      %s2150 = smul.u32 16, %s17
      %p2151 = scmp.lt.s32.totalorder %s2150, 63
      %s2152 = scalar_select %p2151, %s2150, 63
      %s2153 = smul.addr %s2152, 8
      %s2154 = scalar_lea.vmem %s4, %s2153
      // Predicated region
      $region41: #{decoder_block_forward.6} parent=35 // pred_check
        %p2155 = pneg %p134
      $region42: #{decoder_block_forward.6} parent=35 // pred_check_branch
        %2157 = sbr.rel (%p2155) target = $region44
      $region43: #{decoder_block_forward.6} parent=35 // pred_region
        %s2158 = smul.u32 16, %s17
      $region44: #{decoder_block_forward.6} parent=35 // pred_fallthru
        _
      // Predicated region
      $region45: #{decoder_block_forward.6} parent=35 // pred_check
        %p2159 = pneg %p155
      $region46: #{decoder_block_forward.6} parent=35 // pred_check_branch
        %2161 = sbr.rel (%p2159) target = $region48
      $region47: #{decoder_block_forward.6} parent=35 // pred_region
        _
      $region48: #{decoder_block_forward.6} parent=35 // pred_fallthru
        _
      // Predicated region
      $region49: #{decoder_block_forward.6} parent=35 // pred_check
        %p2162 = pneg %p155
      $region50: #{decoder_block_forward.6} parent=35 // pred_check_branch
        %2164 = sbr.rel (%p2162) target = $region52
      $region51: #{decoder_block_forward.6} parent=35 // pred_region
        _
      $region52: #{decoder_block_forward.6} parent=35 // pred_fallthru
        _
    $region36: #{decoder_block_forward.6} parent=5 // pred_fallthru
      _
    %p2165 = scmp.le.s32.totalorder 2, %s12
    // Predicated region
    $region53: #{decoder_block_forward.6} parent=5 // pred_check
      %p2166 = pneg %p2165
    $region54: #{decoder_block_forward.6} parent=5 // pred_check_branch
      %2168 = sbr.rel (%p2166) target = $region56
    $region55: #{decoder_block_forward.6} parent=5 // pred_region
      %s2169 = ssub.s32 %s12, 2
      // Predicated region
      $region57: #{decoder_block_forward.6} parent=55 // pred_check
        %p2170 = pneg %p140
      $region58: #{decoder_block_forward.6} parent=55 // pred_check_branch
        %2172 = sbr.rel (%p2170) target = $region60
      $region59: #{decoder_block_forward.6} parent=55 // pred_region
        %s2173 = smul.u32 16, %s18
        %p2174 = scmp.lt.s32.totalorder %s2173, 63
        %s2175 = scalar_select %p2174, %s2173, 63
        %s2176 = smul.addr %s2175, 8
        %s2177 = scalar_lea.vmem %s4, %s2176
      $region60: #{decoder_block_forward.6} parent=55 // pred_fallthru
        _
    $region56: #{decoder_block_forward.6} parent=5 // pred_fallthru
      _
  $region6: #{decoder_block_forward.6} parent=0 // loop_footer
    %s16 = sadd.s32 1, %s12
  $region7: #{decoder_block_forward.6} parent=0 // loop_footer_branch
    %11 = sbr.rel target = $region3
  $region8: #{decoder_block_forward.6} parent=0 // loop_exit
    _

</llo_original>
